<compile_context>
chip_gen: v5e
topology: v5e:2x2
jax: 0.10.0
libtpu: 0.0.40
codegen_flags: <defaults>
</compile_context>

<pallas_src>
import jax
import jax.numpy as jnp
from jax import lax
from jax.experimental import pallas as pl
from jax.experimental.pallas import tpu as pltpu

EPS = 1e-5  # torch.nn.LayerNorm default eps


# --------------------------- tiling / VMEM heuristics -----------------------
def _vmem_limit_bytes() -> int:
    """Per-generation scoped-VMEM limit (~40 MiB on v7x, 64 MiB on v5e/v6e)."""
    cap = None
    get_info = getattr(pltpu, "get_tpu_info", None)
    if get_info is not None:
        try:
            cap = getattr(get_info(), "vmem_capacity_bytes", None)
        except Exception:
            cap = None
    if not cap:
        cap = 64 * 1024 * 1024
    return max(32 * 1024 * 1024, min((int(cap) * 5) // 8, 64 * 1024 * 1024))


def _row_tile(S: int, D: int, H: int, budget: int) -> int:
    """i-rows per grid step for phases 1/3 (ti*S must be lane-friendly)."""
    per_row = S * (16 * D + 56 * H)  # rough per-row VMEM (blocks + f32 temporaries)
    want = max(1, (budget * 3 // 4) // max(per_row, 1))
    cands = [d for d in range(1, S + 1)
             if S % d == 0 and ((d * S) % 128 == 0 or d == S)]
    fit = [d for d in cands if d <= want]
    return max(fit) if fit else min(cands)


def _tri_tiles(S: int, H: int, budget: int):
    """(hc, tj): channels / i-rows per grid step for the triangular matmul."""
    h_cands = [d for d in range(min(H, 16), 0, -1) if H % d == 0]
    j_cands = [d for d in range(S, 0, -1) if S % d == 0 and (d % 8 == 0 or d == S)]
    for tj in j_cands:
        for hc in h_cands:
            blocks = 2 * (2 * hc * tj * S * 2 + hc * S * S * 2)  # dbl-buffered l/out + right
            temps = 2 * hc * tj * S * 4                          # f32 accumulator
            if blocks + temps <= budget * 3 // 4:
                return hc, tj
    # TODO(synk): add k-tiling (reduction over S) for very large S.
    return h_cands[-1], j_cands[-1]


# --------------------------- phase 1: pre -----------------------------------
def _pre_kernel(x_ref, m_ref, w5t_ref, g1_ref, b1_ref, l_ref, r_ref, og_ref):
    ti, S, D = x_ref.shape[1], x_ref.shape[2], x_ref.shape[3]
    H = l_ref.shape[1]
    rows = ti * S

    x = x_ref[0].reshape(rows, D)                       # (i,k) plane rows, dim on lanes
    # LayerNorm over dim (f32)
    mu = jnp.mean(x, axis=-1, keepdims=True)
    var = jnp.mean(jnp.square(x - mu), axis=-1, keepdims=True)
    xn = (x - mu) * lax.rsqrt(var + EPS)
    xn = xn * g1_ref[...] + b1_ref[...]

    # channel-major fused 5-way projection (MXU, bf16 operands / f32 acc):
    #   proj[c, r] = sum_d w5t[c, d] * xn[r, d]   with w5t = [wl|wr|wlg|wrg|wog]^T
    xn_t = jnp.transpose(xn).astype(jnp.bfloat16)       # [D, rows]
    proj = jnp.dot(w5t_ref[...], xn_t,
                   preferred_element_type=jnp.float32)  # [5H, rows]

    gate = jax.nn.sigmoid(proj[2 * H:, :])              # [3H, rows]
    m = m_ref[0]                                        # [1, rows] pair mask
    left = proj[:H, :] * m * gate[:H, :]
    right = proj[H:2 * H, :] * m * gate[H:2 * H, :]

    l_ref[0] = left.astype(jnp.bfloat16)                # channel-major stores
    r_ref[0] = right.astype(jnp.bfloat16)
    og_ref[0] = gate[2 * H:, :].astype(jnp.bfloat16)


# --------------------------- phase 2: triangular product --------------------
def _tri_kernel(l_ref, r_ref, o_ref):
    # l: [1, hc, tj, S] = (h, i, k);  r: [1, hc, S, S] = (h, j, k)
    acc = lax.dot_general(
        l_ref[0], r_ref[0],
        dimension_numbers=(((2,), (2,)), ((0,), (0,))),
        preferred_element_type=jnp.float32)             # [hc, tj, S] = (h, i, j)
    o_ref[0] = acc.astype(jnp.bfloat16)                 # single rounding of the acc


# --------------------------- phase 3: post -----------------------------------
def _post_kernel(t_ref, og_ref, g2_ref, b2_ref, wo_ref, o_ref):
    t = t_ref[0].astype(jnp.float32)                    # [H, rows] channel-major
    og = og_ref[0].astype(jnp.float32)                  # [H, rows]

    # LayerNorm over hidden (axis 0 in channel-major layout)
    mu = jnp.mean(t, axis=0, keepdims=True)
    var = jnp.mean(jnp.square(t - mu), axis=0, keepdims=True)
    on = (t - mu) * lax.rsqrt(var + EPS)
    on = on * g2_ref[...] + b2_ref[...]                 # g2/b2 passed as [H, 1]
    on = on * og

    # out[r, d] = sum_h on[h, r] * wo[h, d]   (transposed-LHS MXU matmul)
    res = lax.dot_general(
        on.astype(jnp.bfloat16), wo_ref[...],
        dimension_numbers=(((0,), (0,)), ((), ())),
        preferred_element_type=jnp.float32)             # [rows, D]
    o_ref[0] = res


# --------------------------- wrapper -----------------------------------------
def trimul_forward(x, mask, params):
    B, S, _, D = x.shape
    H = params["wl"].shape[1]
    x = x.astype(jnp.float32)
    mask3 = mask.astype(jnp.float32).reshape(B, 1, S * S)      # lane-dense view

    # fused projection weight, pre-transposed & pre-cast: [5H, D] bf16
    w5t = jnp.concatenate(
        [params["wl"], params["wr"], params["wlg"], params["wrg"], params["wog"]],
        axis=1).T.astype(jnp.bfloat16)
    wo = params["wo"].astype(jnp.bfloat16)                     # [H, D]
    g2c = params["g2"].reshape(H, 1)
    b2c = params["b2"].reshape(H, 1)

    vmem = _vmem_limit_bytes()
    ti = _row_tile(S, D, H, vmem)
    hc, tj = _tri_tiles(S, H, vmem)

    cp2 = pltpu.CompilerParams(dimension_semantics=("parallel", "parallel"),
                               vmem_limit_bytes=vmem)
    cp3 = pltpu.CompilerParams(dimension_semantics=("parallel", "parallel", "parallel"),
                               vmem_limit_bytes=vmem)

    # ---- phase 1: LN(dim) + fused projection + gates + mask (channel-major) ----
    left, right, og = pl.pallas_call(
        _pre_kernel,
        out_shape=(jax.ShapeDtypeStruct((B, H, S * S), jnp.bfloat16),
                   jax.ShapeDtypeStruct((B, H, S * S), jnp.bfloat16),
                   jax.ShapeDtypeStruct((B, H, S * S), jnp.bfloat16)),
        grid_spec=pltpu.PrefetchScalarGridSpec(
            num_scalar_prefetch=0,
            grid=(B, S // ti),
            in_specs=[
                pl.BlockSpec((1, ti, S, D), lambda b, t: (b, t, 0, 0)),      # x
                pl.BlockSpec((1, 1, ti * S), lambda b, t: (b, 0, t)),        # mask
                pl.BlockSpec((5 * H, D), lambda b, t: (0, 0)),               # w5^T
                pl.BlockSpec((1, D), lambda b, t: (0, 0)),                   # g1
                pl.BlockSpec((1, D), lambda b, t: (0, 0)),                   # b1
            ],
            out_specs=[
                pl.BlockSpec((1, H, ti * S), lambda b, t: (b, 0, t)),        # left
                pl.BlockSpec((1, H, ti * S), lambda b, t: (b, 0, t)),        # right
                pl.BlockSpec((1, H, ti * S), lambda b, t: (b, 0, t)),        # out-gate
            ]),
        compiler_params=cp2,
    )(x, mask3, w5t, params["g1"], params["b1"])

    # free, layout-preserving views for the channel-batched triangular matmul
    left4 = left.reshape(B, H, S, S)
    right4 = right.reshape(B, H, S, S)

    # ---- phase 2: tri[b,h,i,j] = sum_k left[b,h,i,k] * right[b,h,j,k] ----------
    tri = pl.pallas_call(
        _tri_kernel,
        out_shape=jax.ShapeDtypeStruct((B, H, S, S), jnp.bfloat16),
        grid_spec=pltpu.PrefetchScalarGridSpec(
            num_scalar_prefetch=0,
            grid=(B, H // hc, S // tj),
            in_specs=[
                pl.BlockSpec((1, hc, tj, S), lambda b, h, i: (b, h, i, 0)),  # left
                pl.BlockSpec((1, hc, S, S), lambda b, h, i: (b, h, 0, 0)),   # right (resident over i)
            ],
            out_specs=pl.BlockSpec((1, hc, tj, S), lambda b, h, i: (b, h, i, 0))),
        compiler_params=cp3,
    )(left4, right4)

    tri3 = tri.reshape(B, H, S * S)                             # free view

    # ---- phase 3: LN(hidden) + out-gate + output projection --------------------
    out = pl.pallas_call(
        _post_kernel,
        out_shape=jax.ShapeDtypeStruct((B, S * S, D), jnp.float32),
        grid_spec=pltpu.PrefetchScalarGridSpec(
            num_scalar_prefetch=0,
            grid=(B, S // ti),
            in_specs=[
                pl.BlockSpec((1, H, ti * S), lambda b, t: (b, 0, t)),        # tri
                pl.BlockSpec((1, H, ti * S), lambda b, t: (b, 0, t)),        # out-gate
                pl.BlockSpec((H, 1), lambda b, t: (0, 0)),                   # g2 (column)
                pl.BlockSpec((H, 1), lambda b, t: (0, 0)),                   # b2 (column)
                pl.BlockSpec((H, D), lambda b, t: (0, 0)),                   # wo
            ],
            out_specs=pl.BlockSpec((1, ti * S, D), lambda b, t: (b, t, 0))),
        compiler_params=cp2,
    )(tri3, og, g2c, b2c, wo)

    return out.reshape(B, S, S, D)


# --------------------------- reference & setup -------------------------------
def trimul_reference(x, mask, p):
    """Pure-JAX reference mirroring the PyTorch forward."""
    mu = jnp.mean(x, -1, keepdims=True)
    var = jnp.mean(jnp.square(x - mu), -1, keepdims=True)
    xn = (x - mu) / jnp.sqrt(var + EPS) * p["g1"].reshape(-1) + p["b1"].reshape(-1)
    m = mask[..., None]
    left = (xn @ p["wl"]) * m * jax.nn.sigmoid(xn @ p["wlg"])
    right = (xn @ p["wr"]) * m * jax.nn.sigmoid(xn @ p["wrg"])
    og = jax.nn.sigmoid(xn @ p["wog"])
    out = jnp.einsum("bikd,bjkd->bijd",
                     left.astype(jnp.bfloat16), right.astype(jnp.bfloat16),
                     preferred_element_type=jnp.float32)
    out = out.astype(jnp.bfloat16).astype(jnp.float32)
    mu2 = jnp.mean(out, -1, keepdims=True)
    var2 = jnp.mean(jnp.square(out - mu2), -1, keepdims=True)
    on = (out - mu2) / jnp.sqrt(var2 + EPS) * p["g2"].reshape(-1) + p["b2"].reshape(-1)
    on = on * og
    return on @ p["wo"]


def init_params(key, dim, hidden):
    ks = jax.random.split(key, 10)
    sd = 1.0 / jnp.sqrt(jnp.float32(dim))
    sh = 1.0 / jnp.sqrt(jnp.float32(hidden))
    return {
        # Linear weights pre-transposed to [in, out]
        "wl":  jax.random.uniform(ks[0], (dim, hidden), jnp.float32, -sd, sd),
        "wr":  jax.random.uniform(ks[1], (dim, hidden), jnp.float32, -sd, sd),
        "wlg": jax.random.uniform(ks[2], (dim, hidden), jnp.float32, -sd, sd),
        "wrg": jax.random.uniform(ks[3], (dim, hidden), jnp.float32, -sd, sd),
        "wog": jax.random.uniform(ks[4], (dim, hidden), jnp.float32, -sd, sd),
        "wo":  jax.random.uniform(ks[5], (hidden, dim), jnp.float32, -sh, sh),
        # LayerNorm affine params (non-trivial to exercise the code path)
        "g1": 1.0 + 0.1 * jax.random.normal(ks[6], (1, dim), jnp.float32),
        "b1": 0.1 * jax.random.normal(ks[7], (1, dim), jnp.float32),
        "g2": 1.0 + 0.1 * jax.random.normal(ks[8], (1, hidden), jnp.float32),
        "b2": 0.1 * jax.random.normal(ks[9], (1, hidden), jnp.float32),
    }


if __name__ == "__main__":
    B, S, D, H = 2, 16, 32, 32
    key = jax.random.PRNGKey(0)
    kx, km, kp = jax.random.split(key, 3)

    x = jax.random.normal(kx, (B, S, S, D), jnp.float32)
    mask = (jax.random.uniform(km, (B, S, S)) > 0.3).astype(jnp.float32)
    params = init_params(kp, D, H)

    fwd = jax.jit(trimul_forward)
    out = fwd(x, mask, params)
    out = jax.block_until_ready(out)

    assert out.shape == (B, S, S, D)
    assert bool(jnp.all(jnp.isfinite(out)))

    ref = trimul_reference(x, mask, params)
    max_err = float(jnp.max(jnp.abs(out - ref)))
    assert max_err < 5e-2, f"mismatch vs reference: {max_err}"

    print("KERNEL_OK")
</pallas_src>

<mosaic_0001>
module attributes {stable_mosaic.version = 11 : i64} {
  func.func @_pre_kernel(%arg0: i32, %arg1: i32, %arg2: memref<1x16x16x32xf32, #tpu.memory_space<vmem>>, %arg3: memref<1x1x256xf32, #tpu.memory_space<vmem>>, %arg4: memref<160x32xbf16, #tpu.memory_space<vmem>>, %arg5: memref<1x32xf32, #tpu.memory_space<vmem>>, %arg6: memref<1x32xf32, #tpu.memory_space<vmem>>, %arg7: memref<1x32x256xbf16, #tpu.memory_space<vmem>>, %arg8: memref<1x32x256xbf16, #tpu.memory_space<vmem>>, %arg9: memref<1x32x256xbf16, #tpu.memory_space<vmem>>) attributes {dimension_semantics = [#tpu.dimension_semantics<parallel>, #tpu.dimension_semantics<parallel>], iteration_bounds = array<i64: 2, 1>, scalar_prefetch = 0 : i64, scratch_operands = 0 : i64, tpu.core_type = #tpu.core_type<tc>, window_params = [{transform_indices = @transform_0, window_bounds = array<i64: 1, 16, 16, 32>}, {transform_indices = @transform_1, window_bounds = array<i64: 1, 1, 256>}, {pipeline_mode = #tpu.pipeline_mode<synchronous>, transform_indices = @transform_2, window_bounds = array<i64: 160, 32>}, {pipeline_mode = #tpu.pipeline_mode<synchronous>, transform_indices = @transform_3, window_bounds = array<i64: 1, 32>}, {pipeline_mode = #tpu.pipeline_mode<synchronous>, transform_indices = @transform_4, window_bounds = array<i64: 1, 32>}, {transform_indices = @transform_5, window_bounds = array<i64: 1, 32, 256>}, {transform_indices = @transform_6, window_bounds = array<i64: 1, 32, 256>}, {transform_indices = @transform_7, window_bounds = array<i64: 1, 32, 256>}]} {
    %c0 = arith.constant 0 : index
    %c0_0 = arith.constant 0 : index
    %c0_1 = arith.constant 0 : index
    %c0_2 = arith.constant 0 : index
    %0 = vector.load %arg2[%c0, %c0_0, %c0_1, %c0_2] : memref<1x16x16x32xf32, #tpu.memory_space<vmem>>, vector<1x16x16x32xf32>
    %1 = vector.shape_cast %0 : vector<1x16x16x32xf32> to vector<16x16x32xf32>
    %2 = vector.shape_cast %1 : vector<16x16x32xf32> to vector<256x32xf32>
    %cst = arith.constant dense<0.000000e+00> : vector<256xf32>
    %3 = vector.multi_reduction <add>, %2, %cst [1] : vector<256x32xf32> to vector<256xf32>
    %4 = vector.shape_cast %3 : vector<256xf32> to vector<256x1xf32>
    %cst_3 = arith.constant 3.200000e+01 : f32
    %5 = vector.broadcast %cst_3 : f32 to vector<256x1xf32>
    %6 = arith.divf %4, %5 : vector<256x1xf32>
    %7 = vector.broadcast %6 : vector<256x1xf32> to vector<256x32xf32>
    %8 = arith.subf %2, %7 : vector<256x32xf32>
    %9 = arith.mulf %8, %8 : vector<256x32xf32>
    %cst_4 = arith.constant dense<0.000000e+00> : vector<256xf32>
    %10 = vector.multi_reduction <add>, %9, %cst_4 [1] : vector<256x32xf32> to vector<256xf32>
    %11 = vector.shape_cast %10 : vector<256xf32> to vector<256x1xf32>
    %cst_5 = arith.constant 3.200000e+01 : f32
    %12 = vector.broadcast %cst_5 : f32 to vector<256x1xf32>
    %13 = arith.divf %11, %12 : vector<256x1xf32>
    %14 = vector.broadcast %6 : vector<256x1xf32> to vector<256x32xf32>
    %15 = arith.subf %2, %14 : vector<256x32xf32>
    %cst_6 = arith.constant 9.99999974E-6 : f32
    %16 = vector.broadcast %cst_6 : f32 to vector<256x1xf32>
    %17 = arith.addf %13, %16 : vector<256x1xf32>
    %18 = math.rsqrt %17 : vector<256x1xf32>
    %19 = vector.broadcast %18 : vector<256x1xf32> to vector<256x32xf32>
    %20 = arith.mulf %15, %19 : vector<256x32xf32>
    %c0_7 = arith.constant 0 : index
    %c0_8 = arith.constant 0 : index
    %21 = vector.load %arg5[%c0_7, %c0_8] : memref<1x32xf32, #tpu.memory_space<vmem>>, vector<1x32xf32>
    %22 = vector.broadcast %21 : vector<1x32xf32> to vector<256x32xf32>
    %23 = arith.mulf %20, %22 : vector<256x32xf32>
    %c0_9 = arith.constant 0 : index
    %c0_10 = arith.constant 0 : index
    %24 = vector.load %arg6[%c0_9, %c0_10] : memref<1x32xf32, #tpu.memory_space<vmem>>, vector<1x32xf32>
    %25 = vector.broadcast %24 : vector<1x32xf32> to vector<256x32xf32>
    %26 = arith.addf %23, %25 : vector<256x32xf32>
    %27 = tpu.transpose %26, [1, 0] : vector<256x32xf32> -> vector<32x256xf32>
    %28 = arith.truncf %27 : vector<32x256xf32> to vector<32x256xbf16>
    %c0_11 = arith.constant 0 : index
    %c0_12 = arith.constant 0 : index
    %29 = vector.load %arg4[%c0_11, %c0_12] : memref<160x32xbf16, #tpu.memory_space<vmem>>, vector<160x32xbf16>
    %cst_13 = arith.constant dense<0.000000e+00> : vector<160x256xf32>
    %30 = tpu.matmul %29, %28, %cst_13 {dimension_numbers = #tpu.dot_dimension_numbers<[1], [0], [0], [1], [0, 0, 1, 1], [], []>} : vector<160x32xbf16>, vector<32x256xbf16>, vector<160x256xf32> -> vector<160x256xf32>
    %31 = vector.extract_strided_slice %30 {offsets = [64, 0], sizes = [96, 256], strides = [1, 1]} : vector<160x256xf32> to vector<96x256xf32>
    %32 = arith.negf %31 : vector<96x256xf32>
    %33 = math.exp %32 : vector<96x256xf32>
    %cst_14 = arith.constant 1.000000e+00 : f32
    %34 = vector.broadcast %cst_14 : f32 to vector<96x256xf32>
    %35 = arith.addf %34, %33 : vector<96x256xf32>
    %36 = arith.divf %34, %35 : vector<96x256xf32>
    %c0_15 = arith.constant 0 : index
    %c0_16 = arith.constant 0 : index
    %c0_17 = arith.constant 0 : index
    %37 = vector.load %arg3[%c0_15, %c0_16, %c0_17] : memref<1x1x256xf32, #tpu.memory_space<vmem>>, vector<1x1x256xf32>
    %38 = vector.shape_cast %37 : vector<1x1x256xf32> to vector<1x256xf32>
    %39 = vector.extract_strided_slice %30 {offsets = [0, 0], sizes = [32, 256], strides = [1, 1]} : vector<160x256xf32> to vector<32x256xf32>
    %40 = vector.broadcast %38 : vector<1x256xf32> to vector<32x256xf32>
    %41 = arith.mulf %39, %40 : vector<32x256xf32>
    %42 = vector.extract_strided_slice %36 {offsets = [0, 0], sizes = [32, 256], strides = [1, 1]} : vector<96x256xf32> to vector<32x256xf32>
    %43 = arith.mulf %41, %42 : vector<32x256xf32>
    %44 = vector.extract_strided_slice %30 {offsets = [32, 0], sizes = [32, 256], strides = [1, 1]} : vector<160x256xf32> to vector<32x256xf32>
    %45 = vector.broadcast %38 : vector<1x256xf32> to vector<32x256xf32>
    %46 = arith.mulf %44, %45 : vector<32x256xf32>
    %47 = vector.extract_strided_slice %36 {offsets = [32, 0], sizes = [32, 256], strides = [1, 1]} : vector<96x256xf32> to vector<32x256xf32>
    %48 = arith.mulf %46, %47 : vector<32x256xf32>
    %49 = arith.truncf %43 : vector<32x256xf32> to vector<32x256xbf16>
    %c0_18 = arith.constant 0 : index
    %c0_19 = arith.constant 0 : index
    %c0_20 = arith.constant 0 : index
    %50 = vector.load %arg7[%c0_18, %c0_19, %c0_20] : memref<1x32x256xbf16, #tpu.memory_space<vmem>>, vector<1x32x256xbf16>
    %51 = vector.shape_cast %50 : vector<1x32x256xbf16> to vector<32x256xbf16>
    %52 = vector.shape_cast %49 : vector<32x256xbf16> to vector<1x32x256xbf16>
    tpu.vector_store %arg7[%c0_18, %c0_19, %c0_20], %52 {strides = array<i32>} : memref<1x32x256xbf16, #tpu.memory_space<vmem>>, vector<1x32x256xbf16>,
    %53 = arith.truncf %48 : vector<32x256xf32> to vector<32x256xbf16>
    %c0_21 = arith.constant 0 : index
    %c0_22 = arith.constant 0 : index
    %c0_23 = arith.constant 0 : index
    %54 = vector.load %arg8[%c0_21, %c0_22, %c0_23] : memref<1x32x256xbf16, #tpu.memory_space<vmem>>, vector<1x32x256xbf16>
    %55 = vector.shape_cast %54 : vector<1x32x256xbf16> to vector<32x256xbf16>
    %56 = vector.shape_cast %53 : vector<32x256xbf16> to vector<1x32x256xbf16>
    tpu.vector_store %arg8[%c0_21, %c0_22, %c0_23], %56 {strides = array<i32>} : memref<1x32x256xbf16, #tpu.memory_space<vmem>>, vector<1x32x256xbf16>,
    %57 = vector.extract_strided_slice %36 {offsets = [64, 0], sizes = [32, 256], strides = [1, 1]} : vector<96x256xf32> to vector<32x256xf32>
    %58 = arith.truncf %57 : vector<32x256xf32> to vector<32x256xbf16>
    %c0_24 = arith.constant 0 : index
    %c0_25 = arith.constant 0 : index
    %c0_26 = arith.constant 0 : index
    %59 = vector.load %arg9[%c0_24, %c0_25, %c0_26] : memref<1x32x256xbf16, #tpu.memory_space<vmem>>, vector<1x32x256xbf16>
    %60 = vector.shape_cast %59 : vector<1x32x256xbf16> to vector<32x256xbf16>
    %61 = vector.shape_cast %58 : vector<32x256xbf16> to vector<1x32x256xbf16>
    tpu.vector_store %arg9[%c0_24, %c0_25, %c0_26], %61 {strides = array<i32>} : memref<1x32x256xbf16, #tpu.memory_space<vmem>>, vector<1x32x256xbf16>,
    return
  }
  func.func @transform_0(%arg0: i32, %arg1: i32) -> (i32, i32, i32, i32) {
    %c0_i32 = arith.constant 0 : i32
    %c0_i32_0 = arith.constant 0 : i32
    %c0_i32_1 = arith.constant 0 : i32
    return %arg0, %arg1, %c0_i32, %c0_i32_0 : i32, i32, i32, i32
  }
  func.func @transform_1(%arg0: i32, %arg1: i32) -> (i32, i32, i32) {
    %c0_i32 = arith.constant 0 : i32
    %c0_i32_0 = arith.constant 0 : i32
    return %arg0, %c0_i32, %arg1 : i32, i32, i32
  }
  func.func @transform_2(%arg0: i32, %arg1: i32) -> (i32, i32) {
    %c0_i32 = arith.constant 0 : i32
    %c0_i32_0 = arith.constant 0 : i32
    %c0_i32_1 = arith.constant 0 : i32
    return %c0_i32, %c0_i32_0 : i32, i32
  }
  func.func @transform_3(%arg0: i32, %arg1: i32) -> (i32, i32) {
    %c0_i32 = arith.constant 0 : i32
    %c0_i32_0 = arith.constant 0 : i32
    %c0_i32_1 = arith.constant 0 : i32
    return %c0_i32, %c0_i32_0 : i32, i32
  }
  func.func @transform_4(%arg0: i32, %arg1: i32) -> (i32, i32) {
    %c0_i32 = arith.constant 0 : i32
    %c0_i32_0 = arith.constant 0 : i32
    %c0_i32_1 = arith.constant 0 : i32
    return %c0_i32, %c0_i32_0 : i32, i32
  }
  func.func @transform_5(%arg0: i32, %arg1: i32) -> (i32, i32, i32) {
    %c0_i32 = arith.constant 0 : i32
    %c0_i32_0 = arith.constant 0 : i32
    return %arg0, %c0_i32, %arg1 : i32, i32, i32
  }
  func.func @transform_6(%arg0: i32, %arg1: i32) -> (i32, i32, i32) {
    %c0_i32 = arith.constant 0 : i32
    %c0_i32_0 = arith.constant 0 : i32
    return %arg0, %c0_i32, %arg1 : i32, i32, i32
  }
  func.func @transform_7(%arg0: i32, %arg1: i32) -> (i32, i32, i32) {
    %c0_i32 = arith.constant 0 : i32
    %c0_i32_0 = arith.constant 0 : i32
    return %arg0, %c0_i32, %arg1 : i32, i32, i32
  }
}

module attributes {stable_mosaic.version = 11 : i64} {
  func.func @_tri_kernel(%arg0: i32, %arg1: i32, %arg2: i32, %arg3: memref<1x16x16x16xbf16, #tpu.memory_space<vmem>>, %arg4: memref<1x16x16x16xbf16, #tpu.memory_space<vmem>>, %arg5: memref<1x16x16x16xbf16, #tpu.memory_space<vmem>>) attributes {dimension_semantics = [#tpu.dimension_semantics<parallel>, #tpu.dimension_semantics<parallel>, #tpu.dimension_semantics<parallel>], iteration_bounds = array<i64: 2, 2, 1>, scalar_prefetch = 0 : i64, scratch_operands = 0 : i64, tpu.core_type = #tpu.core_type<tc>, window_params = [{transform_indices = @transform_0, window_bounds = array<i64: 1, 16, 16, 16>}, {transform_indices = @transform_1, window_bounds = array<i64: 1, 16, 16, 16>}, {transform_indices = @transform_2, window_bounds = array<i64: 1, 16, 16, 16>}]} {
    %c0 = arith.constant 0 : index
    %c0_0 = arith.constant 0 : index
    %c0_1 = arith.constant 0 : index
    %c0_2 = arith.constant 0 : index
    %0 = vector.load %arg3[%c0, %c0_0, %c0_1, %c0_2] : memref<1x16x16x16xbf16, #tpu.memory_space<vmem>>, vector<1x16x16x16xbf16>
    %1 = vector.shape_cast %0 : vector<1x16x16x16xbf16> to vector<16x16x16xbf16>
    %c0_3 = arith.constant 0 : index
    %c0_4 = arith.constant 0 : index
    %c0_5 = arith.constant 0 : index
    %c0_6 = arith.constant 0 : index
    %2 = vector.load %arg4[%c0_3, %c0_4, %c0_5, %c0_6] : memref<1x16x16x16xbf16, #tpu.memory_space<vmem>>, vector<1x16x16x16xbf16>
    %3 = vector.shape_cast %2 : vector<1x16x16x16xbf16> to vector<16x16x16xbf16>
    %cst = arith.constant dense<0.000000e+00> : vector<16x16x16xf32>
    %4 = tpu.matmul %1, %3, %cst {dimension_numbers = #tpu.dot_dimension_numbers<[2], [2], [1], [1], [0, 0, 0, 1, 1, 1], [0], [0]>} : vector<16x16x16xbf16>, vector<16x16x16xbf16>, vector<16x16x16xf32> -> vector<16x16x16xf32>
    %5 = arith.truncf %4 : vector<16x16x16xf32> to vector<16x16x16xbf16>
    %c0_7 = arith.constant 0 : index
    %c0_8 = arith.constant 0 : index
    %c0_9 = arith.constant 0 : index
    %c0_10 = arith.constant 0 : index
    %6 = vector.load %arg5[%c0_7, %c0_8, %c0_9, %c0_10] : memref<1x16x16x16xbf16, #tpu.memory_space<vmem>>, vector<1x16x16x16xbf16>
    %7 = vector.shape_cast %6 : vector<1x16x16x16xbf16> to vector<16x16x16xbf16>
    %8 = vector.shape_cast %5 : vector<16x16x16xbf16> to vector<1x16x16x16xbf16>
    tpu.vector_store %arg5[%c0_7, %c0_8, %c0_9, %c0_10], %8 {strides = array<i32>} : memref<1x16x16x16xbf16, #tpu.memory_space<vmem>>, vector<1x16x16x16xbf16>,
    return
  }
  func.func @transform_0(%arg0: i32, %arg1: i32, %arg2: i32) -> (i32, i32, i32, i32) {
    %c0_i32 = arith.constant 0 : i32
    %c0_i32_0 = arith.constant 0 : i32
    return %arg0, %arg1, %arg2, %c0_i32 : i32, i32, i32, i32
  }
  func.func @transform_1(%arg0: i32, %arg1: i32, %arg2: i32) -> (i32, i32, i32, i32) {
    %c0_i32 = arith.constant 0 : i32
    %c0_i32_0 = arith.constant 0 : i32
    %c0_i32_1 = arith.constant 0 : i32
    return %arg0, %arg1, %c0_i32, %c0_i32_0 : i32, i32, i32, i32
  }
  func.func @transform_2(%arg0: i32, %arg1: i32, %arg2: i32) -> (i32, i32, i32, i32) {
    %c0_i32 = arith.constant 0 : i32
    %c0_i32_0 = arith.constant 0 : i32
    return %arg0, %arg1, %arg2, %c0_i32 : i32, i32, i32, i32
  }
}

module attributes {stable_mosaic.version = 11 : i64} {
  func.func @_post_kernel(%arg0: i32, %arg1: i32, %arg2: memref<1x32x256xbf16, #tpu.memory_space<vmem>>, %arg3: memref<1x32x256xbf16, #tpu.memory_space<vmem>>, %arg4: memref<32x1xf32, #tpu.memory_space<vmem>>, %arg5: memref<32x1xf32, #tpu.memory_space<vmem>>, %arg6: memref<32x32xbf16, #tpu.memory_space<vmem>>, %arg7: memref<1x256x32xf32, #tpu.memory_space<vmem>>) attributes {dimension_semantics = [#tpu.dimension_semantics<parallel>, #tpu.dimension_semantics<parallel>], iteration_bounds = array<i64: 2, 1>, scalar_prefetch = 0 : i64, scratch_operands = 0 : i64, tpu.core_type = #tpu.core_type<tc>, window_params = [{transform_indices = @transform_0, window_bounds = array<i64: 1, 32, 256>}, {transform_indices = @transform_1, window_bounds = array<i64: 1, 32, 256>}, {pipeline_mode = #tpu.pipeline_mode<synchronous>, transform_indices = @transform_2, window_bounds = array<i64: 32, 1>}, {pipeline_mode = #tpu.pipeline_mode<synchronous>, transform_indices = @transform_3, window_bounds = array<i64: 32, 1>}, {pipeline_mode = #tpu.pipeline_mode<synchronous>, transform_indices = @transform_4, window_bounds = array<i64: 32, 32>}, {transform_indices = @transform_5, window_bounds = array<i64: 1, 256, 32>}]} {
    %c0 = arith.constant 0 : index
    %c0_0 = arith.constant 0 : index
    %c0_1 = arith.constant 0 : index
    %0 = vector.load %arg2[%c0, %c0_0, %c0_1] : memref<1x32x256xbf16, #tpu.memory_space<vmem>>, vector<1x32x256xbf16>
    %1 = vector.shape_cast %0 : vector<1x32x256xbf16> to vector<32x256xbf16>
    %2 = arith.extf %1 : vector<32x256xbf16> to vector<32x256xf32>
    %c0_2 = arith.constant 0 : index
    %c0_3 = arith.constant 0 : index
    %c0_4 = arith.constant 0 : index
    %3 = vector.load %arg3[%c0_2, %c0_3, %c0_4] : memref<1x32x256xbf16, #tpu.memory_space<vmem>>, vector<1x32x256xbf16>
    %4 = vector.shape_cast %3 : vector<1x32x256xbf16> to vector<32x256xbf16>
    %5 = arith.extf %4 : vector<32x256xbf16> to vector<32x256xf32>
    %cst = arith.constant dense<0.000000e+00> : vector<256xf32>
    %6 = vector.multi_reduction <add>, %2, %cst [0] : vector<32x256xf32> to vector<256xf32>
    %7 = vector.shape_cast %6 : vector<256xf32> to vector<1x256xf32>
    %cst_5 = arith.constant 3.200000e+01 : f32
    %8 = vector.broadcast %cst_5 : f32 to vector<1x256xf32>
    %9 = arith.divf %7, %8 : vector<1x256xf32>
    %10 = vector.broadcast %9 : vector<1x256xf32> to vector<32x256xf32>
    %11 = arith.subf %2, %10 : vector<32x256xf32>
    %12 = arith.mulf %11, %11 : vector<32x256xf32>
    %cst_6 = arith.constant dense<0.000000e+00> : vector<256xf32>
    %13 = vector.multi_reduction <add>, %12, %cst_6 [0] : vector<32x256xf32> to vector<256xf32>
    %14 = vector.shape_cast %13 : vector<256xf32> to vector<1x256xf32>
    %cst_7 = arith.constant 3.200000e+01 : f32
    %15 = vector.broadcast %cst_7 : f32 to vector<1x256xf32>
    %16 = arith.divf %14, %15 : vector<1x256xf32>
    %17 = vector.broadcast %9 : vector<1x256xf32> to vector<32x256xf32>
    %18 = arith.subf %2, %17 : vector<32x256xf32>
    %cst_8 = arith.constant 9.99999974E-6 : f32
    %19 = vector.broadcast %cst_8 : f32 to vector<1x256xf32>
    %20 = arith.addf %16, %19 : vector<1x256xf32>
    %21 = math.rsqrt %20 : vector<1x256xf32>
    %22 = vector.broadcast %21 : vector<1x256xf32> to vector<32x256xf32>
    %23 = arith.mulf %18, %22 : vector<32x256xf32>
    %c0_9 = arith.constant 0 : index
    %c0_10 = arith.constant 0 : index
    %24 = vector.load %arg4[%c0_9, %c0_10] : memref<32x1xf32, #tpu.memory_space<vmem>>, vector<32x1xf32>
    %25 = vector.broadcast %24 : vector<32x1xf32> to vector<32x256xf32>
    %26 = arith.mulf %23, %25 : vector<32x256xf32>
    %c0_11 = arith.constant 0 : index
    %c0_12 = arith.constant 0 : index
    %27 = vector.load %arg5[%c0_11, %c0_12] : memref<32x1xf32, #tpu.memory_space<vmem>>, vector<32x1xf32>
    %28 = vector.broadcast %27 : vector<32x1xf32> to vector<32x256xf32>
    %29 = arith.addf %26, %28 : vector<32x256xf32>
    %30 = arith.mulf %29, %5 : vector<32x256xf32>
    %31 = arith.truncf %30 : vector<32x256xf32> to vector<32x256xbf16>
    %c0_13 = arith.constant 0 : index
    %c0_14 = arith.constant 0 : index
    %32 = vector.load %arg6[%c0_13, %c0_14] : memref<32x32xbf16, #tpu.memory_space<vmem>>, vector<32x32xbf16>
    %cst_15 = arith.constant dense<0.000000e+00> : vector<256x32xf32>
    %33 = tpu.matmul %31, %32, %cst_15 {dimension_numbers = #tpu.dot_dimension_numbers<[0], [0], [1], [1], [0, 1, 1, 1], [], []>} : vector<32x256xbf16>, vector<32x32xbf16>, vector<256x32xf32> -> vector<256x32xf32>
    %c0_16 = arith.constant 0 : index
    %c0_17 = arith.constant 0 : index
    %c0_18 = arith.constant 0 : index
    %34 = vector.load %arg7[%c0_16, %c0_17, %c0_18] : memref<1x256x32xf32, #tpu.memory_space<vmem>>, vector<1x256x32xf32>
    %35 = vector.shape_cast %34 : vector<1x256x32xf32> to vector<256x32xf32>
    %36 = vector.shape_cast %33 : vector<256x32xf32> to vector<1x256x32xf32>
    tpu.vector_store %arg7[%c0_16, %c0_17, %c0_18], %36 {strides = array<i32>} : memref<1x256x32xf32, #tpu.memory_space<vmem>>, vector<1x256x32xf32>,
    return
  }
  func.func @transform_0(%arg0: i32, %arg1: i32) -> (i32, i32, i32) {
    %c0_i32 = arith.constant 0 : i32
    %c0_i32_0 = arith.constant 0 : i32
    return %arg0, %c0_i32, %arg1 : i32, i32, i32
  }
  func.func @transform_1(%arg0: i32, %arg1: i32) -> (i32, i32, i32) {
    %c0_i32 = arith.constant 0 : i32
    %c0_i32_0 = arith.constant 0 : i32
    return %arg0, %c0_i32, %arg1 : i32, i32, i32
  }
  func.func @transform_2(%arg0: i32, %arg1: i32) -> (i32, i32) {
    %c0_i32 = arith.constant 0 : i32
    %c0_i32_0 = arith.constant 0 : i32
    %c0_i32_1 = arith.constant 0 : i32
    return %c0_i32, %c0_i32_0 : i32, i32
  }
  func.func @transform_3(%arg0: i32, %arg1: i32) -> (i32, i32) {
    %c0_i32 = arith.constant 0 : i32
    %c0_i32_0 = arith.constant 0 : i32
    %c0_i32_1 = arith.constant 0 : i32
    return %c0_i32, %c0_i32_0 : i32, i32
  }
  func.func @transform_4(%arg0: i32, %arg1: i32) -> (i32, i32) {
    %c0_i32 = arith.constant 0 : i32
    %c0_i32_0 = arith.constant 0 : i32
    %c0_i32_1 = arith.constant 0 : i32
    return %c0_i32, %c0_i32_0 : i32, i32
  }
  func.func @transform_5(%arg0: i32, %arg1: i32) -> (i32, i32, i32) {
    %c0_i32 = arith.constant 0 : i32
    %c0_i32_0 = arith.constant 0 : i32
    return %arg0, %arg1, %c0_i32 : i32, i32, i32
  }
}

</mosaic_0001>

<llo_original>
// kernel: trimul_forward.3
$region0: #{trimul_forward.3}
  #allocation0 [shape = 'u32[]', space=smem, size = 0x4, offset = 0x4, fixed_abs, tag = 'smem constant byte address 0x4 - core index']
  #allocation1 [shape = 'u32[72,128]{1,0:T(1,128)}', space=vmem, size = 0x9000, scoped, tag = 'internal scratch']
  %s0 = inlined_call_operand.hbm [shape: f32[2,16,16,32], index: 0, kind: input, shape index: {}]
  %s1 = inlined_call_operand.vmem [shape: f32[2,1,256], index: 1, kind: input, shape index: {}]
  %s2 = inlined_call_operand.vmem [shape: bf16[160,32], index: 2, kind: input, shape index: {}]
  %s3 = inlined_call_operand.vmem [shape: f32[1,32], index: 3, kind: input, shape index: {}]
  %s4 = inlined_call_operand.vmem [shape: f32[1,32], index: 4, kind: input, shape index: {}]
  %s5 = inlined_call_operand.vmem [shape: bf16[2,32,256], index: 5, kind: output, shape index: {0}]
  %s6 = inlined_call_operand.vmem [shape: bf16[2,32,256], index: 6, kind: output, shape index: {1}]
  %s7 = inlined_call_operand.vmem [shape: bf16[2,32,256], index: 7, kind: output, shape index: {2}]
  %8 = xla_tuple %s5, %s6, %s7
  %s9 = sld [smem:[#allocation0]]
  $region73: #{trimul_forward.3} parent=0
    _
  %s11 = ssub.s32 1, %s9
  %s12 = scalar_select 0, %s11, %s9
  $region1: #{trimul_forward.3} parent=0
    #allocation2 [shape = 'u8[262144]{0}', space=vmem, size = 0x40000, scoped, tag = 'input window, operand 0']
    #allocation3 [shape = 's32[2]{0}', space=sflag, size = 0x8, scoped, tag = 'scoped memory for trimul_forward.3']
    %13 = vsyncpa [#allocation3], 0
    %s14 = scalar_lea.sflag [#allocation3], 1
    %15 = vsyncpa %s14, 0
    loop: start=0, step=1, limit=4
    $region2: #{trimul_forward.3} parent=1 // loop_pre_header
      _
    $region3: #{trimul_forward.3} parent=1 // loop_header
      %s17 = sphi 0, %s21
      %p18 = scmp.ge.s32.totalorder %s17, 4
      %s24 = sphi 0, %s36
      %s25 = sphi 0, %s32
      %s26 = sphi 0, %s24
      %s27 = sphi 0, %s25
      %s28 = sphi 0, %s26
      %s29 = sphi 0, %s27
      %s41 = sphi 0, %s43
      %s44 = sphi 0, %s41
      %s45 = sphi 0, %s44
      %s61 = sphi 0, %s45
      %s69 = sphi 0, %s71
      %s72 = sphi 0, %s69
      %s73 = sphi 0, %s72
      %s89 = sphi 0, %s73
      %s93 = sphi 0, %s93
      %s95 = sphi 0, %s93
      %s96 = sphi 0, %s95
      %s110 = sphi 0, %s96
      %s114 = sphi 0, %s114
      %s116 = sphi 0, %s114
      %s117 = sphi 0, %s116
      %s131 = sphi 0, %s117
      %s135 = sphi 0, %s135
      %s137 = sphi 0, %s135
      %s138 = sphi 0, %s137
      %s152 = sphi 0, %s138
      %s160 = sphi 0, %s162
      %s163 = sphi 0, %s160
      %s164 = sphi 0, %s163
      %s180 = sphi 0, %s164
      %s188 = sphi 0, %s190
      %s191 = sphi 0, %s188
      %s192 = sphi 0, %s191
      %s208 = sphi 0, %s192
      %s216 = sphi 0, %s218
      %s219 = sphi 0, %s216
      %s220 = sphi 0, %s219
      %s236 = sphi 0, %s220
    $region4: #{trimul_forward.3} parent=1 // loop_header_branch
      %20 = sbr.rel (%p18) target = $region8
    $region5: #{trimul_forward.3} parent=1 // loop_body
      %s22 = ssub.s32 %s17, 1
      %s23 = ssub.s32 %s17, 2
      %s30 = sadd.s32 1, %s25
      %p31 = scmp.ge.s32.totalorder %s30, 1
      %s32 = scalar_select %p31, 0, %s30
      %s33 = sadd.s32 1, %s24
      %s34 = scalar_select %p31, %s33, %s24
      %p35 = scmp.ge.s32.totalorder %s34, 2
      %s36 = scalar_select %p35, 0, %s34
      %s37 = ssub.s32 %s24, %s36
      %s38 = ssub.s32 %s25, %s32
      %s39 = sor.u32 %s37, %s38
      %p40 = scmp.eq.s32.totalorder %s39, 0
      %s42 = sadd.s32 %s41, 1
      %s43 = scalar_select %p40, %s41, %s42
      %p46 = pneg %p40
      %p47 = scmp.eq.s32.totalorder %s17, 1
      %p48 = por %p46, %p47
      %p49 = scmp.ne.s32.totalorder %s41, %s44
      %p50 = scmp.eq.s32.totalorder %s17, 0
      %p51 = por %p49, %p50
      %p52 = scmp.ne.s32.totalorder %s41, %s44
      %p53 = scmp.eq.s32.totalorder %s22, 1
      %p54 = por %p52, %p53
      %p55 = scmp.ne.s32.totalorder %s44, %s45
      %p56 = scmp.eq.s32.totalorder %s22, 0
      %p57 = por %p55, %p56
      %p58 = scmp.ne.s32.totalorder %s44, %s45
      %p59 = scmp.eq.s32.totalorder %s23, 1
      %p60 = por %p58, %p59
      %p62 = scmp.ne.s32.totalorder %s45, %s61
      %p63 = scmp.eq.s32.totalorder %s23, 0
      %p64 = por %p62, %p63
      %s65 = ssub.s32 %s24, %s36
      %s66 = ssub.s32 %s25, %s32
      %s67 = sor.u32 %s65, %s66
      %p68 = scmp.eq.s32.totalorder %s67, 0
      %s70 = sadd.s32 %s69, 1
      %s71 = scalar_select %p68, %s69, %s70
      %p74 = pneg %p68
      %p75 = scmp.eq.s32.totalorder %s17, 1
      %p76 = por %p74, %p75
      %p77 = scmp.ne.s32.totalorder %s69, %s72
      %p78 = scmp.eq.s32.totalorder %s17, 0
      %p79 = por %p77, %p78
      %p80 = scmp.ne.s32.totalorder %s69, %s72
      %p81 = scmp.eq.s32.totalorder %s22, 1
      %p82 = por %p80, %p81
      %p83 = scmp.ne.s32.totalorder %s72, %s73
      %p84 = scmp.eq.s32.totalorder %s22, 0
      %p85 = por %p83, %p84
      %p86 = scmp.ne.s32.totalorder %s72, %s73
      %p87 = scmp.eq.s32.totalorder %s23, 1
      %p88 = por %p86, %p87
      %p90 = scmp.ne.s32.totalorder %s73, %s89
      %p91 = scmp.eq.s32.totalorder %s23, 0
      %p92 = por %p90, %p91
      %s94 = sadd.s32 %s93, 1
      %p97 = scmp.eq.s32.totalorder %s17, 1
      %p98 = scmp.ne.s32.totalorder %s93, %s95
      %p99 = scmp.eq.s32.totalorder %s17, 0
      %p100 = por %p98, %p99
      %p101 = scmp.ne.s32.totalorder %s93, %s95
      %p102 = scmp.eq.s32.totalorder %s22, 1
      %p103 = por %p101, %p102
      %p104 = scmp.ne.s32.totalorder %s95, %s96
      %p105 = scmp.eq.s32.totalorder %s22, 0
      %p106 = por %p104, %p105
      %p107 = scmp.ne.s32.totalorder %s95, %s96
      %p108 = scmp.eq.s32.totalorder %s23, 1
      %p109 = por %p107, %p108
      %p111 = scmp.ne.s32.totalorder %s96, %s110
      %p112 = scmp.eq.s32.totalorder %s23, 0
      %p113 = por %p111, %p112
      %s115 = sadd.s32 %s114, 1
      %p118 = scmp.eq.s32.totalorder %s17, 1
      %p119 = scmp.ne.s32.totalorder %s114, %s116
      %p120 = scmp.eq.s32.totalorder %s17, 0
      %p121 = por %p119, %p120
      %p122 = scmp.ne.s32.totalorder %s114, %s116
      %p123 = scmp.eq.s32.totalorder %s22, 1
      %p124 = por %p122, %p123
      %p125 = scmp.ne.s32.totalorder %s116, %s117
      %p126 = scmp.eq.s32.totalorder %s22, 0
      %p127 = por %p125, %p126
      %p128 = scmp.ne.s32.totalorder %s116, %s117
      %p129 = scmp.eq.s32.totalorder %s23, 1
      %p130 = por %p128, %p129
      %p132 = scmp.ne.s32.totalorder %s117, %s131
      %p133 = scmp.eq.s32.totalorder %s23, 0
      %p134 = por %p132, %p133
      %s136 = sadd.s32 %s135, 1
      %p139 = scmp.eq.s32.totalorder %s17, 1
      %p140 = scmp.ne.s32.totalorder %s135, %s137
      %p141 = scmp.eq.s32.totalorder %s17, 0
      %p142 = por %p140, %p141
      %p143 = scmp.ne.s32.totalorder %s135, %s137
      %p144 = scmp.eq.s32.totalorder %s22, 1
      %p145 = por %p143, %p144
      %p146 = scmp.ne.s32.totalorder %s137, %s138
      %p147 = scmp.eq.s32.totalorder %s22, 0
      %p148 = por %p146, %p147
      %p149 = scmp.ne.s32.totalorder %s137, %s138
      %p150 = scmp.eq.s32.totalorder %s23, 1
      %p151 = por %p149, %p150
      %p153 = scmp.ne.s32.totalorder %s138, %s152
      %p154 = scmp.eq.s32.totalorder %s23, 0
      %p155 = por %p153, %p154
      %s156 = ssub.s32 %s24, %s36
      %s157 = ssub.s32 %s25, %s32
      %s158 = sor.u32 %s156, %s157
      %p159 = scmp.eq.s32.totalorder %s158, 0
      %s161 = sadd.s32 %s160, 1
      %s162 = scalar_select %p159, %s160, %s161
      %p165 = pneg %p159
      %p166 = scmp.eq.s32.totalorder %s17, 1
      %p167 = por %p165, %p166
      %p168 = scmp.ne.s32.totalorder %s160, %s163
      %p169 = scmp.eq.s32.totalorder %s17, 0
      %p170 = por %p168, %p169
      %p171 = scmp.ne.s32.totalorder %s160, %s163
      %p172 = scmp.eq.s32.totalorder %s22, 1
      %p173 = por %p171, %p172
      %p174 = scmp.ne.s32.totalorder %s163, %s164
      %p175 = scmp.eq.s32.totalorder %s22, 0
      %p176 = por %p174, %p175
      %p177 = scmp.ne.s32.totalorder %s163, %s164
      %p178 = scmp.eq.s32.totalorder %s23, 1
      %p179 = por %p177, %p178
      %p181 = scmp.ne.s32.totalorder %s164, %s180
      %p182 = scmp.eq.s32.totalorder %s23, 0
      %p183 = por %p181, %p182
      %s184 = ssub.s32 %s24, %s36
      %s185 = ssub.s32 %s25, %s32
      %s186 = sor.u32 %s184, %s185
      %p187 = scmp.eq.s32.totalorder %s186, 0
      %s189 = sadd.s32 %s188, 1
      %s190 = scalar_select %p187, %s188, %s189
      %p193 = pneg %p187
      %p194 = scmp.eq.s32.totalorder %s17, 1
      %p195 = por %p193, %p194
      %p196 = scmp.ne.s32.totalorder %s188, %s191
      %p197 = scmp.eq.s32.totalorder %s17, 0
      %p198 = por %p196, %p197
      %p199 = scmp.ne.s32.totalorder %s188, %s191
      %p200 = scmp.eq.s32.totalorder %s22, 1
      %p201 = por %p199, %p200
      %p202 = scmp.ne.s32.totalorder %s191, %s192
      %p203 = scmp.eq.s32.totalorder %s22, 0
      %p204 = por %p202, %p203
      %p205 = scmp.ne.s32.totalorder %s191, %s192
      %p206 = scmp.eq.s32.totalorder %s23, 1
      %p207 = por %p205, %p206
      %p209 = scmp.ne.s32.totalorder %s192, %s208
      %p210 = scmp.eq.s32.totalorder %s23, 0
      %p211 = por %p209, %p210
      %s212 = ssub.s32 %s24, %s36
      %s213 = ssub.s32 %s25, %s32
      %s214 = sor.u32 %s212, %s213
      %p215 = scmp.eq.s32.totalorder %s214, 0
      %s217 = sadd.s32 %s216, 1
      %s218 = scalar_select %p215, %s216, %s217
      %p221 = pneg %p215
      %p222 = scmp.eq.s32.totalorder %s17, 1
      %p223 = por %p221, %p222
      %p224 = scmp.ne.s32.totalorder %s216, %s219
      %p225 = scmp.eq.s32.totalorder %s17, 0
      %p226 = por %p224, %p225
      %p227 = scmp.ne.s32.totalorder %s216, %s219
      %p228 = scmp.eq.s32.totalorder %s22, 1
      %p229 = por %p227, %p228
      %p230 = scmp.ne.s32.totalorder %s219, %s220
      %p231 = scmp.eq.s32.totalorder %s22, 0
      %p232 = por %p230, %p231
      %p233 = scmp.ne.s32.totalorder %s219, %s220
      %p234 = scmp.eq.s32.totalorder %s23, 1
      %p235 = por %p233, %p234
      %p237 = scmp.ne.s32.totalorder %s220, %s236
      %p238 = scmp.eq.s32.totalorder %s23, 0
      %p239 = por %p237, %p238
      %p240 = scmp.le.s32.totalorder 1, %s17
      %p241 = scmp.lt.s32.totalorder %s17, 3
      %p242 = pnand %p240, %p241
      %p243 = pneg %p242
      // Predicated region
      $region9: #{trimul_forward.3} parent=5 // pred_check
        _
      $region10: #{trimul_forward.3} parent=5 // pred_check_branch
        %245 = sbr.rel (%p242) target = $region12
      $region11: #{trimul_forward.3} parent=5 // pred_region
        %s246 = ssub.s32 %s17, 1
        // Predicated region
        $region13: #{trimul_forward.3} parent=11 // pred_check
          %p247 = pneg %p106
        $region14: #{trimul_forward.3} parent=11 // pred_check_branch
          %249 = sbr.rel (%p247) target = $region16
        $region15: #{trimul_forward.3} parent=11 // pred_region
          _
        $region16: #{trimul_forward.3} parent=11 // pred_fallthru
          _
        // Predicated region
        $region17: #{trimul_forward.3} parent=11 // pred_check
          %p250 = pneg %p127
        $region18: #{trimul_forward.3} parent=11 // pred_check_branch
          %252 = sbr.rel (%p250) target = $region20
        $region19: #{trimul_forward.3} parent=11 // pred_region
          _
        $region20: #{trimul_forward.3} parent=11 // pred_fallthru
          _
        // Predicated region
        $region21: #{trimul_forward.3} parent=11 // pred_check
          %p253 = pneg %p148
        $region22: #{trimul_forward.3} parent=11 // pred_check_branch
          %255 = sbr.rel (%p253) target = $region24
        $region23: #{trimul_forward.3} parent=11 // pred_region
          _
        $region24: #{trimul_forward.3} parent=11 // pred_fallthru
          _
      $region12: #{trimul_forward.3} parent=5 // pred_fallthru
        _
      %p256 = scmp.lt.s32.totalorder %s17, 2
      // Predicated region
      $region25: #{trimul_forward.3} parent=5 // pred_check
        %p257 = pneg %p256
      $region26: #{trimul_forward.3} parent=5 // pred_check_branch
        %259 = sbr.rel (%p257) target = $region28
      $region27: #{trimul_forward.3} parent=5 // pred_region
        // Predicated region
        $region29: #{trimul_forward.3} parent=27 // pred_check
          %p260 = pneg %p51
        $region30: #{trimul_forward.3} parent=27 // pred_check_branch
          %262 = sbr.rel (%p260) target = $region32
        $region31: #{trimul_forward.3} parent=27 // pred_region
          %s263 = sand.u32 %s41, 1
          %s264 = scalar_lea.sflag [#allocation3], %s263
          %s265 = sand.u32 %s41, 1
          %s266 = smul.addr %s265, 256
          %s267 = scalar_lea.vmem [#allocation2], %s266
          %s268 = smul.u32 16, %s25
          %270 = vsyncadd %s264, 0
          %s271 = smul.addr %s268, 2
          %s272 = smul.addr %s24, 32
          %s273 = sadd.s32 %s271, %s272
          %s274 = smul.addr %s273, 8
          %s275 = scalar_lea.hbm %s0, %s274
          %s276 = sshll.u32 %s275, 4
          %s277 = int_to_ptr.hbm [resolvable:$true] %s276
          %s278 = sshll.u32 %s267, 4
          %s279 = int_to_ptr.vmem [resolvable:$true] %s278
          %284 = dma.hbm_to_vmem [thread:$0]  %s277, 4096, %s279, %s264, 128, 128, 8
        $region32: #{trimul_forward.3} parent=27 // pred_fallthru
          _
        // Predicated region
        $region33: #{trimul_forward.3} parent=27 // pred_check
          %p285 = pneg %p79
        $region34: #{trimul_forward.3} parent=27 // pred_check_branch
          %287 = sbr.rel (%p285) target = $region36
        $region35: #{trimul_forward.3} parent=27 // pred_region
          %s288 = smul.u32 2, %s25
          %p289 = scmp.lt.s32.totalorder %s24, 1
          %s290 = scalar_select %p289, %s24, 1
          %p291 = scmp.lt.s32.totalorder %s288, 1
          %s292 = scalar_select %p291, %s288, 1
          %s293 = smul.addr %s290, 2
          %s294 = sadd.s32 %s292, %s293
          %s295 = scalar_lea.vmem %s1, %s294
          %s296 = smul.u32 2, %s25
        $region36: #{trimul_forward.3} parent=27 // pred_fallthru
          _
      $region28: #{trimul_forward.3} parent=5 // pred_fallthru
        _
      %p297 = scmp.le.s32.totalorder 1, %s17
      %p298 = scmp.lt.s32.totalorder %s17, 3
      %p299 = pnand %p297, %p298
      %p300 = pneg %p299
      // Predicated region
      $region37: #{trimul_forward.3} parent=5 // pred_check
        _
      $region38: #{trimul_forward.3} parent=5 // pred_check_branch
        %302 = sbr.rel (%p299) target = $region40
      $region39: #{trimul_forward.3} parent=5 // pred_region
        %s303 = ssub.s32 %s17, 1
        %s304 = sand.u32 %s44, 1
        %s305 = scalar_lea.sflag [#allocation3], %s304
        %s306 = sand.u32 %s44, 1
        %s307 = smul.addr %s306, 256
        %s308 = scalar_lea.vmem [#allocation2], %s307
        // Predicated region
        $region41: #{trimul_forward.3} parent=39 // pred_check
          %p309 = pneg %p57
        $region42: #{trimul_forward.3} parent=39 // pred_check_branch
          %311 = sbr.rel (%p309) target = $region44
        $region43: #{trimul_forward.3} parent=39 // pred_region
          %313 = dma.done %s305, 4096
        $region44: #{trimul_forward.3} parent=39 // pred_fallthru
          _
        %s314 = sand.u32 %s44, 1
        %s315 = scalar_lea.sflag [#allocation3], %s314
        %s316 = sand.u32 %s44, 1
        %s317 = smul.addr %s316, 256
        %s318 = scalar_lea.vmem [#allocation2], %s317
        %p319 = pneg %p57
        %p320 = pneg %p54
        %s321 = smul.u32 2, %s27
        %p322 = scmp.lt.s32.totalorder %s26, 1
        %s323 = scalar_select %p322, %s26, 1
        %p324 = scmp.lt.s32.totalorder %s321, 1
        %s325 = scalar_select %p324, %s321, 1
        %s326 = smul.addr %s323, 2
        %s327 = sadd.s32 %s325, %s326
        %s328 = scalar_lea.vmem %s1, %s327
        %p329 = pneg %p85
        %p330 = pneg %p82
        %p331 = pneg %p106
        %p332 = pneg %p103
        %p333 = pneg %p127
        %p334 = pneg %p124
        %p335 = pneg %p148
        %p336 = pneg %p145
        %p337 = pneg %p176
        %p338 = pneg %p173
        %s339 = smul.u32 2, %s27
        %p340 = scmp.lt.s32.totalorder %s26, 1
        %s341 = scalar_select %p340, %s26, 1
        %p342 = scmp.lt.s32.totalorder %s339, 1
        %s343 = scalar_select %p342, %s339, 1
        %s344 = smul.addr %s341, 8
        %s345 = sadd.s32 %s343, %s344
        %s346 = smul.addr %s345, 4
        %s347 = scalar_lea.vmem %s5, %s346
        %p348 = pneg %p204
        %p349 = pneg %p201
        %s350 = smul.u32 2, %s27
        %p351 = scmp.lt.s32.totalorder %s26, 1
        %s352 = scalar_select %p351, %s26, 1
        %p353 = scmp.lt.s32.totalorder %s350, 1
        %s354 = scalar_select %p353, %s350, 1
        %s355 = smul.addr %s352, 8
        %s356 = sadd.s32 %s354, %s355
        %s357 = smul.addr %s356, 4
        %s358 = scalar_lea.vmem %s6, %s357
        %p359 = pneg %p232
        %p360 = pneg %p229
        %s361 = smul.u32 2, %s27
        %p362 = scmp.lt.s32.totalorder %s26, 1
        %s363 = scalar_select %p362, %s26, 1
        %p364 = scmp.lt.s32.totalorder %s361, 1
        %s365 = scalar_select %p364, %s361, 1
        %s366 = smul.addr %s363, 8
        %s367 = sadd.s32 %s365, %s366
        %s368 = smul.addr %s367, 4
        %s369 = scalar_lea.vmem %s7, %s368
        %s370 = smul.u32 16, %s27
        %s371 = smul.u32 2, %s27
        %p372 = scmp.lt.s32.totalorder %s26, 1
        %s373 = scalar_select %p372, %s26, 1
        %p374 = scmp.lt.s32.totalorder %s371, 1
        %s375 = scalar_select %p374, %s371, 1
        %s376 = smul.addr %s373, 2
        %s377 = sadd.s32 %s375, %s376
        %s378 = scalar_lea.vmem %s1, %s377
        %s379 = smul.u32 2, %s27
        %s380 = smul.u32 2, %s27
        %p381 = scmp.lt.s32.totalorder %s26, 1
        %s382 = scalar_select %p381, %s26, 1
        %p383 = scmp.lt.s32.totalorder %s380, 1
        %s384 = scalar_select %p383, %s380, 1
        %s385 = smul.addr %s382, 8
        %s386 = sadd.s32 %s384, %s385
        %s387 = smul.addr %s386, 4
        %s388 = scalar_lea.vmem %s5, %s387
        %s389 = smul.u32 2, %s27
        %s390 = smul.u32 2, %s27
        %p391 = scmp.lt.s32.totalorder %s26, 1
        %s392 = scalar_select %p391, %s26, 1
        %p393 = scmp.lt.s32.totalorder %s390, 1
        %s394 = scalar_select %p393, %s390, 1
        %s395 = smul.addr %s392, 8
        %s396 = sadd.s32 %s394, %s395
        %s397 = smul.addr %s396, 4
        %s398 = scalar_lea.vmem %s6, %s397
        %s399 = smul.u32 2, %s27
        %s400 = smul.u32 2, %s27
        %p401 = scmp.lt.s32.totalorder %s26, 1
        %s402 = scalar_select %p401, %s26, 1
        %p403 = scmp.lt.s32.totalorder %s400, 1
        %s404 = scalar_select %p403, %s400, 1
        %s405 = smul.addr %s402, 8
        %s406 = sadd.s32 %s404, %s405
        %s407 = smul.addr %s406, 4
        %s408 = scalar_lea.vmem %s7, %s407
        %s409 = smul.u32 2, %s27
        %v411 = vld [vmem:[%s308] sm:$0xff]
        %v412 = vld [vmem:[%s308 + $0x8] sm:$0xff]
        %v413 = vld [vmem:[%s308 + $0x10] sm:$0xff]
        %v414 = vld [vmem:[%s308 + $0x18] sm:$0xff]
        %v415 = vld [vmem:[%s308 + $0x20] sm:$0xff]
        %v416 = vld [vmem:[%s308 + $0x28] sm:$0xff]
        %v417 = vld [vmem:[%s308 + $0x30] sm:$0xff]
        %v418 = vld [vmem:[%s308 + $0x38] sm:$0xff]
        %v419 = vld [vmem:[%s308 + $0x40] sm:$0xff]
        %v420 = vld [vmem:[%s308 + $0x48] sm:$0xff]
        %v421 = vld [vmem:[%s308 + $0x50] sm:$0xff]
        %v422 = vld [vmem:[%s308 + $0x58] sm:$0xff]
        %v423 = vld [vmem:[%s308 + $0x60] sm:$0xff]
        %v424 = vld [vmem:[%s308 + $0x68] sm:$0xff]
        %v425 = vld [vmem:[%s308 + $0x70] sm:$0xff]
        %v426 = vld [vmem:[%s308 + $0x78] sm:$0xff]
        %v427 = vld [vmem:[%s308 + $0x80] sm:$0xff]
        %v428 = vld [vmem:[%s308 + $0x88] sm:$0xff]
        %v429 = vld [vmem:[%s308 + $0x90] sm:$0xff]
        %v430 = vld [vmem:[%s308 + $0x98] sm:$0xff]
        %v431 = vld [vmem:[%s308 + $0xa0] sm:$0xff]
        %v432 = vld [vmem:[%s308 + $0xa8] sm:$0xff]
        %v433 = vld [vmem:[%s308 + $0xb0] sm:$0xff]
        %v434 = vld [vmem:[%s308 + $0xb8] sm:$0xff]
        %v435 = vld [vmem:[%s308 + $0xc0] sm:$0xff]
        %v436 = vld [vmem:[%s308 + $0xc8] sm:$0xff]
        %v437 = vld [vmem:[%s308 + $0xd0] sm:$0xff]
        %v438 = vld [vmem:[%s308 + $0xd8] sm:$0xff]
        %v439 = vld [vmem:[%s308 + $0xe0] sm:$0xff]
        %v440 = vld [vmem:[%s308 + $0xe8] sm:$0xff]
        %v441 = vld [vmem:[%s308 + $0xf0] sm:$0xff]
        %v442 = vld [vmem:[%s308 + $0xf8] sm:$0xff]
        %vm443 = vcmask 261120
        %v444 = vsel %vm443, %v411, 0.0
        %445 = vadd.xlane.f32.xlu0 %v444
        %v446 = vpop.xlane.xlu0 %445
        %v447 = vsel %vm443, %v412, 0.0
        %448 = vadd.xlane.f32.xlu0 %v447
        %v449 = vpop.xlane.xlu0 %448
        %v450 = vsel %vm443, %v413, 0.0
        %451 = vadd.xlane.f32.xlu0 %v450
        %v452 = vpop.xlane.xlu0 %451
        %v453 = vsel %vm443, %v414, 0.0
        %454 = vadd.xlane.f32.xlu0 %v453
        %v455 = vpop.xlane.xlu0 %454
        %v456 = vsel %vm443, %v415, 0.0
        %457 = vadd.xlane.f32.xlu0 %v456
        %v458 = vpop.xlane.xlu0 %457
        %v459 = vsel %vm443, %v416, 0.0
        %460 = vadd.xlane.f32.xlu0 %v459
        %v461 = vpop.xlane.xlu0 %460
        %v462 = vsel %vm443, %v417, 0.0
        %463 = vadd.xlane.f32.xlu0 %v462
        %v464 = vpop.xlane.xlu0 %463
        %v465 = vsel %vm443, %v418, 0.0
        %466 = vadd.xlane.f32.xlu0 %v465
        %v467 = vpop.xlane.xlu0 %466
        %v468 = vsel %vm443, %v419, 0.0
        %469 = vadd.xlane.f32.xlu0 %v468
        %v470 = vpop.xlane.xlu0 %469
        %v471 = vsel %vm443, %v420, 0.0
        %472 = vadd.xlane.f32.xlu0 %v471
        %v473 = vpop.xlane.xlu0 %472
        %v474 = vsel %vm443, %v421, 0.0
        %475 = vadd.xlane.f32.xlu0 %v474
        %v476 = vpop.xlane.xlu0 %475
        %v477 = vsel %vm443, %v422, 0.0
        %478 = vadd.xlane.f32.xlu0 %v477
        %v479 = vpop.xlane.xlu0 %478
        %v480 = vsel %vm443, %v423, 0.0
        %481 = vadd.xlane.f32.xlu0 %v480
        %v482 = vpop.xlane.xlu0 %481
        %v483 = vsel %vm443, %v424, 0.0
        %484 = vadd.xlane.f32.xlu0 %v483
        %v485 = vpop.xlane.xlu0 %484
        %v486 = vsel %vm443, %v425, 0.0
        %487 = vadd.xlane.f32.xlu0 %v486
        %v488 = vpop.xlane.xlu0 %487
        %v489 = vsel %vm443, %v426, 0.0
        %490 = vadd.xlane.f32.xlu0 %v489
        %v491 = vpop.xlane.xlu0 %490
        %v492 = vsel %vm443, %v427, 0.0
        %493 = vadd.xlane.f32.xlu0 %v492
        %v494 = vpop.xlane.xlu0 %493
        %v495 = vsel %vm443, %v428, 0.0
        %496 = vadd.xlane.f32.xlu0 %v495
        %v497 = vpop.xlane.xlu0 %496
        %v498 = vsel %vm443, %v429, 0.0
        %499 = vadd.xlane.f32.xlu0 %v498
        %v500 = vpop.xlane.xlu0 %499
        %v501 = vsel %vm443, %v430, 0.0
        %502 = vadd.xlane.f32.xlu0 %v501
        %v503 = vpop.xlane.xlu0 %502
        %v504 = vsel %vm443, %v431, 0.0
        %505 = vadd.xlane.f32.xlu0 %v504
        %v506 = vpop.xlane.xlu0 %505
        %v507 = vsel %vm443, %v432, 0.0
        %508 = vadd.xlane.f32.xlu0 %v507
        %v509 = vpop.xlane.xlu0 %508
        %v510 = vsel %vm443, %v433, 0.0
        %511 = vadd.xlane.f32.xlu0 %v510
        %v512 = vpop.xlane.xlu0 %511
        %v513 = vsel %vm443, %v434, 0.0
        %514 = vadd.xlane.f32.xlu0 %v513
        %v515 = vpop.xlane.xlu0 %514
        %v516 = vsel %vm443, %v435, 0.0
        %517 = vadd.xlane.f32.xlu0 %v516
        %v518 = vpop.xlane.xlu0 %517
        %v519 = vsel %vm443, %v436, 0.0
        %520 = vadd.xlane.f32.xlu0 %v519
        %v521 = vpop.xlane.xlu0 %520
        %v522 = vsel %vm443, %v437, 0.0
        %523 = vadd.xlane.f32.xlu0 %v522
        %v524 = vpop.xlane.xlu0 %523
        %v525 = vsel %vm443, %v438, 0.0
        %526 = vadd.xlane.f32.xlu0 %v525
        %v527 = vpop.xlane.xlu0 %526
        %v528 = vsel %vm443, %v439, 0.0
        %529 = vadd.xlane.f32.xlu0 %v528
        %v530 = vpop.xlane.xlu0 %529
        %v531 = vsel %vm443, %v440, 0.0
        %532 = vadd.xlane.f32.xlu0 %v531
        %v533 = vpop.xlane.xlu0 %532
        %v534 = vsel %vm443, %v441, 0.0
        %535 = vadd.xlane.f32.xlu0 %v534
        %v536 = vpop.xlane.xlu0 %535
        %v537 = vsel %vm443, %v442, 0.0
        %538 = vadd.xlane.f32.xlu0 %v537
        %v539 = vpop.xlane.xlu0 %538
        %v540 = vrcp.pop 32.0
        %v541 = vmul.f32 32.0, %v540
        %v542 = vsub.f32 1.0, %v541
        %v543 = vmul.f32 %v540, %v542
        %v544 = vadd.f32 %v540, %v543
        %vm545 = vweird.f32 %v540
        %v546 = vsel %vm545, %v540, %v544
        %v547 = vmul.f32 %v446, %v546
        %v548 = vmul.f32 %v449, %v546
        %v549 = vmul.f32 %v452, %v546
        %v550 = vmul.f32 %v455, %v546
        %v551 = vmul.f32 %v458, %v546
        %v552 = vmul.f32 %v461, %v546
        %v553 = vmul.f32 %v464, %v546
        %v554 = vmul.f32 %v467, %v546
        %v555 = vmul.f32 %v470, %v546
        %v556 = vmul.f32 %v473, %v546
        %v557 = vmul.f32 %v476, %v546
        %v558 = vmul.f32 %v479, %v546
        %v559 = vmul.f32 %v482, %v546
        %v560 = vmul.f32 %v485, %v546
        %v561 = vmul.f32 %v488, %v546
        %v562 = vmul.f32 %v491, %v546
        %v563 = vmul.f32 %v494, %v546
        %v564 = vmul.f32 %v497, %v546
        %v565 = vmul.f32 %v500, %v546
        %v566 = vmul.f32 %v503, %v546
        %v567 = vmul.f32 %v506, %v546
        %v568 = vmul.f32 %v509, %v546
        %v569 = vmul.f32 %v512, %v546
        %v570 = vmul.f32 %v515, %v546
        %v571 = vmul.f32 %v518, %v546
        %v572 = vmul.f32 %v521, %v546
        %v573 = vmul.f32 %v524, %v546
        %v574 = vmul.f32 %v527, %v546
        %v575 = vmul.f32 %v530, %v546
        %v576 = vmul.f32 %v533, %v546
        %v577 = vmul.f32 %v536, %v546
        %v578 = vmul.f32 %v539, %v546
        %v579 = vsub.f32 %v411, %v547
        %v580 = vsub.f32 %v412, %v548
        %v581 = vsub.f32 %v413, %v549
        %v582 = vsub.f32 %v414, %v550
        %v583 = vsub.f32 %v415, %v551
        %v584 = vsub.f32 %v416, %v552
        %v585 = vsub.f32 %v417, %v553
        %v586 = vsub.f32 %v418, %v554
        %v587 = vsub.f32 %v419, %v555
        %v588 = vsub.f32 %v420, %v556
        %v589 = vsub.f32 %v421, %v557
        %v590 = vsub.f32 %v422, %v558
        %v591 = vsub.f32 %v423, %v559
        %v592 = vsub.f32 %v424, %v560
        %v593 = vsub.f32 %v425, %v561
        %v594 = vsub.f32 %v426, %v562
        %v595 = vsub.f32 %v427, %v563
        %v596 = vsub.f32 %v428, %v564
        %v597 = vsub.f32 %v429, %v565
        %v598 = vsub.f32 %v430, %v566
        %v599 = vsub.f32 %v431, %v567
        %v600 = vsub.f32 %v432, %v568
        %v601 = vsub.f32 %v433, %v569
        %v602 = vsub.f32 %v434, %v570
        %v603 = vsub.f32 %v435, %v571
        %v604 = vsub.f32 %v436, %v572
        %v605 = vsub.f32 %v437, %v573
        %v606 = vsub.f32 %v438, %v574
        %v607 = vsub.f32 %v439, %v575
        %v608 = vsub.f32 %v440, %v576
        %v609 = vsub.f32 %v441, %v577
        %v610 = vsub.f32 %v442, %v578
        %v611 = vmul.f32 %v579, %v579
        %v612 = vmul.f32 %v580, %v580
        %v613 = vmul.f32 %v581, %v581
        %v614 = vmul.f32 %v582, %v582
        %v615 = vmul.f32 %v583, %v583
        %v616 = vmul.f32 %v584, %v584
        %v617 = vmul.f32 %v585, %v585
        %v618 = vmul.f32 %v586, %v586
        %v619 = vmul.f32 %v587, %v587
        %v620 = vmul.f32 %v588, %v588
        %v621 = vmul.f32 %v589, %v589
        %v622 = vmul.f32 %v590, %v590
        %v623 = vmul.f32 %v591, %v591
        %v624 = vmul.f32 %v592, %v592
        %v625 = vmul.f32 %v593, %v593
        %v626 = vmul.f32 %v594, %v594
        %v627 = vmul.f32 %v595, %v595
        %v628 = vmul.f32 %v596, %v596
        %v629 = vmul.f32 %v597, %v597
        %v630 = vmul.f32 %v598, %v598
        %v631 = vmul.f32 %v599, %v599
        %v632 = vmul.f32 %v600, %v600
        %v633 = vmul.f32 %v601, %v601
        %v634 = vmul.f32 %v602, %v602
        %v635 = vmul.f32 %v603, %v603
        %v636 = vmul.f32 %v604, %v604
        %v637 = vmul.f32 %v605, %v605
        %v638 = vmul.f32 %v606, %v606
        %v639 = vmul.f32 %v607, %v607
        %v640 = vmul.f32 %v608, %v608
        %v641 = vmul.f32 %v609, %v609
        %v642 = vmul.f32 %v610, %v610
        %v643 = vsel %vm443, %v611, 0.0
        %644 = vadd.xlane.f32.xlu0 %v643
        %v645 = vpop.xlane.xlu0 %644
        %v646 = vsel %vm443, %v612, 0.0
        %647 = vadd.xlane.f32.xlu0 %v646
        %v648 = vpop.xlane.xlu0 %647
        %v649 = vsel %vm443, %v613, 0.0
        %650 = vadd.xlane.f32.xlu0 %v649
        %v651 = vpop.xlane.xlu0 %650
        %v652 = vsel %vm443, %v614, 0.0
        %653 = vadd.xlane.f32.xlu0 %v652
        %v654 = vpop.xlane.xlu0 %653
        %v655 = vsel %vm443, %v615, 0.0
        %656 = vadd.xlane.f32.xlu0 %v655
        %v657 = vpop.xlane.xlu0 %656
        %v658 = vsel %vm443, %v616, 0.0
        %659 = vadd.xlane.f32.xlu0 %v658
        %v660 = vpop.xlane.xlu0 %659
        %v661 = vsel %vm443, %v617, 0.0
        %662 = vadd.xlane.f32.xlu0 %v661
        %v663 = vpop.xlane.xlu0 %662
        %v664 = vsel %vm443, %v618, 0.0
        %665 = vadd.xlane.f32.xlu0 %v664
        %v666 = vpop.xlane.xlu0 %665
        %v667 = vsel %vm443, %v619, 0.0
        %668 = vadd.xlane.f32.xlu0 %v667
        %v669 = vpop.xlane.xlu0 %668
        %v670 = vsel %vm443, %v620, 0.0
        %671 = vadd.xlane.f32.xlu0 %v670
        %v672 = vpop.xlane.xlu0 %671
        %v673 = vsel %vm443, %v621, 0.0
        %674 = vadd.xlane.f32.xlu0 %v673
        %v675 = vpop.xlane.xlu0 %674
        %v676 = vsel %vm443, %v622, 0.0
        %677 = vadd.xlane.f32.xlu0 %v676
        %v678 = vpop.xlane.xlu0 %677
        %v679 = vsel %vm443, %v623, 0.0
        %680 = vadd.xlane.f32.xlu0 %v679
        %v681 = vpop.xlane.xlu0 %680
        %v682 = vsel %vm443, %v624, 0.0
        %683 = vadd.xlane.f32.xlu0 %v682
        %v684 = vpop.xlane.xlu0 %683
        %v685 = vsel %vm443, %v625, 0.0
        %686 = vadd.xlane.f32.xlu0 %v685
        %v687 = vpop.xlane.xlu0 %686
        %v688 = vsel %vm443, %v626, 0.0
        %689 = vadd.xlane.f32.xlu0 %v688
        %v690 = vpop.xlane.xlu0 %689
        %v691 = vsel %vm443, %v627, 0.0
        %692 = vadd.xlane.f32.xlu0 %v691
        %v693 = vpop.xlane.xlu0 %692
        %v694 = vsel %vm443, %v628, 0.0
        %695 = vadd.xlane.f32.xlu0 %v694
        %v696 = vpop.xlane.xlu0 %695
        %v697 = vsel %vm443, %v629, 0.0
        %698 = vadd.xlane.f32.xlu0 %v697
        %v699 = vpop.xlane.xlu0 %698
        %v700 = vsel %vm443, %v630, 0.0
        %701 = vadd.xlane.f32.xlu0 %v700
        %v702 = vpop.xlane.xlu0 %701
        %v703 = vsel %vm443, %v631, 0.0
        %704 = vadd.xlane.f32.xlu0 %v703
        %v705 = vpop.xlane.xlu0 %704
        %v706 = vsel %vm443, %v632, 0.0
        %707 = vadd.xlane.f32.xlu0 %v706
        %v708 = vpop.xlane.xlu0 %707
        %v709 = vsel %vm443, %v633, 0.0
        %710 = vadd.xlane.f32.xlu0 %v709
        %v711 = vpop.xlane.xlu0 %710
        %v712 = vsel %vm443, %v634, 0.0
        %713 = vadd.xlane.f32.xlu0 %v712
        %v714 = vpop.xlane.xlu0 %713
        %v715 = vsel %vm443, %v635, 0.0
        %716 = vadd.xlane.f32.xlu0 %v715
        %v717 = vpop.xlane.xlu0 %716
        %v718 = vsel %vm443, %v636, 0.0
        %719 = vadd.xlane.f32.xlu0 %v718
        %v720 = vpop.xlane.xlu0 %719
        %v721 = vsel %vm443, %v637, 0.0
        %722 = vadd.xlane.f32.xlu0 %v721
        %v723 = vpop.xlane.xlu0 %722
        %v724 = vsel %vm443, %v638, 0.0
        %725 = vadd.xlane.f32.xlu0 %v724
        %v726 = vpop.xlane.xlu0 %725
        %v727 = vsel %vm443, %v639, 0.0
        %728 = vadd.xlane.f32.xlu0 %v727
        %v729 = vpop.xlane.xlu0 %728
        %v730 = vsel %vm443, %v640, 0.0
        %731 = vadd.xlane.f32.xlu0 %v730
        %v732 = vpop.xlane.xlu0 %731
        %v733 = vsel %vm443, %v641, 0.0
        %734 = vadd.xlane.f32.xlu0 %v733
        %v735 = vpop.xlane.xlu0 %734
        %v736 = vsel %vm443, %v642, 0.0
        %737 = vadd.xlane.f32.xlu0 %v736
        %v738 = vpop.xlane.xlu0 %737
        %v739 = vmul.f32 %v645, %v546
        %v740 = vmul.f32 %v648, %v546
        %v741 = vmul.f32 %v651, %v546
        %v742 = vmul.f32 %v654, %v546
        %v743 = vmul.f32 %v657, %v546
        %v744 = vmul.f32 %v660, %v546
        %v745 = vmul.f32 %v663, %v546
        %v746 = vmul.f32 %v666, %v546
        %v747 = vmul.f32 %v669, %v546
        %v748 = vmul.f32 %v672, %v546
        %v749 = vmul.f32 %v675, %v546
        %v750 = vmul.f32 %v678, %v546
        %v751 = vmul.f32 %v681, %v546
        %v752 = vmul.f32 %v684, %v546
        %v753 = vmul.f32 %v687, %v546
        %v754 = vmul.f32 %v690, %v546
        %v755 = vmul.f32 %v693, %v546
        %v756 = vmul.f32 %v696, %v546
        %v757 = vmul.f32 %v699, %v546
        %v758 = vmul.f32 %v702, %v546
        %v759 = vmul.f32 %v705, %v546
        %v760 = vmul.f32 %v708, %v546
        %v761 = vmul.f32 %v711, %v546
        %v762 = vmul.f32 %v714, %v546
        %v763 = vmul.f32 %v717, %v546
        %v764 = vmul.f32 %v720, %v546
        %v765 = vmul.f32 %v723, %v546
        %v766 = vmul.f32 %v726, %v546
        %v767 = vmul.f32 %v729, %v546
        %v768 = vmul.f32 %v732, %v546
        %v769 = vmul.f32 %v735, %v546
        %v770 = vmul.f32 %v738, %v546
        %v771 = vadd.f32 %v739, 1e-05
        %v772 = vadd.f32 %v740, 1e-05
        %v773 = vadd.f32 %v741, 1e-05
        %v774 = vadd.f32 %v742, 1e-05
        %v775 = vadd.f32 %v743, 1e-05
        %v776 = vadd.f32 %v744, 1e-05
        %v777 = vadd.f32 %v745, 1e-05
        %v778 = vadd.f32 %v746, 1e-05
        %v779 = vadd.f32 %v747, 1e-05
        %v780 = vadd.f32 %v748, 1e-05
        %v781 = vadd.f32 %v749, 1e-05
        %v782 = vadd.f32 %v750, 1e-05
        %v783 = vadd.f32 %v751, 1e-05
        %v784 = vadd.f32 %v752, 1e-05
        %v785 = vadd.f32 %v753, 1e-05
        %v786 = vadd.f32 %v754, 1e-05
        %v787 = vadd.f32 %v755, 1e-05
        %v788 = vadd.f32 %v756, 1e-05
        %v789 = vadd.f32 %v757, 1e-05
        %v790 = vadd.f32 %v758, 1e-05
        %v791 = vadd.f32 %v759, 1e-05
        %v792 = vadd.f32 %v760, 1e-05
        %v793 = vadd.f32 %v761, 1e-05
        %v794 = vadd.f32 %v762, 1e-05
        %v795 = vadd.f32 %v763, 1e-05
        %v796 = vadd.f32 %v764, 1e-05
        %v797 = vadd.f32 %v765, 1e-05
        %v798 = vadd.f32 %v766, 1e-05
        %v799 = vadd.f32 %v767, 1e-05
        %v800 = vadd.f32 %v768, 1e-05
        %v801 = vadd.f32 %v769, 1e-05
        %v802 = vadd.f32 %v770, 1e-05
        %v803 = vrsqrt.pop %v771
        %v804 = vmul.f32 %v803, %v771
        %v805 = vmul.f32 %v804, %v803
        %v806 = vmul.f32 0.5, %v805
        %v807 = vsub.f32 1.5, %v806
        %v808 = vmul.f32 %v803, %v807
        %vm809 = vweird.f32 %v771
        %vm810 = vweird.f32 %v803
        %vm811 = vmor %vm809, %vm810
        %v812 = vsel %vm811, %v803, %v808
        %v813 = vrsqrt.pop %v772
        %v814 = vmul.f32 %v813, %v772
        %v815 = vmul.f32 %v814, %v813
        %v816 = vmul.f32 0.5, %v815
        %v817 = vsub.f32 1.5, %v816
        %v818 = vmul.f32 %v813, %v817
        %vm819 = vweird.f32 %v772
        %vm820 = vweird.f32 %v813
        %vm821 = vmor %vm819, %vm820
        %v822 = vsel %vm821, %v813, %v818
        %v823 = vrsqrt.pop %v773
        %v824 = vmul.f32 %v823, %v773
        %v825 = vmul.f32 %v824, %v823
        %v826 = vmul.f32 0.5, %v825
        %v827 = vsub.f32 1.5, %v826
        %v828 = vmul.f32 %v823, %v827
        %vm829 = vweird.f32 %v773
        %vm830 = vweird.f32 %v823
        %vm831 = vmor %vm829, %vm830
        %v832 = vsel %vm831, %v823, %v828
        %v833 = vrsqrt.pop %v774
        %v834 = vmul.f32 %v833, %v774
        %v835 = vmul.f32 %v834, %v833
        %v836 = vmul.f32 0.5, %v835
        %v837 = vsub.f32 1.5, %v836
        %v838 = vmul.f32 %v833, %v837
        %vm839 = vweird.f32 %v774
        %vm840 = vweird.f32 %v833
        %vm841 = vmor %vm839, %vm840
        %v842 = vsel %vm841, %v833, %v838
        %v843 = vrsqrt.pop %v775
        %v844 = vmul.f32 %v843, %v775
        %v845 = vmul.f32 %v844, %v843
        %v846 = vmul.f32 0.5, %v845
        %v847 = vsub.f32 1.5, %v846
        %v848 = vmul.f32 %v843, %v847
        %vm849 = vweird.f32 %v775
        %vm850 = vweird.f32 %v843
        %vm851 = vmor %vm849, %vm850
        %v852 = vsel %vm851, %v843, %v848
        %v853 = vrsqrt.pop %v776
        %v854 = vmul.f32 %v853, %v776
        %v855 = vmul.f32 %v854, %v853
        %v856 = vmul.f32 0.5, %v855
        %v857 = vsub.f32 1.5, %v856
        %v858 = vmul.f32 %v853, %v857
        %vm859 = vweird.f32 %v776
        %vm860 = vweird.f32 %v853
        %vm861 = vmor %vm859, %vm860
        %v862 = vsel %vm861, %v853, %v858
        %v863 = vrsqrt.pop %v777
        %v864 = vmul.f32 %v863, %v777
        %v865 = vmul.f32 %v864, %v863
        %v866 = vmul.f32 0.5, %v865
        %v867 = vsub.f32 1.5, %v866
        %v868 = vmul.f32 %v863, %v867
        %vm869 = vweird.f32 %v777
        %vm870 = vweird.f32 %v863
        %vm871 = vmor %vm869, %vm870
        %v872 = vsel %vm871, %v863, %v868
        %v873 = vrsqrt.pop %v778
        %v874 = vmul.f32 %v873, %v778
        %v875 = vmul.f32 %v874, %v873
        %v876 = vmul.f32 0.5, %v875
        %v877 = vsub.f32 1.5, %v876
        %v878 = vmul.f32 %v873, %v877
        %vm879 = vweird.f32 %v778
        %vm880 = vweird.f32 %v873
        %vm881 = vmor %vm879, %vm880
        %v882 = vsel %vm881, %v873, %v878
        %v883 = vrsqrt.pop %v779
        %v884 = vmul.f32 %v883, %v779
        %v885 = vmul.f32 %v884, %v883
        %v886 = vmul.f32 0.5, %v885
        %v887 = vsub.f32 1.5, %v886
        %v888 = vmul.f32 %v883, %v887
        %vm889 = vweird.f32 %v779
        %vm890 = vweird.f32 %v883
        %vm891 = vmor %vm889, %vm890
        %v892 = vsel %vm891, %v883, %v888
        %v893 = vrsqrt.pop %v780
        %v894 = vmul.f32 %v893, %v780
        %v895 = vmul.f32 %v894, %v893
        %v896 = vmul.f32 0.5, %v895
        %v897 = vsub.f32 1.5, %v896
        %v898 = vmul.f32 %v893, %v897
        %vm899 = vweird.f32 %v780
        %vm900 = vweird.f32 %v893
        %vm901 = vmor %vm899, %vm900
        %v902 = vsel %vm901, %v893, %v898
        %v903 = vrsqrt.pop %v781
        %v904 = vmul.f32 %v903, %v781
        %v905 = vmul.f32 %v904, %v903
        %v906 = vmul.f32 0.5, %v905
        %v907 = vsub.f32 1.5, %v906
        %v908 = vmul.f32 %v903, %v907
        %vm909 = vweird.f32 %v781
        %vm910 = vweird.f32 %v903
        %vm911 = vmor %vm909, %vm910
        %v912 = vsel %vm911, %v903, %v908
        %v913 = vrsqrt.pop %v782
        %v914 = vmul.f32 %v913, %v782
        %v915 = vmul.f32 %v914, %v913
        %v916 = vmul.f32 0.5, %v915
        %v917 = vsub.f32 1.5, %v916
        %v918 = vmul.f32 %v913, %v917
        %vm919 = vweird.f32 %v782
        %vm920 = vweird.f32 %v913
        %vm921 = vmor %vm919, %vm920
        %v922 = vsel %vm921, %v913, %v918
        %v923 = vrsqrt.pop %v783
        %v924 = vmul.f32 %v923, %v783
        %v925 = vmul.f32 %v924, %v923
        %v926 = vmul.f32 0.5, %v925
        %v927 = vsub.f32 1.5, %v926
        %v928 = vmul.f32 %v923, %v927
        %vm929 = vweird.f32 %v783
        %vm930 = vweird.f32 %v923
        %vm931 = vmor %vm929, %vm930
        %v932 = vsel %vm931, %v923, %v928
        %v933 = vrsqrt.pop %v784
        %v934 = vmul.f32 %v933, %v784
        %v935 = vmul.f32 %v934, %v933
        %v936 = vmul.f32 0.5, %v935
        %v937 = vsub.f32 1.5, %v936
        %v938 = vmul.f32 %v933, %v937
        %vm939 = vweird.f32 %v784
        %vm940 = vweird.f32 %v933
        %vm941 = vmor %vm939, %vm940
        %v942 = vsel %vm941, %v933, %v938
        %v943 = vrsqrt.pop %v785
        %v944 = vmul.f32 %v943, %v785
        %v945 = vmul.f32 %v944, %v943
        %v946 = vmul.f32 0.5, %v945
        %v947 = vsub.f32 1.5, %v946
        %v948 = vmul.f32 %v943, %v947
        %vm949 = vweird.f32 %v785
        %vm950 = vweird.f32 %v943
        %vm951 = vmor %vm949, %vm950
        %v952 = vsel %vm951, %v943, %v948
        %v953 = vrsqrt.pop %v786
        %v954 = vmul.f32 %v953, %v786
        %v955 = vmul.f32 %v954, %v953
        %v956 = vmul.f32 0.5, %v955
        %v957 = vsub.f32 1.5, %v956
        %v958 = vmul.f32 %v953, %v957
        %vm959 = vweird.f32 %v786
        %vm960 = vweird.f32 %v953
        %vm961 = vmor %vm959, %vm960
        %v962 = vsel %vm961, %v953, %v958
        %v963 = vrsqrt.pop %v787
        %v964 = vmul.f32 %v963, %v787
        %v965 = vmul.f32 %v964, %v963
        %v966 = vmul.f32 0.5, %v965
        %v967 = vsub.f32 1.5, %v966
        %v968 = vmul.f32 %v963, %v967
        %vm969 = vweird.f32 %v787
        %vm970 = vweird.f32 %v963
        %vm971 = vmor %vm969, %vm970
        %v972 = vsel %vm971, %v963, %v968
        %v973 = vrsqrt.pop %v788
        %v974 = vmul.f32 %v973, %v788
        %v975 = vmul.f32 %v974, %v973
        %v976 = vmul.f32 0.5, %v975
        %v977 = vsub.f32 1.5, %v976
        %v978 = vmul.f32 %v973, %v977
        %vm979 = vweird.f32 %v788
        %vm980 = vweird.f32 %v973
        %vm981 = vmor %vm979, %vm980
        %v982 = vsel %vm981, %v973, %v978
        %v983 = vrsqrt.pop %v789
        %v984 = vmul.f32 %v983, %v789
        %v985 = vmul.f32 %v984, %v983
        %v986 = vmul.f32 0.5, %v985
        %v987 = vsub.f32 1.5, %v986
        %v988 = vmul.f32 %v983, %v987
        %vm989 = vweird.f32 %v789
        %vm990 = vweird.f32 %v983
        %vm991 = vmor %vm989, %vm990
        %v992 = vsel %vm991, %v983, %v988
        %v993 = vrsqrt.pop %v790
        %v994 = vmul.f32 %v993, %v790
        %v995 = vmul.f32 %v994, %v993
        %v996 = vmul.f32 0.5, %v995
        %v997 = vsub.f32 1.5, %v996
        %v998 = vmul.f32 %v993, %v997
        %vm999 = vweird.f32 %v790
        %vm1000 = vweird.f32 %v993
        %vm1001 = vmor %vm999, %vm1000
        %v1002 = vsel %vm1001, %v993, %v998
        %v1003 = vrsqrt.pop %v791
        %v1004 = vmul.f32 %v1003, %v791
        %v1005 = vmul.f32 %v1004, %v1003
        %v1006 = vmul.f32 0.5, %v1005
        %v1007 = vsub.f32 1.5, %v1006
        %v1008 = vmul.f32 %v1003, %v1007
        %vm1009 = vweird.f32 %v791
        %vm1010 = vweird.f32 %v1003
        %vm1011 = vmor %vm1009, %vm1010
        %v1012 = vsel %vm1011, %v1003, %v1008
        %v1013 = vrsqrt.pop %v792
        %v1014 = vmul.f32 %v1013, %v792
        %v1015 = vmul.f32 %v1014, %v1013
        %v1016 = vmul.f32 0.5, %v1015
        %v1017 = vsub.f32 1.5, %v1016
        %v1018 = vmul.f32 %v1013, %v1017
        %vm1019 = vweird.f32 %v792
        %vm1020 = vweird.f32 %v1013
        %vm1021 = vmor %vm1019, %vm1020
        %v1022 = vsel %vm1021, %v1013, %v1018
        %v1023 = vrsqrt.pop %v793
        %v1024 = vmul.f32 %v1023, %v793
        %v1025 = vmul.f32 %v1024, %v1023
        %v1026 = vmul.f32 0.5, %v1025
        %v1027 = vsub.f32 1.5, %v1026
        %v1028 = vmul.f32 %v1023, %v1027
        %vm1029 = vweird.f32 %v793
        %vm1030 = vweird.f32 %v1023
        %vm1031 = vmor %vm1029, %vm1030
        %v1032 = vsel %vm1031, %v1023, %v1028
        %v1033 = vrsqrt.pop %v794
        %v1034 = vmul.f32 %v1033, %v794
        %v1035 = vmul.f32 %v1034, %v1033
        %v1036 = vmul.f32 0.5, %v1035
        %v1037 = vsub.f32 1.5, %v1036
        %v1038 = vmul.f32 %v1033, %v1037
        %vm1039 = vweird.f32 %v794
        %vm1040 = vweird.f32 %v1033
        %vm1041 = vmor %vm1039, %vm1040
        %v1042 = vsel %vm1041, %v1033, %v1038
        %v1043 = vrsqrt.pop %v795
        %v1044 = vmul.f32 %v1043, %v795
        %v1045 = vmul.f32 %v1044, %v1043
        %v1046 = vmul.f32 0.5, %v1045
        %v1047 = vsub.f32 1.5, %v1046
        %v1048 = vmul.f32 %v1043, %v1047
        %vm1049 = vweird.f32 %v795
        %vm1050 = vweird.f32 %v1043
        %vm1051 = vmor %vm1049, %vm1050
        %v1052 = vsel %vm1051, %v1043, %v1048
        %v1053 = vrsqrt.pop %v796
        %v1054 = vmul.f32 %v1053, %v796
        %v1055 = vmul.f32 %v1054, %v1053
        %v1056 = vmul.f32 0.5, %v1055
        %v1057 = vsub.f32 1.5, %v1056
        %v1058 = vmul.f32 %v1053, %v1057
        %vm1059 = vweird.f32 %v796
        %vm1060 = vweird.f32 %v1053
        %vm1061 = vmor %vm1059, %vm1060
        %v1062 = vsel %vm1061, %v1053, %v1058
        %v1063 = vrsqrt.pop %v797
        %v1064 = vmul.f32 %v1063, %v797
        %v1065 = vmul.f32 %v1064, %v1063
        %v1066 = vmul.f32 0.5, %v1065
        %v1067 = vsub.f32 1.5, %v1066
        %v1068 = vmul.f32 %v1063, %v1067
        %vm1069 = vweird.f32 %v797
        %vm1070 = vweird.f32 %v1063
        %vm1071 = vmor %vm1069, %vm1070
        %v1072 = vsel %vm1071, %v1063, %v1068
        %v1073 = vrsqrt.pop %v798
        %v1074 = vmul.f32 %v1073, %v798
        %v1075 = vmul.f32 %v1074, %v1073
        %v1076 = vmul.f32 0.5, %v1075
        %v1077 = vsub.f32 1.5, %v1076
        %v1078 = vmul.f32 %v1073, %v1077
        %vm1079 = vweird.f32 %v798
        %vm1080 = vweird.f32 %v1073
        %vm1081 = vmor %vm1079, %vm1080
        %v1082 = vsel %vm1081, %v1073, %v1078
        %v1083 = vrsqrt.pop %v799
        %v1084 = vmul.f32 %v1083, %v799
        %v1085 = vmul.f32 %v1084, %v1083
        %v1086 = vmul.f32 0.5, %v1085
        %v1087 = vsub.f32 1.5, %v1086
        %v1088 = vmul.f32 %v1083, %v1087
        %vm1089 = vweird.f32 %v799
        %vm1090 = vweird.f32 %v1083
        %vm1091 = vmor %vm1089, %vm1090
        %v1092 = vsel %vm1091, %v1083, %v1088
        %v1093 = vrsqrt.pop %v800
        %v1094 = vmul.f32 %v1093, %v800
        %v1095 = vmul.f32 %v1094, %v1093
        %v1096 = vmul.f32 0.5, %v1095
        %v1097 = vsub.f32 1.5, %v1096
        %v1098 = vmul.f32 %v1093, %v1097
        %vm1099 = vweird.f32 %v800
        %vm1100 = vweird.f32 %v1093
        %vm1101 = vmor %vm1099, %vm1100
        %v1102 = vsel %vm1101, %v1093, %v1098
        %v1103 = vrsqrt.pop %v801
        %v1104 = vmul.f32 %v1103, %v801
        %v1105 = vmul.f32 %v1104, %v1103
        %v1106 = vmul.f32 0.5, %v1105
        %v1107 = vsub.f32 1.5, %v1106
        %v1108 = vmul.f32 %v1103, %v1107
        %vm1109 = vweird.f32 %v801
        %vm1110 = vweird.f32 %v1103
        %vm1111 = vmor %vm1109, %vm1110
        %v1112 = vsel %vm1111, %v1103, %v1108
        %v1113 = vrsqrt.pop %v802
        %v1114 = vmul.f32 %v1113, %v802
        %v1115 = vmul.f32 %v1114, %v1113
        %v1116 = vmul.f32 0.5, %v1115
        %v1117 = vsub.f32 1.5, %v1116
        %v1118 = vmul.f32 %v1113, %v1117
        %vm1119 = vweird.f32 %v802
        %vm1120 = vweird.f32 %v1113
        %vm1121 = vmor %vm1119, %vm1120
        %v1122 = vsel %vm1121, %v1113, %v1118
        %v1123 = vmul.f32 %v579, %v812
        %v1124 = vmul.f32 %v580, %v822
        %v1125 = vmul.f32 %v581, %v832
        %v1126 = vmul.f32 %v582, %v842
        %v1127 = vmul.f32 %v583, %v852
        %v1128 = vmul.f32 %v584, %v862
        %v1129 = vmul.f32 %v585, %v872
        %v1130 = vmul.f32 %v586, %v882
        %v1131 = vmul.f32 %v587, %v892
        %v1132 = vmul.f32 %v588, %v902
        %v1133 = vmul.f32 %v589, %v912
        %v1134 = vmul.f32 %v590, %v922
        %v1135 = vmul.f32 %v591, %v932
        %v1136 = vmul.f32 %v592, %v942
        %v1137 = vmul.f32 %v593, %v952
        %v1138 = vmul.f32 %v594, %v962
        %v1139 = vmul.f32 %v595, %v972
        %v1140 = vmul.f32 %v596, %v982
        %v1141 = vmul.f32 %v597, %v992
        %v1142 = vmul.f32 %v598, %v1002
        %v1143 = vmul.f32 %v599, %v1012
        %v1144 = vmul.f32 %v600, %v1022
        %v1145 = vmul.f32 %v601, %v1032
        %v1146 = vmul.f32 %v602, %v1042
        %v1147 = vmul.f32 %v603, %v1052
        %v1148 = vmul.f32 %v604, %v1062
        %v1149 = vmul.f32 %v605, %v1072
        %v1150 = vmul.f32 %v606, %v1082
        %v1151 = vmul.f32 %v607, %v1092
        %v1152 = vmul.f32 %v608, %v1102
        %v1153 = vmul.f32 %v609, %v1112
        %v1154 = vmul.f32 %v610, %v1122
        %v1155 = vld [vmem:[%s3] sm:$0x1]
        %v1157 = vperm.slane %v1155, 0
        %v1159 = vmul.f32 %v1123, %v1157
        %v1160 = vmul.f32 %v1124, %v1157
        %v1161 = vmul.f32 %v1125, %v1157
        %v1162 = vmul.f32 %v1126, %v1157
        %v1163 = vmul.f32 %v1127, %v1157
        %v1164 = vmul.f32 %v1128, %v1157
        %v1165 = vmul.f32 %v1129, %v1157
        %v1166 = vmul.f32 %v1130, %v1157
        %v1167 = vmul.f32 %v1131, %v1157
        %v1168 = vmul.f32 %v1132, %v1157
        %v1169 = vmul.f32 %v1133, %v1157
        %v1170 = vmul.f32 %v1134, %v1157
        %v1171 = vmul.f32 %v1135, %v1157
        %v1172 = vmul.f32 %v1136, %v1157
        %v1173 = vmul.f32 %v1137, %v1157
        %v1174 = vmul.f32 %v1138, %v1157
        %v1175 = vmul.f32 %v1139, %v1157
        %v1176 = vmul.f32 %v1140, %v1157
        %v1177 = vmul.f32 %v1141, %v1157
        %v1178 = vmul.f32 %v1142, %v1157
        %v1179 = vmul.f32 %v1143, %v1157
        %v1180 = vmul.f32 %v1144, %v1157
        %v1181 = vmul.f32 %v1145, %v1157
        %v1182 = vmul.f32 %v1146, %v1157
        %v1183 = vmul.f32 %v1147, %v1157
        %v1184 = vmul.f32 %v1148, %v1157
        %v1185 = vmul.f32 %v1149, %v1157
        %v1186 = vmul.f32 %v1150, %v1157
        %v1187 = vmul.f32 %v1151, %v1157
        %v1188 = vmul.f32 %v1152, %v1157
        %v1189 = vmul.f32 %v1153, %v1157
        %v1190 = vmul.f32 %v1154, %v1157
        %v1191 = vld [vmem:[%s4] sm:$0x1]
        %v1193 = vperm.slane %v1191, 0
        %v1195 = vadd.f32 %v1159, %v1193
        %v1196 = vadd.f32 %v1160, %v1193
        %v1197 = vadd.f32 %v1161, %v1193
        %v1198 = vadd.f32 %v1162, %v1193
        %v1199 = vadd.f32 %v1163, %v1193
        %v1200 = vadd.f32 %v1164, %v1193
        %v1201 = vadd.f32 %v1165, %v1193
        %v1202 = vadd.f32 %v1166, %v1193
        %v1203 = vadd.f32 %v1167, %v1193
        %v1204 = vadd.f32 %v1168, %v1193
        %v1205 = vadd.f32 %v1169, %v1193
        %v1206 = vadd.f32 %v1170, %v1193
        %v1207 = vadd.f32 %v1171, %v1193
        %v1208 = vadd.f32 %v1172, %v1193
        %v1209 = vadd.f32 %v1173, %v1193
        %v1210 = vadd.f32 %v1174, %v1193
        %v1211 = vadd.f32 %v1175, %v1193
        %v1212 = vadd.f32 %v1176, %v1193
        %v1213 = vadd.f32 %v1177, %v1193
        %v1214 = vadd.f32 %v1178, %v1193
        %v1215 = vadd.f32 %v1179, %v1193
        %v1216 = vadd.f32 %v1180, %v1193
        %v1217 = vadd.f32 %v1181, %v1193
        %v1218 = vadd.f32 %v1182, %v1193
        %v1219 = vadd.f32 %v1183, %v1193
        %v1220 = vadd.f32 %v1184, %v1193
        %v1221 = vadd.f32 %v1185, %v1193
        %v1222 = vadd.f32 %v1186, %v1193
        %v1223 = vadd.f32 %v1187, %v1193
        %v1224 = vadd.f32 %v1188, %v1193
        %v1225 = vadd.f32 %v1189, %v1193
        %v1226 = vadd.f32 %v1190, %v1193
        %1227 = vxpose.xlu0.b32.start [1/16] %v1195, 128
        %1228 = vxpose.xlu0.b32.cont [2/16] %v1196, 128
        %1229 = vxpose.xlu0.b32.cont [3/16] %v1197, 128
        %1230 = vxpose.xlu0.b32.cont [4/16] %v1198, 128
        %1231 = vxpose.xlu0.b32.cont [5/16] %v1199, 128
        %1232 = vxpose.xlu0.b32.cont [6/16] %v1200, 128
        %1233 = vxpose.xlu0.b32.cont [7/16] %v1201, 128
        %1234 = vxpose.xlu0.b32.cont [8/16] %v1202, 128
        %1235 = vxpose.xlu0.b32.cont [9/16] %v1203, 128
        %1236 = vxpose.xlu0.b32.cont [10/16] %v1204, 128
        %1237 = vxpose.xlu0.b32.cont [11/16] %v1205, 128
        %1238 = vxpose.xlu0.b32.cont [12/16] %v1206, 128
        %1239 = vxpose.xlu0.b32.cont [13/16] %v1207, 128
        %1240 = vxpose.xlu0.b32.cont [14/16] %v1208, 128
        %1241 = vxpose.xlu0.b32.cont [15/16] %v1209, 128
        %1242 = vxpose.xlu0.b32.end [16/16] %v1210, 128
        %v1243 = vpop.trf.xlu0
        %v1244 = vpop.trf.xlu0
        %v1245 = vpop.trf.xlu0
        %v1246 = vpop.trf.xlu0
        %v1247 = vpop.trf.xlu0
        %v1248 = vpop.trf.xlu0
        %v1249 = vpop.trf.xlu0
        %v1250 = vpop.trf.xlu0
        %v1251 = vpop.trf.xlu0
        %v1252 = vpop.trf.xlu0
        %v1253 = vpop.trf.xlu0
        %v1254 = vpop.trf.xlu0
        %v1255 = vpop.trf.xlu0
        %v1256 = vpop.trf.xlu0
        %v1257 = vpop.trf.xlu0
        %v1258 = vpop.trf.xlu0
        %1259 = vxpose.xlu0.b32.start [1/16] %v1211, 128
        %1260 = vxpose.xlu0.b32.cont [2/16] %v1212, 128
        %1261 = vxpose.xlu0.b32.cont [3/16] %v1213, 128
        %1262 = vxpose.xlu0.b32.cont [4/16] %v1214, 128
        %1263 = vxpose.xlu0.b32.cont [5/16] %v1215, 128
        %1264 = vxpose.xlu0.b32.cont [6/16] %v1216, 128
        %1265 = vxpose.xlu0.b32.cont [7/16] %v1217, 128
        %1266 = vxpose.xlu0.b32.cont [8/16] %v1218, 128
        %1267 = vxpose.xlu0.b32.cont [9/16] %v1219, 128
        %1268 = vxpose.xlu0.b32.cont [10/16] %v1220, 128
        %1269 = vxpose.xlu0.b32.cont [11/16] %v1221, 128
        %1270 = vxpose.xlu0.b32.cont [12/16] %v1222, 128
        %1271 = vxpose.xlu0.b32.cont [13/16] %v1223, 128
        %1272 = vxpose.xlu0.b32.cont [14/16] %v1224, 128
        %1273 = vxpose.xlu0.b32.cont [15/16] %v1225, 128
        %1274 = vxpose.xlu0.b32.end [16/16] %v1226, 128
        %v1275 = vpop.trf.xlu0
        %v1276 = vpop.trf.xlu0
        %v1277 = vpop.trf.xlu0
        %v1278 = vpop.trf.xlu0
        %v1279 = vpop.trf.xlu0
        %v1280 = vpop.trf.xlu0
        %v1281 = vpop.trf.xlu0
        %v1282 = vpop.trf.xlu0
        %v1283 = vpop.trf.xlu0
        %v1284 = vpop.trf.xlu0
        %v1285 = vpop.trf.xlu0
        %v1286 = vpop.trf.xlu0
        %v1287 = vpop.trf.xlu0
        %v1288 = vpop.trf.xlu0
        %v1289 = vpop.trf.xlu0
        %v1290 = vpop.trf.xlu0
        %v1291 = vpack.c.bf16 %v1244, %v1243
        %v1292 = vpack.c.bf16 %v1276, %v1275
        %v1293 = vpack.c.bf16 %v1246, %v1245
        %v1294 = vpack.c.bf16 %v1278, %v1277
        %v1295 = vld [vmem:[%s2] sm:$0xf]
        %v1296 = vld [vmem:[%s2 + $0x4] sm:$0xf]
        %v1297 = vld [vmem:[%s2 + $0x8] sm:$0xf]
        %v1298 = vld [vmem:[%s2 + $0xc] sm:$0xf]
        %v1299 = vld [vmem:[%s2 + $0x10] sm:$0xf]
        %v1300 = vld [vmem:[%s2 + $0x14] sm:$0xf]
        %v1301 = vld [vmem:[%s2 + $0x18] sm:$0xf]
        %v1302 = vld [vmem:[%s2 + $0x1c] sm:$0xf]
        %v1303 = vld [vmem:[%s2 + $0x20] sm:$0xf]
        %v1304 = vld [vmem:[%s2 + $0x24] sm:$0xf]
        %v1305 = vld [vmem:[%s2 + $0x28] sm:$0xf]
        %v1306 = vld [vmem:[%s2 + $0x2c] sm:$0xf]
        %v1307 = vld [vmem:[%s2 + $0x30] sm:$0xf]
        %v1308 = vld [vmem:[%s2 + $0x34] sm:$0xf]
        %v1309 = vld [vmem:[%s2 + $0x38] sm:$0xf]
        %v1310 = vld [vmem:[%s2 + $0x3c] sm:$0xf]
        %v1311 = vld [vmem:[%s2 + $0x40] sm:$0xf]
        %v1312 = vld [vmem:[%s2 + $0x44] sm:$0xf]
        %v1313 = vld [vmem:[%s2 + $0x48] sm:$0xf]
        %v1314 = vld [vmem:[%s2 + $0x4c] sm:$0xf]
        %v1335 = vunpack.c.l.b16 %v1295
        %v1336 = vunpack.c.l.b16 %v1296
        %v1337 = vunpack.c.l.b16 %v1297
        %v1338 = vunpack.c.l.b16 %v1298
        %v1339 = vunpack.c.l.b16 %v1299
        %v1340 = vunpack.c.l.b16 %v1300
        %v1341 = vunpack.c.l.b16 %v1301
        %v1342 = vunpack.c.l.b16 %v1302
        %v1343 = vunpack.c.l.b16 %v1303
        %v1344 = vunpack.c.l.b16 %v1304
        %v1345 = vunpack.c.l.b16 %v1305
        %v1346 = vunpack.c.l.b16 %v1306
        %v1347 = vunpack.c.l.b16 %v1307
        %v1348 = vunpack.c.l.b16 %v1308
        %v1349 = vunpack.c.l.b16 %v1309
        %v1350 = vunpack.c.l.b16 %v1310
        %v1351 = vunpack.c.l.b16 %v1311
        %v1352 = vunpack.c.l.b16 %v1312
        %v1353 = vunpack.c.l.b16 %v1313
        %v1354 = vunpack.c.l.b16 %v1314
        %v1355 = vpack.c.b16 %v1336, %v1335
        %v1356 = vpack.c.b16 %v1338, %v1337
        %v1357 = vpack.c.b16 %v1340, %v1339
        %v1358 = vpack.c.b16 %v1342, %v1341
        %v1359 = vpack.c.b16 %v1344, %v1343
        %v1360 = vpack.c.b16 %v1346, %v1345
        %v1361 = vpack.c.b16 %v1348, %v1347
        %v1362 = vpack.c.b16 %v1350, %v1349
        %v1363 = vpack.c.b16 %v1352, %v1351
        %v1364 = vpack.c.b16 %v1354, %v1353
        %v1366 = vsel %vm443, %v1355, 0
        %v1369 = vsel %vm443, %v1356, 0
        %v1372 = vsel %vm443, %v1357, 0
        %v1375 = vsel %vm443, %v1358, 0
        %v1378 = vsel %vm443, %v1359, 0
        %v1381 = vsel %vm443, %v1360, 0
        %v1384 = vsel %vm443, %v1361, 0
        %v1387 = vsel %vm443, %v1362, 0
        %v1390 = vsel %vm443, %v1363, 0
        %v1393 = vsel %vm443, %v1364, 0
        %1395 = vmatpush.bf16.msra.mxu0 0
        %1396 = vmatpush.bf16.msra.mxu0 0
        %1397 = vmatpush.bf16.msra.mxu0 0
        %1398 = vmatpush.bf16.msra.mxu0 0
        %1399 = vmatpush.bf16.msra.mxu0 0
        %1400 = vmatpush.bf16.msra.mxu0 0
        %1401 = vmatpush.bf16.msra.mxu0 %v1293
        %1402 = vmatpush.bf16.msra.mxu0 %v1291
        %1403 = vmatmul.bf16.gmra.mxu0 %v1366
        %v1404 = vpop.f32.mrf.mxu0
        %v1405 = vadd.f32 0.0, %v1404
        %v1406 = vpop.f32.mrf.mxu0
        %v1407 = vadd.f32 0.0, %v1406
        %1408 = vmatmul.bf16.gmra.mxu0 %v1369
        %v1409 = vpop.f32.mrf.mxu0
        %v1410 = vadd.f32 0.0, %v1409
        %v1411 = vpop.f32.mrf.mxu0
        %v1412 = vadd.f32 0.0, %v1411
        %1413 = vmatmul.bf16.gmra.mxu0 %v1372
        %v1414 = vpop.f32.mrf.mxu0
        %v1415 = vadd.f32 0.0, %v1414
        %v1416 = vpop.f32.mrf.mxu0
        %v1417 = vadd.f32 0.0, %v1416
        %1418 = vmatmul.bf16.gmra.mxu0 %v1375
        %v1419 = vpop.f32.mrf.mxu0
        %v1420 = vadd.f32 0.0, %v1419
        %v1421 = vpop.f32.mrf.mxu0
        %v1422 = vadd.f32 0.0, %v1421
        %1423 = vmatmul.bf16.gmra.mxu0 %v1378
        %v1424 = vpop.f32.mrf.mxu0
        %v1425 = vadd.f32 0.0, %v1424
        %v1426 = vpop.f32.mrf.mxu0
        %v1427 = vadd.f32 0.0, %v1426
        %1428 = vmatmul.bf16.gmra.mxu0 %v1381
        %v1429 = vpop.f32.mrf.mxu0
        %v1430 = vadd.f32 0.0, %v1429
        %v1431 = vpop.f32.mrf.mxu0
        %v1432 = vadd.f32 0.0, %v1431
        %1433 = vmatmul.bf16.gmra.mxu0 %v1384
        %v1434 = vpop.f32.mrf.mxu0
        %v1435 = vadd.f32 0.0, %v1434
        %v1436 = vpop.f32.mrf.mxu0
        %v1437 = vadd.f32 0.0, %v1436
        %1438 = vmatmul.bf16.gmra.mxu0 %v1387
        %v1439 = vpop.f32.mrf.mxu0
        %v1440 = vadd.f32 0.0, %v1439
        %v1441 = vpop.f32.mrf.mxu0
        %v1442 = vadd.f32 0.0, %v1441
        %1443 = vmatmul.bf16.gmra.mxu0 %v1390
        %v1444 = vpop.f32.mrf.mxu0
        %v1445 = vadd.f32 0.0, %v1444
        %v1446 = vpop.f32.mrf.mxu0
        %v1447 = vadd.f32 0.0, %v1446
        %1448 = vmatmul.bf16.gmra.mxu0 %v1393
        %v1449 = vpop.f32.mrf.mxu0
        %v1450 = vadd.f32 0.0, %v1449
        %v1451 = vpop.f32.mrf.mxu0
        %v1452 = vadd.f32 0.0, %v1451
        %1453 = vdwg.mxu0
        %1454 = vmatpush.bf16.msra.mxu0 0
        %1455 = vmatpush.bf16.msra.mxu0 0
        %1456 = vmatpush.bf16.msra.mxu0 0
        %1457 = vmatpush.bf16.msra.mxu0 0
        %1458 = vmatpush.bf16.msra.mxu0 0
        %1459 = vmatpush.bf16.msra.mxu0 0
        %1460 = vmatpush.bf16.msra.mxu0 %v1294
        %1461 = vmatpush.bf16.msra.mxu0 %v1292
        %1462 = vmatmul.bf16.gmra.mxu0 %v1366
        %v1463 = vpop.f32.mrf.mxu0
        %v1464 = vadd.f32 0.0, %v1463
        %v1465 = vpop.f32.mrf.mxu0
        %v1466 = vadd.f32 0.0, %v1465
        %1467 = vmatmul.bf16.gmra.mxu0 %v1369
        %v1468 = vpop.f32.mrf.mxu0
        %v1469 = vadd.f32 0.0, %v1468
        %v1470 = vpop.f32.mrf.mxu0
        %v1471 = vadd.f32 0.0, %v1470
        %1472 = vmatmul.bf16.gmra.mxu0 %v1372
        %v1473 = vpop.f32.mrf.mxu0
        %v1474 = vadd.f32 0.0, %v1473
        %v1475 = vpop.f32.mrf.mxu0
        %v1476 = vadd.f32 0.0, %v1475
        %1477 = vmatmul.bf16.gmra.mxu0 %v1375
        %v1478 = vpop.f32.mrf.mxu0
        %v1479 = vadd.f32 0.0, %v1478
        %v1480 = vpop.f32.mrf.mxu0
        %v1481 = vadd.f32 0.0, %v1480
        %1482 = vmatmul.bf16.gmra.mxu0 %v1378
        %v1483 = vpop.f32.mrf.mxu0
        %v1484 = vadd.f32 0.0, %v1483
        %v1485 = vpop.f32.mrf.mxu0
        %v1486 = vadd.f32 0.0, %v1485
        %1487 = vmatmul.bf16.gmra.mxu0 %v1381
        %v1488 = vpop.f32.mrf.mxu0
        %v1489 = vadd.f32 0.0, %v1488
        %v1490 = vpop.f32.mrf.mxu0
        %v1491 = vadd.f32 0.0, %v1490
        %1492 = vmatmul.bf16.gmra.mxu0 %v1384
        %v1493 = vpop.f32.mrf.mxu0
        %v1494 = vadd.f32 0.0, %v1493
        %v1495 = vpop.f32.mrf.mxu0
        %v1496 = vadd.f32 0.0, %v1495
        %1497 = vmatmul.bf16.gmra.mxu0 %v1387
        %v1498 = vpop.f32.mrf.mxu0
        %v1499 = vadd.f32 0.0, %v1498
        %v1500 = vpop.f32.mrf.mxu0
        %v1501 = vadd.f32 0.0, %v1500
        %1502 = vmatmul.bf16.gmra.mxu0 %v1390
        %v1503 = vpop.f32.mrf.mxu0
        %v1504 = vadd.f32 0.0, %v1503
        %v1505 = vpop.f32.mrf.mxu0
        %v1506 = vadd.f32 0.0, %v1505
        %1507 = vmatmul.bf16.gmra.mxu0 %v1393
        %v1508 = vpop.f32.mrf.mxu0
        %v1509 = vadd.f32 0.0, %v1508
        %v1510 = vpop.f32.mrf.mxu0
        %v1511 = vadd.f32 0.0, %v1510
        %1512 = vdwg.mxu0
        %v1513 = vxor.u32 %v1425, 2147483648
        %v1514 = vxor.u32 %v1484, 2147483648
        %v1515 = vxor.u32 %v1427, 2147483648
        %v1516 = vxor.u32 %v1486, 2147483648
        %v1517 = vxor.u32 %v1430, 2147483648
        %v1518 = vxor.u32 %v1489, 2147483648
        %v1519 = vxor.u32 %v1432, 2147483648
        %v1520 = vxor.u32 %v1491, 2147483648
        %v1521 = vxor.u32 %v1435, 2147483648
        %v1522 = vxor.u32 %v1494, 2147483648
        %v1523 = vxor.u32 %v1437, 2147483648
        %v1524 = vxor.u32 %v1496, 2147483648
        %v1525 = vxor.u32 %v1440, 2147483648
        %v1526 = vxor.u32 %v1499, 2147483648
        %v1527 = vxor.u32 %v1442, 2147483648
        %v1528 = vxor.u32 %v1501, 2147483648
        %v1529 = vxor.u32 %v1445, 2147483648
        %v1530 = vxor.u32 %v1504, 2147483648
        %v1531 = vxor.u32 %v1447, 2147483648
        %v1532 = vxor.u32 %v1506, 2147483648
        %v1533 = vxor.u32 %v1450, 2147483648
        %v1534 = vxor.u32 %v1509, 2147483648
        %v1535 = vxor.u32 %v1452, 2147483648
        %v1536 = vxor.u32 %v1511, 2147483648
        %v1537 = vmul.f32 %v1513, 1.442695
        %v1538 = vpow.pop %v1537
        %v1539 = vmul.f32 %v1514, 1.442695
        %v1540 = vpow.pop %v1539
        %v1541 = vmul.f32 %v1515, 1.442695
        %v1542 = vpow.pop %v1541
        %v1543 = vmul.f32 %v1516, 1.442695
        %v1544 = vpow.pop %v1543
        %v1545 = vmul.f32 %v1517, 1.442695
        %v1546 = vpow.pop %v1545
        %v1547 = vmul.f32 %v1518, 1.442695
        %v1548 = vpow.pop %v1547
        %v1549 = vmul.f32 %v1519, 1.442695
        %v1550 = vpow.pop %v1549
        %v1551 = vmul.f32 %v1520, 1.442695
        %v1552 = vpow.pop %v1551
        %v1553 = vmul.f32 %v1521, 1.442695
        %v1554 = vpow.pop %v1553
        %v1555 = vmul.f32 %v1522, 1.442695
        %v1556 = vpow.pop %v1555
        %v1557 = vmul.f32 %v1523, 1.442695
        %v1558 = vpow.pop %v1557
        %v1559 = vmul.f32 %v1524, 1.442695
        %v1560 = vpow.pop %v1559
        %v1561 = vmul.f32 %v1525, 1.442695
        %v1562 = vpow.pop %v1561
        %v1563 = vmul.f32 %v1526, 1.442695
        %v1564 = vpow.pop %v1563
        %v1565 = vmul.f32 %v1527, 1.442695
        %v1566 = vpow.pop %v1565
        %v1567 = vmul.f32 %v1528, 1.442695
        %v1568 = vpow.pop %v1567
        %v1569 = vmul.f32 %v1529, 1.442695
        %v1570 = vpow.pop %v1569
        %v1571 = vmul.f32 %v1530, 1.442695
        %v1572 = vpow.pop %v1571
        %v1573 = vmul.f32 %v1531, 1.442695
        %v1574 = vpow.pop %v1573
        %v1575 = vmul.f32 %v1532, 1.442695
        %v1576 = vpow.pop %v1575
        %v1577 = vmul.f32 %v1533, 1.442695
        %v1578 = vpow.pop %v1577
        %v1579 = vmul.f32 %v1534, 1.442695
        %v1580 = vpow.pop %v1579
        %v1581 = vmul.f32 %v1535, 1.442695
        %v1582 = vpow.pop %v1581
        %v1583 = vmul.f32 %v1536, 1.442695
        %v1584 = vpow.pop %v1583
        %v1585 = vadd.f32 %v1538, 1.0
        %v1586 = vadd.f32 %v1540, 1.0
        %v1587 = vadd.f32 %v1542, 1.0
        %v1588 = vadd.f32 %v1544, 1.0
        %v1589 = vadd.f32 %v1546, 1.0
        %v1590 = vadd.f32 %v1548, 1.0
        %v1591 = vadd.f32 %v1550, 1.0
        %v1592 = vadd.f32 %v1552, 1.0
        %v1593 = vadd.f32 %v1554, 1.0
        %v1594 = vadd.f32 %v1556, 1.0
        %v1595 = vadd.f32 %v1558, 1.0
        %v1596 = vadd.f32 %v1560, 1.0
        %v1597 = vadd.f32 %v1562, 1.0
        %v1598 = vadd.f32 %v1564, 1.0
        %v1599 = vadd.f32 %v1566, 1.0
        %v1600 = vadd.f32 %v1568, 1.0
        %v1601 = vadd.f32 %v1570, 1.0
        %v1602 = vadd.f32 %v1572, 1.0
        %v1603 = vadd.f32 %v1574, 1.0
        %v1604 = vadd.f32 %v1576, 1.0
        %v1605 = vadd.f32 %v1578, 1.0
        %v1606 = vadd.f32 %v1580, 1.0
        %v1607 = vadd.f32 %v1582, 1.0
        %v1608 = vadd.f32 %v1584, 1.0
        %v1609 = vrcp.pop %v1585
        %v1610 = vmul.f32 %v1585, %v1609
        %v1611 = vsub.f32 1.0, %v1610
        %v1612 = vmul.f32 %v1609, %v1611
        %v1613 = vadd.f32 %v1609, %v1612
        %vm1614 = vweird.f32 %v1585
        %vm1615 = vweird.f32 %v1609
        %vm1616 = vmor %vm1614, %vm1615
        %v1617 = vsel %vm1616, %v1609, %v1613
        %v1618 = vand.u32 2147483647, %v1585
        %vm1619 = vcmp.eq.f32.partialorder %v1618, 8.507059e+37
        %v1620 = vand.u32 %v1585, 2147483648
        %v1621 = vor.u32 1.1754944e-38, %v1620
        %v1622 = vsel %vm1619, %v1621, %v1617
        %v1623 = vmul.f32 1.0, %v1622
        %v1624 = vrcp.pop %v1586
        %v1625 = vmul.f32 %v1586, %v1624
        %v1626 = vsub.f32 1.0, %v1625
        %v1627 = vmul.f32 %v1624, %v1626
        %v1628 = vadd.f32 %v1624, %v1627
        %vm1629 = vweird.f32 %v1586
        %vm1630 = vweird.f32 %v1624
        %vm1631 = vmor %vm1629, %vm1630
        %v1632 = vsel %vm1631, %v1624, %v1628
        %v1633 = vand.u32 2147483647, %v1586
        %vm1634 = vcmp.eq.f32.partialorder %v1633, 8.507059e+37
        %v1635 = vand.u32 %v1586, 2147483648
        %v1636 = vor.u32 1.1754944e-38, %v1635
        %v1637 = vsel %vm1634, %v1636, %v1632
        %v1638 = vmul.f32 1.0, %v1637
        %v1639 = vrcp.pop %v1587
        %v1640 = vmul.f32 %v1587, %v1639
        %v1641 = vsub.f32 1.0, %v1640
        %v1642 = vmul.f32 %v1639, %v1641
        %v1643 = vadd.f32 %v1639, %v1642
        %vm1644 = vweird.f32 %v1587
        %vm1645 = vweird.f32 %v1639
        %vm1646 = vmor %vm1644, %vm1645
        %v1647 = vsel %vm1646, %v1639, %v1643
        %v1648 = vand.u32 2147483647, %v1587
        %vm1649 = vcmp.eq.f32.partialorder %v1648, 8.507059e+37
        %v1650 = vand.u32 %v1587, 2147483648
        %v1651 = vor.u32 1.1754944e-38, %v1650
        %v1652 = vsel %vm1649, %v1651, %v1647
        %v1653 = vmul.f32 1.0, %v1652
        %v1654 = vrcp.pop %v1588
        %v1655 = vmul.f32 %v1588, %v1654
        %v1656 = vsub.f32 1.0, %v1655
        %v1657 = vmul.f32 %v1654, %v1656
        %v1658 = vadd.f32 %v1654, %v1657
        %vm1659 = vweird.f32 %v1588
        %vm1660 = vweird.f32 %v1654
        %vm1661 = vmor %vm1659, %vm1660
        %v1662 = vsel %vm1661, %v1654, %v1658
        %v1663 = vand.u32 2147483647, %v1588
        %vm1664 = vcmp.eq.f32.partialorder %v1663, 8.507059e+37
        %v1665 = vand.u32 %v1588, 2147483648
        %v1666 = vor.u32 1.1754944e-38, %v1665
        %v1667 = vsel %vm1664, %v1666, %v1662
        %v1668 = vmul.f32 1.0, %v1667
        %v1669 = vrcp.pop %v1589
        %v1670 = vmul.f32 %v1589, %v1669
        %v1671 = vsub.f32 1.0, %v1670
        %v1672 = vmul.f32 %v1669, %v1671
        %v1673 = vadd.f32 %v1669, %v1672
        %vm1674 = vweird.f32 %v1589
        %vm1675 = vweird.f32 %v1669
        %vm1676 = vmor %vm1674, %vm1675
        %v1677 = vsel %vm1676, %v1669, %v1673
        %v1678 = vand.u32 2147483647, %v1589
        %vm1679 = vcmp.eq.f32.partialorder %v1678, 8.507059e+37
        %v1680 = vand.u32 %v1589, 2147483648
        %v1681 = vor.u32 1.1754944e-38, %v1680
        %v1682 = vsel %vm1679, %v1681, %v1677
        %v1683 = vmul.f32 1.0, %v1682
        %v1684 = vrcp.pop %v1590
        %v1685 = vmul.f32 %v1590, %v1684
        %v1686 = vsub.f32 1.0, %v1685
        %v1687 = vmul.f32 %v1684, %v1686
        %v1688 = vadd.f32 %v1684, %v1687
        %vm1689 = vweird.f32 %v1590
        %vm1690 = vweird.f32 %v1684
        %vm1691 = vmor %vm1689, %vm1690
        %v1692 = vsel %vm1691, %v1684, %v1688
        %v1693 = vand.u32 2147483647, %v1590
        %vm1694 = vcmp.eq.f32.partialorder %v1693, 8.507059e+37
        %v1695 = vand.u32 %v1590, 2147483648
        %v1696 = vor.u32 1.1754944e-38, %v1695
        %v1697 = vsel %vm1694, %v1696, %v1692
        %v1698 = vmul.f32 1.0, %v1697
        %v1699 = vrcp.pop %v1591
        %v1700 = vmul.f32 %v1591, %v1699
        %v1701 = vsub.f32 1.0, %v1700
        %v1702 = vmul.f32 %v1699, %v1701
        %v1703 = vadd.f32 %v1699, %v1702
        %vm1704 = vweird.f32 %v1591
        %vm1705 = vweird.f32 %v1699
        %vm1706 = vmor %vm1704, %vm1705
        %v1707 = vsel %vm1706, %v1699, %v1703
        %v1708 = vand.u32 2147483647, %v1591
        %vm1709 = vcmp.eq.f32.partialorder %v1708, 8.507059e+37
        %v1710 = vand.u32 %v1591, 2147483648
        %v1711 = vor.u32 1.1754944e-38, %v1710
        %v1712 = vsel %vm1709, %v1711, %v1707
        %v1713 = vmul.f32 1.0, %v1712
        %v1714 = vrcp.pop %v1592
        %v1715 = vmul.f32 %v1592, %v1714
        %v1716 = vsub.f32 1.0, %v1715
        %v1717 = vmul.f32 %v1714, %v1716
        %v1718 = vadd.f32 %v1714, %v1717
        %vm1719 = vweird.f32 %v1592
        %vm1720 = vweird.f32 %v1714
        %vm1721 = vmor %vm1719, %vm1720
        %v1722 = vsel %vm1721, %v1714, %v1718
        %v1723 = vand.u32 2147483647, %v1592
        %vm1724 = vcmp.eq.f32.partialorder %v1723, 8.507059e+37
        %v1725 = vand.u32 %v1592, 2147483648
        %v1726 = vor.u32 1.1754944e-38, %v1725
        %v1727 = vsel %vm1724, %v1726, %v1722
        %v1728 = vmul.f32 1.0, %v1727
        %v1729 = vrcp.pop %v1593
        %v1730 = vmul.f32 %v1593, %v1729
        %v1731 = vsub.f32 1.0, %v1730
        %v1732 = vmul.f32 %v1729, %v1731
        %v1733 = vadd.f32 %v1729, %v1732
        %vm1734 = vweird.f32 %v1593
        %vm1735 = vweird.f32 %v1729
        %vm1736 = vmor %vm1734, %vm1735
        %v1737 = vsel %vm1736, %v1729, %v1733
        %v1738 = vand.u32 2147483647, %v1593
        %vm1739 = vcmp.eq.f32.partialorder %v1738, 8.507059e+37
        %v1740 = vand.u32 %v1593, 2147483648
        %v1741 = vor.u32 1.1754944e-38, %v1740
        %v1742 = vsel %vm1739, %v1741, %v1737
        %v1743 = vmul.f32 1.0, %v1742
        %v1744 = vrcp.pop %v1594
        %v1745 = vmul.f32 %v1594, %v1744
        %v1746 = vsub.f32 1.0, %v1745
        %v1747 = vmul.f32 %v1744, %v1746
        %v1748 = vadd.f32 %v1744, %v1747
        %vm1749 = vweird.f32 %v1594
        %vm1750 = vweird.f32 %v1744
        %vm1751 = vmor %vm1749, %vm1750
        %v1752 = vsel %vm1751, %v1744, %v1748
        %v1753 = vand.u32 2147483647, %v1594
        %vm1754 = vcmp.eq.f32.partialorder %v1753, 8.507059e+37
        %v1755 = vand.u32 %v1594, 2147483648
        %v1756 = vor.u32 1.1754944e-38, %v1755
        %v1757 = vsel %vm1754, %v1756, %v1752
        %v1758 = vmul.f32 1.0, %v1757
        %v1759 = vrcp.pop %v1595
        %v1760 = vmul.f32 %v1595, %v1759
        %v1761 = vsub.f32 1.0, %v1760
        %v1762 = vmul.f32 %v1759, %v1761
        %v1763 = vadd.f32 %v1759, %v1762
        %vm1764 = vweird.f32 %v1595
        %vm1765 = vweird.f32 %v1759
        %vm1766 = vmor %vm1764, %vm1765
        %v1767 = vsel %vm1766, %v1759, %v1763
        %v1768 = vand.u32 2147483647, %v1595
        %vm1769 = vcmp.eq.f32.partialorder %v1768, 8.507059e+37
        %v1770 = vand.u32 %v1595, 2147483648
        %v1771 = vor.u32 1.1754944e-38, %v1770
        %v1772 = vsel %vm1769, %v1771, %v1767
        %v1773 = vmul.f32 1.0, %v1772
        %v1774 = vrcp.pop %v1596
        %v1775 = vmul.f32 %v1596, %v1774
        %v1776 = vsub.f32 1.0, %v1775
        %v1777 = vmul.f32 %v1774, %v1776
        %v1778 = vadd.f32 %v1774, %v1777
        %vm1779 = vweird.f32 %v1596
        %vm1780 = vweird.f32 %v1774
        %vm1781 = vmor %vm1779, %vm1780
        %v1782 = vsel %vm1781, %v1774, %v1778
        %v1783 = vand.u32 2147483647, %v1596
        %vm1784 = vcmp.eq.f32.partialorder %v1783, 8.507059e+37
        %v1785 = vand.u32 %v1596, 2147483648
        %v1786 = vor.u32 1.1754944e-38, %v1785
        %v1787 = vsel %vm1784, %v1786, %v1782
        %v1788 = vmul.f32 1.0, %v1787
        %v1789 = vrcp.pop %v1597
        %v1790 = vmul.f32 %v1597, %v1789
        %v1791 = vsub.f32 1.0, %v1790
        %v1792 = vmul.f32 %v1789, %v1791
        %v1793 = vadd.f32 %v1789, %v1792
        %vm1794 = vweird.f32 %v1597
        %vm1795 = vweird.f32 %v1789
        %vm1796 = vmor %vm1794, %vm1795
        %v1797 = vsel %vm1796, %v1789, %v1793
        %v1798 = vand.u32 2147483647, %v1597
        %vm1799 = vcmp.eq.f32.partialorder %v1798, 8.507059e+37
        %v1800 = vand.u32 %v1597, 2147483648
        %v1801 = vor.u32 1.1754944e-38, %v1800
        %v1802 = vsel %vm1799, %v1801, %v1797
        %v1803 = vmul.f32 1.0, %v1802
        %v1804 = vrcp.pop %v1598
        %v1805 = vmul.f32 %v1598, %v1804
        %v1806 = vsub.f32 1.0, %v1805
        %v1807 = vmul.f32 %v1804, %v1806
        %v1808 = vadd.f32 %v1804, %v1807
        %vm1809 = vweird.f32 %v1598
        %vm1810 = vweird.f32 %v1804
        %vm1811 = vmor %vm1809, %vm1810
        %v1812 = vsel %vm1811, %v1804, %v1808
        %v1813 = vand.u32 2147483647, %v1598
        %vm1814 = vcmp.eq.f32.partialorder %v1813, 8.507059e+37
        %v1815 = vand.u32 %v1598, 2147483648
        %v1816 = vor.u32 1.1754944e-38, %v1815
        %v1817 = vsel %vm1814, %v1816, %v1812
        %v1818 = vmul.f32 1.0, %v1817
        %v1819 = vrcp.pop %v1599
        %v1820 = vmul.f32 %v1599, %v1819
        %v1821 = vsub.f32 1.0, %v1820
        %v1822 = vmul.f32 %v1819, %v1821
        %v1823 = vadd.f32 %v1819, %v1822
        %vm1824 = vweird.f32 %v1599
        %vm1825 = vweird.f32 %v1819
        %vm1826 = vmor %vm1824, %vm1825
        %v1827 = vsel %vm1826, %v1819, %v1823
        %v1828 = vand.u32 2147483647, %v1599
        %vm1829 = vcmp.eq.f32.partialorder %v1828, 8.507059e+37
        %v1830 = vand.u32 %v1599, 2147483648
        %v1831 = vor.u32 1.1754944e-38, %v1830
        %v1832 = vsel %vm1829, %v1831, %v1827
        %v1833 = vmul.f32 1.0, %v1832
        %v1834 = vrcp.pop %v1600
        %v1835 = vmul.f32 %v1600, %v1834
        %v1836 = vsub.f32 1.0, %v1835
        %v1837 = vmul.f32 %v1834, %v1836
        %v1838 = vadd.f32 %v1834, %v1837
        %vm1839 = vweird.f32 %v1600
        %vm1840 = vweird.f32 %v1834
        %vm1841 = vmor %vm1839, %vm1840
        %v1842 = vsel %vm1841, %v1834, %v1838
        %v1843 = vand.u32 2147483647, %v1600
        %vm1844 = vcmp.eq.f32.partialorder %v1843, 8.507059e+37
        %v1845 = vand.u32 %v1600, 2147483648
        %v1846 = vor.u32 1.1754944e-38, %v1845
        %v1847 = vsel %vm1844, %v1846, %v1842
        %v1848 = vmul.f32 1.0, %v1847
        %v1849 = vrcp.pop %v1601
        %v1850 = vmul.f32 %v1601, %v1849
        %v1851 = vsub.f32 1.0, %v1850
        %v1852 = vmul.f32 %v1849, %v1851
        %v1853 = vadd.f32 %v1849, %v1852
        %vm1854 = vweird.f32 %v1601
        %vm1855 = vweird.f32 %v1849
        %vm1856 = vmor %vm1854, %vm1855
        %v1857 = vsel %vm1856, %v1849, %v1853
        %v1858 = vand.u32 2147483647, %v1601
        %vm1859 = vcmp.eq.f32.partialorder %v1858, 8.507059e+37
        %v1860 = vand.u32 %v1601, 2147483648
        %v1861 = vor.u32 1.1754944e-38, %v1860
        %v1862 = vsel %vm1859, %v1861, %v1857
        %v1863 = vmul.f32 1.0, %v1862
        %v1864 = vrcp.pop %v1602
        %v1865 = vmul.f32 %v1602, %v1864
        %v1866 = vsub.f32 1.0, %v1865
        %v1867 = vmul.f32 %v1864, %v1866
        %v1868 = vadd.f32 %v1864, %v1867
        %vm1869 = vweird.f32 %v1602
        %vm1870 = vweird.f32 %v1864
        %vm1871 = vmor %vm1869, %vm1870
        %v1872 = vsel %vm1871, %v1864, %v1868
        %v1873 = vand.u32 2147483647, %v1602
        %vm1874 = vcmp.eq.f32.partialorder %v1873, 8.507059e+37
        %v1875 = vand.u32 %v1602, 2147483648
        %v1876 = vor.u32 1.1754944e-38, %v1875
        %v1877 = vsel %vm1874, %v1876, %v1872
        %v1878 = vmul.f32 1.0, %v1877
        %v1879 = vrcp.pop %v1603
        %v1880 = vmul.f32 %v1603, %v1879
        %v1881 = vsub.f32 1.0, %v1880
        %v1882 = vmul.f32 %v1879, %v1881
        %v1883 = vadd.f32 %v1879, %v1882
        %vm1884 = vweird.f32 %v1603
        %vm1885 = vweird.f32 %v1879
        %vm1886 = vmor %vm1884, %vm1885
        %v1887 = vsel %vm1886, %v1879, %v1883
        %v1888 = vand.u32 2147483647, %v1603
        %vm1889 = vcmp.eq.f32.partialorder %v1888, 8.507059e+37
        %v1890 = vand.u32 %v1603, 2147483648
        %v1891 = vor.u32 1.1754944e-38, %v1890
        %v1892 = vsel %vm1889, %v1891, %v1887
        %v1893 = vmul.f32 1.0, %v1892
        %v1894 = vrcp.pop %v1604
        %v1895 = vmul.f32 %v1604, %v1894
        %v1896 = vsub.f32 1.0, %v1895
        %v1897 = vmul.f32 %v1894, %v1896
        %v1898 = vadd.f32 %v1894, %v1897
        %vm1899 = vweird.f32 %v1604
        %vm1900 = vweird.f32 %v1894
        %vm1901 = vmor %vm1899, %vm1900
        %v1902 = vsel %vm1901, %v1894, %v1898
        %v1903 = vand.u32 2147483647, %v1604
        %vm1904 = vcmp.eq.f32.partialorder %v1903, 8.507059e+37
        %v1905 = vand.u32 %v1604, 2147483648
        %v1906 = vor.u32 1.1754944e-38, %v1905
        %v1907 = vsel %vm1904, %v1906, %v1902
        %v1908 = vmul.f32 1.0, %v1907
        %v1909 = vrcp.pop %v1605
        %v1910 = vmul.f32 %v1605, %v1909
        %v1911 = vsub.f32 1.0, %v1910
        %v1912 = vmul.f32 %v1909, %v1911
        %v1913 = vadd.f32 %v1909, %v1912
        %vm1914 = vweird.f32 %v1605
        %vm1915 = vweird.f32 %v1909
        %vm1916 = vmor %vm1914, %vm1915
        %v1917 = vsel %vm1916, %v1909, %v1913
        %v1918 = vand.u32 2147483647, %v1605
        %vm1919 = vcmp.eq.f32.partialorder %v1918, 8.507059e+37
        %v1920 = vand.u32 %v1605, 2147483648
        %v1921 = vor.u32 1.1754944e-38, %v1920
        %v1922 = vsel %vm1919, %v1921, %v1917
        %v1923 = vmul.f32 1.0, %v1922
        %v1924 = vrcp.pop %v1606
        %v1925 = vmul.f32 %v1606, %v1924
        %v1926 = vsub.f32 1.0, %v1925
        %v1927 = vmul.f32 %v1924, %v1926
        %v1928 = vadd.f32 %v1924, %v1927
        %vm1929 = vweird.f32 %v1606
        %vm1930 = vweird.f32 %v1924
        %vm1931 = vmor %vm1929, %vm1930
        %v1932 = vsel %vm1931, %v1924, %v1928
        %v1933 = vand.u32 2147483647, %v1606
        %vm1934 = vcmp.eq.f32.partialorder %v1933, 8.507059e+37
        %v1935 = vand.u32 %v1606, 2147483648
        %v1936 = vor.u32 1.1754944e-38, %v1935
        %v1937 = vsel %vm1934, %v1936, %v1932
        %v1938 = vmul.f32 1.0, %v1937
        %v1939 = vrcp.pop %v1607
        %v1940 = vmul.f32 %v1607, %v1939
        %v1941 = vsub.f32 1.0, %v1940
        %v1942 = vmul.f32 %v1939, %v1941
        %v1943 = vadd.f32 %v1939, %v1942
        %vm1944 = vweird.f32 %v1607
        %vm1945 = vweird.f32 %v1939
        %vm1946 = vmor %vm1944, %vm1945
        %v1947 = vsel %vm1946, %v1939, %v1943
        %v1948 = vand.u32 2147483647, %v1607
        %vm1949 = vcmp.eq.f32.partialorder %v1948, 8.507059e+37
        %v1950 = vand.u32 %v1607, 2147483648
        %v1951 = vor.u32 1.1754944e-38, %v1950
        %v1952 = vsel %vm1949, %v1951, %v1947
        %v1953 = vmul.f32 1.0, %v1952
        %v1954 = vrcp.pop %v1608
        %v1955 = vmul.f32 %v1608, %v1954
        %v1956 = vsub.f32 1.0, %v1955
        %v1957 = vmul.f32 %v1954, %v1956
        %v1958 = vadd.f32 %v1954, %v1957
        %vm1959 = vweird.f32 %v1608
        %vm1960 = vweird.f32 %v1954
        %vm1961 = vmor %vm1959, %vm1960
        %v1962 = vsel %vm1961, %v1954, %v1958
        %v1963 = vand.u32 2147483647, %v1608
        %vm1964 = vcmp.eq.f32.partialorder %v1963, 8.507059e+37
        %v1965 = vand.u32 %v1608, 2147483648
        %v1966 = vor.u32 1.1754944e-38, %v1965
        %v1967 = vsel %vm1964, %v1966, %v1962
        %v1968 = vmul.f32 1.0, %v1967
        %v1969 = vld [vmem:[%s378] sm:$0x3]
        %v1971 = vperm.slane %v1969, 0
        %v1972 = vperm.slane %v1969, 1
        %v1975 = vmul.f32 %v1405, %v1971
        %v1976 = vmul.f32 %v1464, %v1972
        %v1977 = vmul.f32 %v1407, %v1971
        %v1978 = vmul.f32 %v1466, %v1972
        %v1979 = vmul.f32 %v1410, %v1971
        %v1980 = vmul.f32 %v1469, %v1972
        %v1981 = vmul.f32 %v1412, %v1971
        %v1982 = vmul.f32 %v1471, %v1972
        %v1983 = vmul.f32 %v1975, %v1623
        %v1984 = vmul.f32 %v1976, %v1638
        %v1985 = vmul.f32 %v1977, %v1653
        %v1986 = vmul.f32 %v1978, %v1668
        %v1987 = vmul.f32 %v1979, %v1683
        %v1988 = vmul.f32 %v1980, %v1698
        %v1989 = vmul.f32 %v1981, %v1713
        %v1990 = vmul.f32 %v1982, %v1728
        %v1991 = vmul.f32 %v1415, %v1971
        %v1992 = vmul.f32 %v1474, %v1972
        %v1993 = vmul.f32 %v1417, %v1971
        %v1994 = vmul.f32 %v1476, %v1972
        %v1995 = vmul.f32 %v1420, %v1971
        %v1996 = vmul.f32 %v1479, %v1972
        %v1997 = vmul.f32 %v1422, %v1971
        %v1998 = vmul.f32 %v1481, %v1972
        %v1999 = vmul.f32 %v1991, %v1743
        %v2000 = vmul.f32 %v1992, %v1758
        %v2001 = vmul.f32 %v1993, %v1773
        %v2002 = vmul.f32 %v1994, %v1788
        %v2003 = vmul.f32 %v1995, %v1803
        %v2004 = vmul.f32 %v1996, %v1818
        %v2005 = vmul.f32 %v1997, %v1833
        %v2006 = vmul.f32 %v1998, %v1848
        %v2007 = vpack.c.bf16 %v1984, %v1983
        %v2008 = vpack.c.bf16 %v1986, %v1985
        %v2009 = vpack.c.bf16 %v1988, %v1987
        %v2010 = vpack.c.bf16 %v1990, %v1989
        %2011 = vst [vmem:[%s388] sm:$0xff] %v2007
        %2012 = vst [vmem:[%s388 + $0x8] sm:$0xff] %v2008
        %2013 = vst [vmem:[%s388 + $0x10] sm:$0xff] %v2009
        %2014 = vst [vmem:[%s388 + $0x18] sm:$0xff] %v2010
        %v2015 = vpack.c.bf16 %v2000, %v1999
        %v2016 = vpack.c.bf16 %v2002, %v2001
        %v2017 = vpack.c.bf16 %v2004, %v2003
        %v2018 = vpack.c.bf16 %v2006, %v2005
        %2019 = vst [vmem:[%s398] sm:$0xff] %v2015
        %2020 = vst [vmem:[%s398 + $0x8] sm:$0xff] %v2016
        %2021 = vst [vmem:[%s398 + $0x10] sm:$0xff] %v2017
        %2022 = vst [vmem:[%s398 + $0x18] sm:$0xff] %v2018
        %v2023 = vpack.c.bf16 %v1878, %v1863
        %v2024 = vpack.c.bf16 %v1908, %v1893
        %v2025 = vpack.c.bf16 %v1938, %v1923
        %v2026 = vpack.c.bf16 %v1968, %v1953
        %2027 = vst [vmem:[%s408] sm:$0xff] %v2023
        %2028 = vst [vmem:[%s408 + $0x8] sm:$0xff] %v2024
        %2029 = vst [vmem:[%s408 + $0x10] sm:$0xff] %v2025
        %2030 = vst [vmem:[%s408 + $0x18] sm:$0xff] %v2026
        %s2031 = smul.u32 2, %s27
        %p2032 = scmp.lt.s32.totalorder %s26, 1
        %s2033 = scalar_select %p2032, %s26, 1
        %p2034 = scmp.lt.s32.totalorder %s2031, 1
        %s2035 = scalar_select %p2034, %s2031, 1
        %s2036 = smul.addr %s2033, 8
        %s2037 = sadd.s32 %s2035, %s2036
        %s2038 = smul.addr %s2037, 4
        %s2039 = scalar_lea.vmem %s5, %s2038
        %s2040 = smul.u32 2, %s27
        %p2041 = scmp.lt.s32.totalorder %s26, 1
        %s2042 = scalar_select %p2041, %s26, 1
        %p2043 = scmp.lt.s32.totalorder %s2040, 1
        %s2044 = scalar_select %p2043, %s2040, 1
        %s2045 = smul.addr %s2042, 8
        %s2046 = sadd.s32 %s2044, %s2045
        %s2047 = smul.addr %s2046, 4
        %s2048 = scalar_lea.vmem %s6, %s2047
        %s2049 = smul.u32 2, %s27
        %p2050 = scmp.lt.s32.totalorder %s26, 1
        %s2051 = scalar_select %p2050, %s26, 1
        %p2052 = scmp.lt.s32.totalorder %s2049, 1
        %s2053 = scalar_select %p2052, %s2049, 1
        %s2054 = smul.addr %s2051, 8
        %s2055 = sadd.s32 %s2053, %s2054
        %s2056 = smul.addr %s2055, 4
        %s2057 = scalar_lea.vmem %s7, %s2056
        // Predicated region
        $region45: #{trimul_forward.3} parent=39 // pred_check
          %p2058 = pneg %p173
        $region46: #{trimul_forward.3} parent=39 // pred_check_branch
          %2060 = sbr.rel (%p2058) target = $region48
        $region47: #{trimul_forward.3} parent=39 // pred_region
          %s2061 = smul.u32 2, %s27
        $region48: #{trimul_forward.3} parent=39 // pred_fallthru
          _
        // Predicated region
        $region49: #{trimul_forward.3} parent=39 // pred_check
          %p2062 = pneg %p201
        $region50: #{trimul_forward.3} parent=39 // pred_check_branch
          %2064 = sbr.rel (%p2062) target = $region52
        $region51: #{trimul_forward.3} parent=39 // pred_region
          %s2065 = smul.u32 2, %s27
        $region52: #{trimul_forward.3} parent=39 // pred_fallthru
          _
        // Predicated region
        $region53: #{trimul_forward.3} parent=39 // pred_check
          %p2066 = pneg %p229
        $region54: #{trimul_forward.3} parent=39 // pred_check_branch
          %2068 = sbr.rel (%p2066) target = $region56
        $region55: #{trimul_forward.3} parent=39 // pred_region
          %s2069 = smul.u32 2, %s27
        $region56: #{trimul_forward.3} parent=39 // pred_fallthru
          _
      $region40: #{trimul_forward.3} parent=5 // pred_fallthru
        _
      %p2070 = scmp.le.s32.totalorder 2, %s17
      // Predicated region
      $region57: #{trimul_forward.3} parent=5 // pred_check
        %p2071 = pneg %p2070
      $region58: #{trimul_forward.3} parent=5 // pred_check_branch
        %2073 = sbr.rel (%p2071) target = $region60
      $region59: #{trimul_forward.3} parent=5 // pred_region
        %s2074 = ssub.s32 %s17, 2
        // Predicated region
        $region61: #{trimul_forward.3} parent=59 // pred_check
          %p2075 = pneg %p179
        $region62: #{trimul_forward.3} parent=59 // pred_check_branch
          %2077 = sbr.rel (%p2075) target = $region64
        $region63: #{trimul_forward.3} parent=59 // pred_region
          %s2078 = smul.u32 2, %s29
          %p2079 = scmp.lt.s32.totalorder %s28, 1
          %s2080 = scalar_select %p2079, %s28, 1
          %p2081 = scmp.lt.s32.totalorder %s2078, 1
          %s2082 = scalar_select %p2081, %s2078, 1
          %s2083 = smul.addr %s2080, 8
          %s2084 = sadd.s32 %s2082, %s2083
          %s2085 = smul.addr %s2084, 4
          %s2086 = scalar_lea.vmem %s5, %s2085
        $region64: #{trimul_forward.3} parent=59 // pred_fallthru
          _
        // Predicated region
        $region65: #{trimul_forward.3} parent=59 // pred_check
          %p2087 = pneg %p207
        $region66: #{trimul_forward.3} parent=59 // pred_check_branch
          %2089 = sbr.rel (%p2087) target = $region68
        $region67: #{trimul_forward.3} parent=59 // pred_region
          %s2090 = smul.u32 2, %s29
          %p2091 = scmp.lt.s32.totalorder %s28, 1
          %s2092 = scalar_select %p2091, %s28, 1
          %p2093 = scmp.lt.s32.totalorder %s2090, 1
          %s2094 = scalar_select %p2093, %s2090, 1
          %s2095 = smul.addr %s2092, 8
          %s2096 = sadd.s32 %s2094, %s2095
          %s2097 = smul.addr %s2096, 4
          %s2098 = scalar_lea.vmem %s6, %s2097
        $region68: #{trimul_forward.3} parent=59 // pred_fallthru
          _
        // Predicated region
        $region69: #{trimul_forward.3} parent=59 // pred_check
          %p2099 = pneg %p235
        $region70: #{trimul_forward.3} parent=59 // pred_check_branch
          %2101 = sbr.rel (%p2099) target = $region72
        $region71: #{trimul_forward.3} parent=59 // pred_region
          %s2102 = smul.u32 2, %s29
          %p2103 = scmp.lt.s32.totalorder %s28, 1
          %s2104 = scalar_select %p2103, %s28, 1
          %p2105 = scmp.lt.s32.totalorder %s2102, 1
          %s2106 = scalar_select %p2105, %s2102, 1
          %s2107 = smul.addr %s2104, 8
          %s2108 = sadd.s32 %s2106, %s2107
          %s2109 = smul.addr %s2108, 4
          %s2110 = scalar_lea.vmem %s7, %s2109
        $region72: #{trimul_forward.3} parent=59 // pred_fallthru
          _
      $region60: #{trimul_forward.3} parent=5 // pred_fallthru
        _
    $region6: #{trimul_forward.3} parent=1 // loop_footer
      %s21 = sadd.s32 1, %s17
    $region7: #{trimul_forward.3} parent=1 // loop_footer_branch
      %16 = sbr.rel target = $region3
    $region8: #{trimul_forward.3} parent=1 // loop_exit
      _
    %2111 = vsyncpa [#allocation3], 1
    %s2112 = scalar_lea.sflag [#allocation3], 1
    %2113 = vsyncpa %s2112, 1

// kernel: trimul_forward.4
$region0: #{trimul_forward.4}
  #allocation0 [shape = 'u32[]', space=smem, size = 0x4, offset = 0x4, fixed_abs, tag = 'smem constant byte address 0x4 - core index']
  #allocation1 [shape = 'u32[72,128]{1,0:T(1,128)}', space=vmem, size = 0x9000, scoped, tag = 'internal scratch']
  %s0 = inlined_call_operand.vmem [shape: bf16[2,32,16,16], index: 0, kind: input, shape index: {}]
  %s1 = inlined_call_operand.vmem [shape: bf16[2,32,16,16], index: 1, kind: input, shape index: {}]
  %s2 = inlined_call_operand.vmem [shape: bf16[2,32,16,16], index: 2, kind: output, shape index: {}]
  %s3 = sld [smem:[#allocation0]]
  $region41: #{trimul_forward.4} parent=0
    _
  %s5 = ssub.s32 1, %s3
  %s6 = scalar_select 0, %s5, %s3
  loop: start=0, step=1, limit=6
  $region2: #{trimul_forward.4} parent=0 // loop_pre_header
    _
  $region3: #{trimul_forward.4} parent=0 // loop_header
    %s8 = sphi 0, %s12
    %p9 = scmp.ge.s32.totalorder %s8, 6
    %s15 = sphi 0, %s34
    %s16 = sphi 0, %s30
    %s17 = sphi 0, %s26
    %s18 = sphi 0, %s15
    %s19 = sphi 0, %s16
    %s20 = sphi 0, %s17
    %s21 = sphi 0, %s18
    %s22 = sphi 0, %s19
    %s23 = sphi 0, %s20
    %s41 = sphi 0, %s43
    %s44 = sphi 0, %s41
    %s45 = sphi 0, %s44
    %s61 = sphi 0, %s45
    %s69 = sphi 0, %s71
    %s72 = sphi 0, %s69
    %s73 = sphi 0, %s72
    %s89 = sphi 0, %s73
    %s99 = sphi 0, %s101
    %s102 = sphi 0, %s99
    %s103 = sphi 0, %s102
    %s119 = sphi 0, %s103
  $region4: #{trimul_forward.4} parent=0 // loop_header_branch
    %11 = sbr.rel (%p9) target = $region8
  $region5: #{trimul_forward.4} parent=0 // loop_body
    %s13 = ssub.s32 %s8, 1
    %s14 = ssub.s32 %s8, 2
    %s24 = sadd.s32 1, %s17
    %p25 = scmp.ge.s32.totalorder %s24, 1
    %s26 = scalar_select %p25, 0, %s24
    %s27 = sadd.s32 1, %s16
    %s28 = scalar_select %p25, %s27, %s16
    %p29 = scmp.ge.s32.totalorder %s28, 2
    %s30 = scalar_select %p29, 0, %s28
    %s31 = sadd.s32 1, %s15
    %s32 = scalar_select %p29, %s31, %s15
    %p33 = scmp.ge.s32.totalorder %s32, 2
    %s34 = scalar_select %p33, 0, %s32
    %s35 = ssub.s32 %s15, %s34
    %s36 = ssub.s32 %s16, %s30
    %s37 = sor.u32 %s35, %s36
    %s38 = ssub.s32 %s17, %s26
    %s39 = sor.u32 %s37, %s38
    %p40 = scmp.eq.s32.totalorder %s39, 0
    %s42 = sadd.s32 %s41, 1
    %s43 = scalar_select %p40, %s41, %s42
    %p46 = pneg %p40
    %p47 = scmp.eq.s32.totalorder %s8, 3
    %p48 = por %p46, %p47
    %p49 = scmp.ne.s32.totalorder %s41, %s44
    %p50 = scmp.eq.s32.totalorder %s8, 0
    %p51 = por %p49, %p50
    %p52 = scmp.ne.s32.totalorder %s41, %s44
    %p53 = scmp.eq.s32.totalorder %s13, 3
    %p54 = por %p52, %p53
    %p55 = scmp.ne.s32.totalorder %s44, %s45
    %p56 = scmp.eq.s32.totalorder %s13, 0
    %p57 = por %p55, %p56
    %p58 = scmp.ne.s32.totalorder %s44, %s45
    %p59 = scmp.eq.s32.totalorder %s14, 3
    %p60 = por %p58, %p59
    %p62 = scmp.ne.s32.totalorder %s45, %s61
    %p63 = scmp.eq.s32.totalorder %s14, 0
    %p64 = por %p62, %p63
    %s65 = ssub.s32 %s15, %s34
    %s66 = ssub.s32 %s16, %s30
    %s67 = sor.u32 %s65, %s66
    %p68 = scmp.eq.s32.totalorder %s67, 0
    %s70 = sadd.s32 %s69, 1
    %s71 = scalar_select %p68, %s69, %s70
    %p74 = pneg %p68
    %p75 = scmp.eq.s32.totalorder %s8, 3
    %p76 = por %p74, %p75
    %p77 = scmp.ne.s32.totalorder %s69, %s72
    %p78 = scmp.eq.s32.totalorder %s8, 0
    %p79 = por %p77, %p78
    %p80 = scmp.ne.s32.totalorder %s69, %s72
    %p81 = scmp.eq.s32.totalorder %s13, 3
    %p82 = por %p80, %p81
    %p83 = scmp.ne.s32.totalorder %s72, %s73
    %p84 = scmp.eq.s32.totalorder %s13, 0
    %p85 = por %p83, %p84
    %p86 = scmp.ne.s32.totalorder %s72, %s73
    %p87 = scmp.eq.s32.totalorder %s14, 3
    %p88 = por %p86, %p87
    %p90 = scmp.ne.s32.totalorder %s73, %s89
    %p91 = scmp.eq.s32.totalorder %s14, 0
    %p92 = por %p90, %p91
    %s93 = ssub.s32 %s15, %s34
    %s94 = ssub.s32 %s16, %s30
    %s95 = sor.u32 %s93, %s94
    %s96 = ssub.s32 %s17, %s26
    %s97 = sor.u32 %s95, %s96
    %p98 = scmp.eq.s32.totalorder %s97, 0
    %s100 = sadd.s32 %s99, 1
    %s101 = scalar_select %p98, %s99, %s100
    %p104 = pneg %p98
    %p105 = scmp.eq.s32.totalorder %s8, 3
    %p106 = por %p104, %p105
    %p107 = scmp.ne.s32.totalorder %s99, %s102
    %p108 = scmp.eq.s32.totalorder %s8, 0
    %p109 = por %p107, %p108
    %p110 = scmp.ne.s32.totalorder %s99, %s102
    %p111 = scmp.eq.s32.totalorder %s13, 3
    %p112 = por %p110, %p111
    %p113 = scmp.ne.s32.totalorder %s102, %s103
    %p114 = scmp.eq.s32.totalorder %s13, 0
    %p115 = por %p113, %p114
    %p116 = scmp.ne.s32.totalorder %s102, %s103
    %p117 = scmp.eq.s32.totalorder %s14, 3
    %p118 = por %p116, %p117
    %p120 = scmp.ne.s32.totalorder %s103, %s119
    %p121 = scmp.eq.s32.totalorder %s14, 0
    %p122 = por %p120, %p121
    %p123 = scmp.le.s32.totalorder 1, %s8
    %p124 = scmp.lt.s32.totalorder %s8, 5
    %p125 = pnand %p123, %p124
    %p126 = pneg %p125
    // Predicated region
    $region9: #{trimul_forward.4} parent=5 // pred_check
      _
    $region10: #{trimul_forward.4} parent=5 // pred_check_branch
      %128 = sbr.rel (%p125) target = $region12
    $region11: #{trimul_forward.4} parent=5 // pred_region
      %s129 = ssub.s32 %s8, 1
    $region12: #{trimul_forward.4} parent=5 // pred_fallthru
      _
    %p130 = scmp.lt.s32.totalorder %s8, 4
    // Predicated region
    $region13: #{trimul_forward.4} parent=5 // pred_check
      %p131 = pneg %p130
    $region14: #{trimul_forward.4} parent=5 // pred_check_branch
      %133 = sbr.rel (%p131) target = $region16
    $region15: #{trimul_forward.4} parent=5 // pred_region
      // Predicated region
      $region17: #{trimul_forward.4} parent=15 // pred_check
        %p134 = pneg %p51
      $region18: #{trimul_forward.4} parent=15 // pred_check_branch
        %136 = sbr.rel (%p134) target = $region20
      $region19: #{trimul_forward.4} parent=15 // pred_region
        %s137 = smul.u32 16, %s16
        %s138 = smul.u32 2, %s17
        %p139 = scmp.lt.s32.totalorder %s15, 1
        %s140 = scalar_select %p139, %s15, 1
        %p141 = scmp.lt.s32.totalorder %s137, 31
        %s142 = scalar_select %p141, %s137, 31
        %p143 = scmp.lt.s32.totalorder %s138, 1
        %s144 = scalar_select %p143, %s138, 1
        %s145 = smul.addr %s142, 2
        %s146 = sadd.s32 %s144, %s145
        %s147 = smul.addr %s140, 64
        %s148 = sadd.s32 %s146, %s147
        %s149 = smul.addr %s148, 4
        %s150 = scalar_lea.vmem %s0, %s149
        %s151 = smul.u32 16, %s16
        %s152 = smul.u32 2, %s17
      $region20: #{trimul_forward.4} parent=15 // pred_fallthru
        _
      // Predicated region
      $region21: #{trimul_forward.4} parent=15 // pred_check
        %p153 = pneg %p79
      $region22: #{trimul_forward.4} parent=15 // pred_check_branch
        %155 = sbr.rel (%p153) target = $region24
      $region23: #{trimul_forward.4} parent=15 // pred_region
        %s156 = smul.u32 16, %s16
        %p157 = scmp.lt.s32.totalorder %s15, 1
        %s158 = scalar_select %p157, %s15, 1
        %p159 = scmp.lt.s32.totalorder %s156, 31
        %s160 = scalar_select %p159, %s156, 31
        %s161 = smul.addr %s160, 2
        %s162 = smul.addr %s158, 64
        %s163 = sadd.s32 %s161, %s162
        %s164 = smul.addr %s163, 4
        %s165 = scalar_lea.vmem %s1, %s164
        %s166 = smul.u32 16, %s16
      $region24: #{trimul_forward.4} parent=15 // pred_fallthru
        _
    $region16: #{trimul_forward.4} parent=5 // pred_fallthru
      _
    %p167 = scmp.le.s32.totalorder 1, %s8
    %p168 = scmp.lt.s32.totalorder %s8, 5
    %p169 = pnand %p167, %p168
    %p170 = pneg %p169
    // Predicated region
    $region25: #{trimul_forward.4} parent=5 // pred_check
      _
    $region26: #{trimul_forward.4} parent=5 // pred_check_branch
      %172 = sbr.rel (%p169) target = $region28
    $region27: #{trimul_forward.4} parent=5 // pred_region
      %s173 = ssub.s32 %s8, 1
      %s174 = smul.u32 16, %s19
      %s175 = smul.u32 2, %s20
      %p176 = scmp.lt.s32.totalorder %s18, 1
      %s177 = scalar_select %p176, %s18, 1
      %p178 = scmp.lt.s32.totalorder %s174, 31
      %s179 = scalar_select %p178, %s174, 31
      %p180 = scmp.lt.s32.totalorder %s175, 1
      %s181 = scalar_select %p180, %s175, 1
      %s182 = smul.addr %s179, 2
      %s183 = sadd.s32 %s181, %s182
      %s184 = smul.addr %s177, 64
      %s185 = sadd.s32 %s183, %s184
      %s186 = smul.addr %s185, 4
      %s187 = scalar_lea.vmem %s0, %s186
      %p188 = pneg %p57
      %p189 = pneg %p54
      %s190 = smul.u32 16, %s19
      %p191 = scmp.lt.s32.totalorder %s18, 1
      %s192 = scalar_select %p191, %s18, 1
      %p193 = scmp.lt.s32.totalorder %s190, 31
      %s194 = scalar_select %p193, %s190, 31
      %s195 = smul.addr %s194, 2
      %s196 = smul.addr %s192, 64
      %s197 = sadd.s32 %s195, %s196
      %s198 = smul.addr %s197, 4
      %s199 = scalar_lea.vmem %s1, %s198
      %p200 = pneg %p85
      %p201 = pneg %p82
      %p202 = pneg %p115
      %p203 = pneg %p112
      %s204 = smul.u32 16, %s19
      %s205 = smul.u32 2, %s20
      %p206 = scmp.lt.s32.totalorder %s18, 1
      %s207 = scalar_select %p206, %s18, 1
      %p208 = scmp.lt.s32.totalorder %s204, 31
      %s209 = scalar_select %p208, %s204, 31
      %p210 = scmp.lt.s32.totalorder %s205, 1
      %s211 = scalar_select %p210, %s205, 1
      %s212 = smul.addr %s209, 2
      %s213 = sadd.s32 %s211, %s212
      %s214 = smul.addr %s207, 64
      %s215 = sadd.s32 %s213, %s214
      %s216 = smul.addr %s215, 4
      %s217 = scalar_lea.vmem %s2, %s216
      %s218 = smul.u32 16, %s19
      %s219 = smul.u32 2, %s20
      %p220 = scmp.lt.s32.totalorder %s18, 1
      %s221 = scalar_select %p220, %s18, 1
      %p222 = scmp.lt.s32.totalorder %s218, 31
      %s223 = scalar_select %p222, %s218, 31
      %p224 = scmp.lt.s32.totalorder %s219, 1
      %s225 = scalar_select %p224, %s219, 1
      %s226 = smul.addr %s223, 2
      %s227 = sadd.s32 %s225, %s226
      %s228 = smul.addr %s221, 64
      %s229 = sadd.s32 %s227, %s228
      %s230 = smul.addr %s229, 4
      %s231 = scalar_lea.vmem %s0, %s230
      %s232 = smul.u32 16, %s19
      %s233 = smul.u32 2, %s20
      %s234 = smul.u32 16, %s19
      %p235 = scmp.lt.s32.totalorder %s18, 1
      %s236 = scalar_select %p235, %s18, 1
      %p237 = scmp.lt.s32.totalorder %s234, 31
      %s238 = scalar_select %p237, %s234, 31
      %s239 = smul.addr %s238, 2
      %s240 = smul.addr %s236, 64
      %s241 = sadd.s32 %s239, %s240
      %s242 = smul.addr %s241, 4
      %s243 = scalar_lea.vmem %s1, %s242
      %s244 = smul.u32 16, %s19
      %s245 = smul.u32 16, %s19
      %s246 = smul.u32 2, %s20
      %p247 = scmp.lt.s32.totalorder %s18, 1
      %s248 = scalar_select %p247, %s18, 1
      %p249 = scmp.lt.s32.totalorder %s245, 31
      %s250 = scalar_select %p249, %s245, 31
      %p251 = scmp.lt.s32.totalorder %s246, 1
      %s252 = scalar_select %p251, %s246, 1
      %s253 = smul.addr %s250, 2
      %s254 = sadd.s32 %s252, %s253
      %s255 = smul.addr %s248, 64
      %s256 = sadd.s32 %s254, %s255
      %s257 = smul.addr %s256, 4
      %s258 = scalar_lea.vmem %s2, %s257
      %s259 = smul.u32 16, %s19
      %s260 = smul.u32 2, %s20
      %v262 = vld [vmem:[%s231] sm:$0xf]
      %v263 = vld [vmem:[%s231 + $0x4] sm:$0xf]
      %v264 = vld [vmem:[%s231 + $0x8] sm:$0xf]
      %v265 = vld [vmem:[%s231 + $0xc] sm:$0xf]
      %v266 = vld [vmem:[%s231 + $0x10] sm:$0xf]
      %v267 = vld [vmem:[%s231 + $0x14] sm:$0xf]
      %v268 = vld [vmem:[%s231 + $0x18] sm:$0xf]
      %v269 = vld [vmem:[%s231 + $0x1c] sm:$0xf]
      %v270 = vld [vmem:[%s231 + $0x20] sm:$0xf]
      %v271 = vld [vmem:[%s231 + $0x24] sm:$0xf]
      %v272 = vld [vmem:[%s231 + $0x28] sm:$0xf]
      %v273 = vld [vmem:[%s231 + $0x2c] sm:$0xf]
      %v274 = vld [vmem:[%s231 + $0x30] sm:$0xf]
      %v275 = vld [vmem:[%s231 + $0x34] sm:$0xf]
      %v276 = vld [vmem:[%s231 + $0x38] sm:$0xf]
      %v277 = vld [vmem:[%s231 + $0x3c] sm:$0xf]
      %v278 = vld [vmem:[%s231 + $0x40] sm:$0xf]
      %v279 = vld [vmem:[%s231 + $0x44] sm:$0xf]
      %v280 = vld [vmem:[%s231 + $0x48] sm:$0xf]
      %v281 = vld [vmem:[%s231 + $0x4c] sm:$0xf]
      %v282 = vld [vmem:[%s231 + $0x50] sm:$0xf]
      %v283 = vld [vmem:[%s231 + $0x54] sm:$0xf]
      %v284 = vld [vmem:[%s231 + $0x58] sm:$0xf]
      %v285 = vld [vmem:[%s231 + $0x5c] sm:$0xf]
      %v286 = vld [vmem:[%s231 + $0x60] sm:$0xf]
      %v287 = vld [vmem:[%s231 + $0x64] sm:$0xf]
      %v288 = vld [vmem:[%s231 + $0x68] sm:$0xf]
      %v289 = vld [vmem:[%s231 + $0x6c] sm:$0xf]
      %v290 = vld [vmem:[%s231 + $0x70] sm:$0xf]
      %v291 = vld [vmem:[%s231 + $0x74] sm:$0xf]
      %v292 = vld [vmem:[%s231 + $0x78] sm:$0xf]
      %v293 = vld [vmem:[%s231 + $0x7c] sm:$0xf]
      %v294 = vld [vmem:[%s243] sm:$0xf]
      %v295 = vld [vmem:[%s243 + $0x4] sm:$0xf]
      %v296 = vld [vmem:[%s243 + $0x8] sm:$0xf]
      %v297 = vld [vmem:[%s243 + $0xc] sm:$0xf]
      %v298 = vld [vmem:[%s243 + $0x10] sm:$0xf]
      %v299 = vld [vmem:[%s243 + $0x14] sm:$0xf]
      %v300 = vld [vmem:[%s243 + $0x18] sm:$0xf]
      %v301 = vld [vmem:[%s243 + $0x1c] sm:$0xf]
      %v302 = vld [vmem:[%s243 + $0x20] sm:$0xf]
      %v303 = vld [vmem:[%s243 + $0x24] sm:$0xf]
      %v304 = vld [vmem:[%s243 + $0x28] sm:$0xf]
      %v305 = vld [vmem:[%s243 + $0x2c] sm:$0xf]
      %v306 = vld [vmem:[%s243 + $0x30] sm:$0xf]
      %v307 = vld [vmem:[%s243 + $0x34] sm:$0xf]
      %v308 = vld [vmem:[%s243 + $0x38] sm:$0xf]
      %v309 = vld [vmem:[%s243 + $0x3c] sm:$0xf]
      %v310 = vld [vmem:[%s243 + $0x40] sm:$0xf]
      %v311 = vld [vmem:[%s243 + $0x44] sm:$0xf]
      %v312 = vld [vmem:[%s243 + $0x48] sm:$0xf]
      %v313 = vld [vmem:[%s243 + $0x4c] sm:$0xf]
      %v314 = vld [vmem:[%s243 + $0x50] sm:$0xf]
      %v315 = vld [vmem:[%s243 + $0x54] sm:$0xf]
      %v316 = vld [vmem:[%s243 + $0x58] sm:$0xf]
      %v317 = vld [vmem:[%s243 + $0x5c] sm:$0xf]
      %v318 = vld [vmem:[%s243 + $0x60] sm:$0xf]
      %v319 = vld [vmem:[%s243 + $0x64] sm:$0xf]
      %v320 = vld [vmem:[%s243 + $0x68] sm:$0xf]
      %v321 = vld [vmem:[%s243 + $0x6c] sm:$0xf]
      %v322 = vld [vmem:[%s243 + $0x70] sm:$0xf]
      %v323 = vld [vmem:[%s243 + $0x74] sm:$0xf]
      %v324 = vld [vmem:[%s243 + $0x78] sm:$0xf]
      %v325 = vld [vmem:[%s243 + $0x7c] sm:$0xf]
      %v328 = vunpack.c.l.b16 %v262
      %v329 = vunpack.c.l.b16 %v263
      %v330 = vpack.c.b16 %v329, %v328
      %v333 = vunpack.c.l.b16 %v294
      %v334 = vunpack.c.l.b16 %v295
      %v335 = vpack.c.b16 %v334, %v333
      %vm336 = vcmask 130048
      %v338 = vsel %vm336, %v330, 0
      %v341 = vsel %vm336, %v335, 0
      %343 = vmatpush.bf16.xpose.msra.mxu0 0
      %344 = vmatpush.bf16.xpose.msra.mxu0 0
      %345 = vmatpush.bf16.xpose.msra.mxu0 0
      %346 = vmatpush.bf16.xpose.msra.mxu0 0
      %347 = vmatpush.bf16.xpose.msra.mxu0 0
      %348 = vmatpush.bf16.xpose.msra.mxu0 0
      %349 = vmatpush.bf16.xpose.msra.mxu0 0
      %350 = vmatpush.bf16.xpose.msra.mxu0 %v341
      %351 = vmatmul.bf16.gmra.mxu0 %v338
      %v352 = vpop.f32.mrf.mxu0
      %v353 = vadd.f32 0.0, %v352
      %v354 = vpop.f32.mrf.mxu0
      %v355 = vadd.f32 0.0, %v354
      %356 = vdwg.mxu0
      %v359 = vunpack.c.l.b16 %v264
      %v360 = vunpack.c.l.b16 %v265
      %v361 = vpack.c.b16 %v360, %v359
      %v364 = vunpack.c.l.b16 %v296
      %v365 = vunpack.c.l.b16 %v297
      %v366 = vpack.c.b16 %v365, %v364
      %v368 = vsel %vm336, %v361, 0
      %v371 = vsel %vm336, %v366, 0
      %373 = vmatpush.bf16.xpose.msra.mxu0 0
      %374 = vmatpush.bf16.xpose.msra.mxu0 0
      %375 = vmatpush.bf16.xpose.msra.mxu0 0
      %376 = vmatpush.bf16.xpose.msra.mxu0 0
      %377 = vmatpush.bf16.xpose.msra.mxu0 0
      %378 = vmatpush.bf16.xpose.msra.mxu0 0
      %379 = vmatpush.bf16.xpose.msra.mxu0 0
      %380 = vmatpush.bf16.xpose.msra.mxu0 %v371
      %381 = vmatmul.bf16.gmra.mxu0 %v368
      %v382 = vpop.f32.mrf.mxu0
      %v383 = vadd.f32 0.0, %v382
      %v384 = vpop.f32.mrf.mxu0
      %v385 = vadd.f32 0.0, %v384
      %386 = vdwg.mxu0
      %v389 = vunpack.c.l.b16 %v266
      %v390 = vunpack.c.l.b16 %v267
      %v391 = vpack.c.b16 %v390, %v389
      %v394 = vunpack.c.l.b16 %v298
      %v395 = vunpack.c.l.b16 %v299
      %v396 = vpack.c.b16 %v395, %v394
      %v398 = vsel %vm336, %v391, 0
      %v401 = vsel %vm336, %v396, 0
      %403 = vmatpush.bf16.xpose.msra.mxu0 0
      %404 = vmatpush.bf16.xpose.msra.mxu0 0
      %405 = vmatpush.bf16.xpose.msra.mxu0 0
      %406 = vmatpush.bf16.xpose.msra.mxu0 0
      %407 = vmatpush.bf16.xpose.msra.mxu0 0
      %408 = vmatpush.bf16.xpose.msra.mxu0 0
      %409 = vmatpush.bf16.xpose.msra.mxu0 0
      %410 = vmatpush.bf16.xpose.msra.mxu0 %v401
      %411 = vmatmul.bf16.gmra.mxu0 %v398
      %v412 = vpop.f32.mrf.mxu0
      %v413 = vadd.f32 0.0, %v412
      %v414 = vpop.f32.mrf.mxu0
      %v415 = vadd.f32 0.0, %v414
      %416 = vdwg.mxu0
      %v419 = vunpack.c.l.b16 %v268
      %v420 = vunpack.c.l.b16 %v269
      %v421 = vpack.c.b16 %v420, %v419
      %v424 = vunpack.c.l.b16 %v300
      %v425 = vunpack.c.l.b16 %v301
      %v426 = vpack.c.b16 %v425, %v424
      %v428 = vsel %vm336, %v421, 0
      %v431 = vsel %vm336, %v426, 0
      %433 = vmatpush.bf16.xpose.msra.mxu0 0
      %434 = vmatpush.bf16.xpose.msra.mxu0 0
      %435 = vmatpush.bf16.xpose.msra.mxu0 0
      %436 = vmatpush.bf16.xpose.msra.mxu0 0
      %437 = vmatpush.bf16.xpose.msra.mxu0 0
      %438 = vmatpush.bf16.xpose.msra.mxu0 0
      %439 = vmatpush.bf16.xpose.msra.mxu0 0
      %440 = vmatpush.bf16.xpose.msra.mxu0 %v431
      %441 = vmatmul.bf16.gmra.mxu0 %v428
      %v442 = vpop.f32.mrf.mxu0
      %v443 = vadd.f32 0.0, %v442
      %v444 = vpop.f32.mrf.mxu0
      %v445 = vadd.f32 0.0, %v444
      %446 = vdwg.mxu0
      %v449 = vunpack.c.l.b16 %v270
      %v450 = vunpack.c.l.b16 %v271
      %v451 = vpack.c.b16 %v450, %v449
      %v454 = vunpack.c.l.b16 %v302
      %v455 = vunpack.c.l.b16 %v303
      %v456 = vpack.c.b16 %v455, %v454
      %v458 = vsel %vm336, %v451, 0
      %v461 = vsel %vm336, %v456, 0
      %463 = vmatpush.bf16.xpose.msra.mxu0 0
      %464 = vmatpush.bf16.xpose.msra.mxu0 0
      %465 = vmatpush.bf16.xpose.msra.mxu0 0
      %466 = vmatpush.bf16.xpose.msra.mxu0 0
      %467 = vmatpush.bf16.xpose.msra.mxu0 0
      %468 = vmatpush.bf16.xpose.msra.mxu0 0
      %469 = vmatpush.bf16.xpose.msra.mxu0 0
      %470 = vmatpush.bf16.xpose.msra.mxu0 %v461
      %471 = vmatmul.bf16.gmra.mxu0 %v458
      %v472 = vpop.f32.mrf.mxu0
      %v473 = vadd.f32 0.0, %v472
      %v474 = vpop.f32.mrf.mxu0
      %v475 = vadd.f32 0.0, %v474
      %476 = vdwg.mxu0
      %v479 = vunpack.c.l.b16 %v272
      %v480 = vunpack.c.l.b16 %v273
      %v481 = vpack.c.b16 %v480, %v479
      %v484 = vunpack.c.l.b16 %v304
      %v485 = vunpack.c.l.b16 %v305
      %v486 = vpack.c.b16 %v485, %v484
      %v488 = vsel %vm336, %v481, 0
      %v491 = vsel %vm336, %v486, 0
      %493 = vmatpush.bf16.xpose.msra.mxu0 0
      %494 = vmatpush.bf16.xpose.msra.mxu0 0
      %495 = vmatpush.bf16.xpose.msra.mxu0 0
      %496 = vmatpush.bf16.xpose.msra.mxu0 0
      %497 = vmatpush.bf16.xpose.msra.mxu0 0
      %498 = vmatpush.bf16.xpose.msra.mxu0 0
      %499 = vmatpush.bf16.xpose.msra.mxu0 0
      %500 = vmatpush.bf16.xpose.msra.mxu0 %v491
      %501 = vmatmul.bf16.gmra.mxu0 %v488
      %v502 = vpop.f32.mrf.mxu0
      %v503 = vadd.f32 0.0, %v502
      %v504 = vpop.f32.mrf.mxu0
      %v505 = vadd.f32 0.0, %v504
      %506 = vdwg.mxu0
      %v509 = vunpack.c.l.b16 %v274
      %v510 = vunpack.c.l.b16 %v275
      %v511 = vpack.c.b16 %v510, %v509
      %v514 = vunpack.c.l.b16 %v306
      %v515 = vunpack.c.l.b16 %v307
      %v516 = vpack.c.b16 %v515, %v514
      %v518 = vsel %vm336, %v511, 0
      %v521 = vsel %vm336, %v516, 0
      %523 = vmatpush.bf16.xpose.msra.mxu0 0
      %524 = vmatpush.bf16.xpose.msra.mxu0 0
      %525 = vmatpush.bf16.xpose.msra.mxu0 0
      %526 = vmatpush.bf16.xpose.msra.mxu0 0
      %527 = vmatpush.bf16.xpose.msra.mxu0 0
      %528 = vmatpush.bf16.xpose.msra.mxu0 0
      %529 = vmatpush.bf16.xpose.msra.mxu0 0
      %530 = vmatpush.bf16.xpose.msra.mxu0 %v521
      %531 = vmatmul.bf16.gmra.mxu0 %v518
      %v532 = vpop.f32.mrf.mxu0
      %v533 = vadd.f32 0.0, %v532
      %v534 = vpop.f32.mrf.mxu0
      %v535 = vadd.f32 0.0, %v534
      %536 = vdwg.mxu0
      %v539 = vunpack.c.l.b16 %v276
      %v540 = vunpack.c.l.b16 %v277
      %v541 = vpack.c.b16 %v540, %v539
      %v544 = vunpack.c.l.b16 %v308
      %v545 = vunpack.c.l.b16 %v309
      %v546 = vpack.c.b16 %v545, %v544
      %v548 = vsel %vm336, %v541, 0
      %v551 = vsel %vm336, %v546, 0
      %553 = vmatpush.bf16.xpose.msra.mxu0 0
      %554 = vmatpush.bf16.xpose.msra.mxu0 0
      %555 = vmatpush.bf16.xpose.msra.mxu0 0
      %556 = vmatpush.bf16.xpose.msra.mxu0 0
      %557 = vmatpush.bf16.xpose.msra.mxu0 0
      %558 = vmatpush.bf16.xpose.msra.mxu0 0
      %559 = vmatpush.bf16.xpose.msra.mxu0 0
      %560 = vmatpush.bf16.xpose.msra.mxu0 %v551
      %561 = vmatmul.bf16.gmra.mxu0 %v548
      %v562 = vpop.f32.mrf.mxu0
      %v563 = vadd.f32 0.0, %v562
      %v564 = vpop.f32.mrf.mxu0
      %v565 = vadd.f32 0.0, %v564
      %566 = vdwg.mxu0
      %v569 = vunpack.c.l.b16 %v278
      %v570 = vunpack.c.l.b16 %v279
      %v571 = vpack.c.b16 %v570, %v569
      %v574 = vunpack.c.l.b16 %v310
      %v575 = vunpack.c.l.b16 %v311
      %v576 = vpack.c.b16 %v575, %v574
      %v578 = vsel %vm336, %v571, 0
      %v581 = vsel %vm336, %v576, 0
      %583 = vmatpush.bf16.xpose.msra.mxu0 0
      %584 = vmatpush.bf16.xpose.msra.mxu0 0
      %585 = vmatpush.bf16.xpose.msra.mxu0 0
      %586 = vmatpush.bf16.xpose.msra.mxu0 0
      %587 = vmatpush.bf16.xpose.msra.mxu0 0
      %588 = vmatpush.bf16.xpose.msra.mxu0 0
      %589 = vmatpush.bf16.xpose.msra.mxu0 0
      %590 = vmatpush.bf16.xpose.msra.mxu0 %v581
      %591 = vmatmul.bf16.gmra.mxu0 %v578
      %v592 = vpop.f32.mrf.mxu0
      %v593 = vadd.f32 0.0, %v592
      %v594 = vpop.f32.mrf.mxu0
      %v595 = vadd.f32 0.0, %v594
      %596 = vdwg.mxu0
      %v599 = vunpack.c.l.b16 %v280
      %v600 = vunpack.c.l.b16 %v281
      %v601 = vpack.c.b16 %v600, %v599
      %v604 = vunpack.c.l.b16 %v312
      %v605 = vunpack.c.l.b16 %v313
      %v606 = vpack.c.b16 %v605, %v604
      %v608 = vsel %vm336, %v601, 0
      %v611 = vsel %vm336, %v606, 0
      %613 = vmatpush.bf16.xpose.msra.mxu0 0
      %614 = vmatpush.bf16.xpose.msra.mxu0 0
      %615 = vmatpush.bf16.xpose.msra.mxu0 0
      %616 = vmatpush.bf16.xpose.msra.mxu0 0
      %617 = vmatpush.bf16.xpose.msra.mxu0 0
      %618 = vmatpush.bf16.xpose.msra.mxu0 0
      %619 = vmatpush.bf16.xpose.msra.mxu0 0
      %620 = vmatpush.bf16.xpose.msra.mxu0 %v611
      %621 = vmatmul.bf16.gmra.mxu0 %v608
      %v622 = vpop.f32.mrf.mxu0
      %v623 = vadd.f32 0.0, %v622
      %v624 = vpop.f32.mrf.mxu0
      %v625 = vadd.f32 0.0, %v624
      %626 = vdwg.mxu0
      %v629 = vunpack.c.l.b16 %v282
      %v630 = vunpack.c.l.b16 %v283
      %v631 = vpack.c.b16 %v630, %v629
      %v634 = vunpack.c.l.b16 %v314
      %v635 = vunpack.c.l.b16 %v315
      %v636 = vpack.c.b16 %v635, %v634
      %v638 = vsel %vm336, %v631, 0
      %v641 = vsel %vm336, %v636, 0
      %643 = vmatpush.bf16.xpose.msra.mxu0 0
      %644 = vmatpush.bf16.xpose.msra.mxu0 0
      %645 = vmatpush.bf16.xpose.msra.mxu0 0
      %646 = vmatpush.bf16.xpose.msra.mxu0 0
      %647 = vmatpush.bf16.xpose.msra.mxu0 0
      %648 = vmatpush.bf16.xpose.msra.mxu0 0
      %649 = vmatpush.bf16.xpose.msra.mxu0 0
      %650 = vmatpush.bf16.xpose.msra.mxu0 %v641
      %651 = vmatmul.bf16.gmra.mxu0 %v638
      %v652 = vpop.f32.mrf.mxu0
      %v653 = vadd.f32 0.0, %v652
      %v654 = vpop.f32.mrf.mxu0
      %v655 = vadd.f32 0.0, %v654
      %656 = vdwg.mxu0
      %v659 = vunpack.c.l.b16 %v284
      %v660 = vunpack.c.l.b16 %v285
      %v661 = vpack.c.b16 %v660, %v659
      %v664 = vunpack.c.l.b16 %v316
      %v665 = vunpack.c.l.b16 %v317
      %v666 = vpack.c.b16 %v665, %v664
      %v668 = vsel %vm336, %v661, 0
      %v671 = vsel %vm336, %v666, 0
      %673 = vmatpush.bf16.xpose.msra.mxu0 0
      %674 = vmatpush.bf16.xpose.msra.mxu0 0
      %675 = vmatpush.bf16.xpose.msra.mxu0 0
      %676 = vmatpush.bf16.xpose.msra.mxu0 0
      %677 = vmatpush.bf16.xpose.msra.mxu0 0
      %678 = vmatpush.bf16.xpose.msra.mxu0 0
      %679 = vmatpush.bf16.xpose.msra.mxu0 0
      %680 = vmatpush.bf16.xpose.msra.mxu0 %v671
      %681 = vmatmul.bf16.gmra.mxu0 %v668
      %v682 = vpop.f32.mrf.mxu0
      %v683 = vadd.f32 0.0, %v682
      %v684 = vpop.f32.mrf.mxu0
      %v685 = vadd.f32 0.0, %v684
      %686 = vdwg.mxu0
      %v689 = vunpack.c.l.b16 %v286
      %v690 = vunpack.c.l.b16 %v287
      %v691 = vpack.c.b16 %v690, %v689
      %v694 = vunpack.c.l.b16 %v318
      %v695 = vunpack.c.l.b16 %v319
      %v696 = vpack.c.b16 %v695, %v694
      %v698 = vsel %vm336, %v691, 0
      %v701 = vsel %vm336, %v696, 0
      %703 = vmatpush.bf16.xpose.msra.mxu0 0
      %704 = vmatpush.bf16.xpose.msra.mxu0 0
      %705 = vmatpush.bf16.xpose.msra.mxu0 0
      %706 = vmatpush.bf16.xpose.msra.mxu0 0
      %707 = vmatpush.bf16.xpose.msra.mxu0 0
      %708 = vmatpush.bf16.xpose.msra.mxu0 0
      %709 = vmatpush.bf16.xpose.msra.mxu0 0
      %710 = vmatpush.bf16.xpose.msra.mxu0 %v701
      %711 = vmatmul.bf16.gmra.mxu0 %v698
      %v712 = vpop.f32.mrf.mxu0
      %v713 = vadd.f32 0.0, %v712
      %v714 = vpop.f32.mrf.mxu0
      %v715 = vadd.f32 0.0, %v714
      %716 = vdwg.mxu0
      %v719 = vunpack.c.l.b16 %v288
      %v720 = vunpack.c.l.b16 %v289
      %v721 = vpack.c.b16 %v720, %v719
      %v724 = vunpack.c.l.b16 %v320
      %v725 = vunpack.c.l.b16 %v321
      %v726 = vpack.c.b16 %v725, %v724
      %v728 = vsel %vm336, %v721, 0
      %v731 = vsel %vm336, %v726, 0
      %733 = vmatpush.bf16.xpose.msra.mxu0 0
      %734 = vmatpush.bf16.xpose.msra.mxu0 0
      %735 = vmatpush.bf16.xpose.msra.mxu0 0
      %736 = vmatpush.bf16.xpose.msra.mxu0 0
      %737 = vmatpush.bf16.xpose.msra.mxu0 0
      %738 = vmatpush.bf16.xpose.msra.mxu0 0
      %739 = vmatpush.bf16.xpose.msra.mxu0 0
      %740 = vmatpush.bf16.xpose.msra.mxu0 %v731
      %741 = vmatmul.bf16.gmra.mxu0 %v728
      %v742 = vpop.f32.mrf.mxu0
      %v743 = vadd.f32 0.0, %v742
      %v744 = vpop.f32.mrf.mxu0
      %v745 = vadd.f32 0.0, %v744
      %746 = vdwg.mxu0
      %v749 = vunpack.c.l.b16 %v290
      %v750 = vunpack.c.l.b16 %v291
      %v751 = vpack.c.b16 %v750, %v749
      %v754 = vunpack.c.l.b16 %v322
      %v755 = vunpack.c.l.b16 %v323
      %v756 = vpack.c.b16 %v755, %v754
      %v758 = vsel %vm336, %v751, 0
      %v761 = vsel %vm336, %v756, 0
      %763 = vmatpush.bf16.xpose.msra.mxu0 0
      %764 = vmatpush.bf16.xpose.msra.mxu0 0
      %765 = vmatpush.bf16.xpose.msra.mxu0 0
      %766 = vmatpush.bf16.xpose.msra.mxu0 0
      %767 = vmatpush.bf16.xpose.msra.mxu0 0
      %768 = vmatpush.bf16.xpose.msra.mxu0 0
      %769 = vmatpush.bf16.xpose.msra.mxu0 0
      %770 = vmatpush.bf16.xpose.msra.mxu0 %v761
      %771 = vmatmul.bf16.gmra.mxu0 %v758
      %v772 = vpop.f32.mrf.mxu0
      %v773 = vadd.f32 0.0, %v772
      %v774 = vpop.f32.mrf.mxu0
      %v775 = vadd.f32 0.0, %v774
      %776 = vdwg.mxu0
      %v779 = vunpack.c.l.b16 %v292
      %v780 = vunpack.c.l.b16 %v293
      %v781 = vpack.c.b16 %v780, %v779
      %v784 = vunpack.c.l.b16 %v324
      %v785 = vunpack.c.l.b16 %v325
      %v786 = vpack.c.b16 %v785, %v784
      %v788 = vsel %vm336, %v781, 0
      %v791 = vsel %vm336, %v786, 0
      %793 = vmatpush.bf16.xpose.msra.mxu0 0
      %794 = vmatpush.bf16.xpose.msra.mxu0 0
      %795 = vmatpush.bf16.xpose.msra.mxu0 0
      %796 = vmatpush.bf16.xpose.msra.mxu0 0
      %797 = vmatpush.bf16.xpose.msra.mxu0 0
      %798 = vmatpush.bf16.xpose.msra.mxu0 0
      %799 = vmatpush.bf16.xpose.msra.mxu0 0
      %800 = vmatpush.bf16.xpose.msra.mxu0 %v791
      %801 = vmatmul.bf16.gmra.mxu0 %v788
      %v802 = vpop.f32.mrf.mxu0
      %v803 = vadd.f32 0.0, %v802
      %v804 = vpop.f32.mrf.mxu0
      %v805 = vadd.f32 0.0, %v804
      %806 = vdwg.mxu0
      %v807 = vpack.c.bf16 %v353, %v353
      %v808 = vpack.c.bf16 %v355, %v355
      %v809 = vpack.c.bf16 %v383, %v383
      %v810 = vpack.c.bf16 %v385, %v385
      %v811 = vpack.c.bf16 %v413, %v413
      %v812 = vpack.c.bf16 %v415, %v415
      %v813 = vpack.c.bf16 %v443, %v443
      %v814 = vpack.c.bf16 %v445, %v445
      %v815 = vpack.c.bf16 %v473, %v473
      %v816 = vpack.c.bf16 %v475, %v475
      %v817 = vpack.c.bf16 %v503, %v503
      %v818 = vpack.c.bf16 %v505, %v505
      %v819 = vpack.c.bf16 %v533, %v533
      %v820 = vpack.c.bf16 %v535, %v535
      %v821 = vpack.c.bf16 %v563, %v563
      %v822 = vpack.c.bf16 %v565, %v565
      %v823 = vpack.c.bf16 %v593, %v593
      %v824 = vpack.c.bf16 %v595, %v595
      %v825 = vpack.c.bf16 %v623, %v623
      %v826 = vpack.c.bf16 %v625, %v625
      %v827 = vpack.c.bf16 %v653, %v653
      %v828 = vpack.c.bf16 %v655, %v655
      %v829 = vpack.c.bf16 %v683, %v683
      %v830 = vpack.c.bf16 %v685, %v685
      %v831 = vpack.c.bf16 %v713, %v713
      %v832 = vpack.c.bf16 %v715, %v715
      %v833 = vpack.c.bf16 %v743, %v743
      %v834 = vpack.c.bf16 %v745, %v745
      %v835 = vpack.c.bf16 %v773, %v773
      %v836 = vpack.c.bf16 %v775, %v775
      %v837 = vpack.c.bf16 %v803, %v803
      %v838 = vpack.c.bf16 %v805, %v805
      %vm839 = vcmask 125952
      %840 = vst.msk [vmem:[%s258] sm:$0xf] %vm839, %v807
      %841 = vst.msk [vmem:[%s258 + $0x4] sm:$0xf] %vm839, %v808
      %842 = vst.msk [vmem:[%s258 + $0x8] sm:$0xf] %vm839, %v809
      %843 = vst.msk [vmem:[%s258 + $0xc] sm:$0xf] %vm839, %v810
      %844 = vst.msk [vmem:[%s258 + $0x10] sm:$0xf] %vm839, %v811
      %845 = vst.msk [vmem:[%s258 + $0x14] sm:$0xf] %vm839, %v812
      %846 = vst.msk [vmem:[%s258 + $0x18] sm:$0xf] %vm839, %v813
      %847 = vst.msk [vmem:[%s258 + $0x1c] sm:$0xf] %vm839, %v814
      %848 = vst.msk [vmem:[%s258 + $0x20] sm:$0xf] %vm839, %v815
      %849 = vst.msk [vmem:[%s258 + $0x24] sm:$0xf] %vm839, %v816
      %850 = vst.msk [vmem:[%s258 + $0x28] sm:$0xf] %vm839, %v817
      %851 = vst.msk [vmem:[%s258 + $0x2c] sm:$0xf] %vm839, %v818
      %852 = vst.msk [vmem:[%s258 + $0x30] sm:$0xf] %vm839, %v819
      %853 = vst.msk [vmem:[%s258 + $0x34] sm:$0xf] %vm839, %v820
      %854 = vst.msk [vmem:[%s258 + $0x38] sm:$0xf] %vm839, %v821
      %855 = vst.msk [vmem:[%s258 + $0x3c] sm:$0xf] %vm839, %v822
      %856 = vst.msk [vmem:[%s258 + $0x40] sm:$0xf] %vm839, %v823
      %857 = vst.msk [vmem:[%s258 + $0x44] sm:$0xf] %vm839, %v824
      %858 = vst.msk [vmem:[%s258 + $0x48] sm:$0xf] %vm839, %v825
      %859 = vst.msk [vmem:[%s258 + $0x4c] sm:$0xf] %vm839, %v826
      %860 = vst.msk [vmem:[%s258 + $0x50] sm:$0xf] %vm839, %v827
      %861 = vst.msk [vmem:[%s258 + $0x54] sm:$0xf] %vm839, %v828
      %862 = vst.msk [vmem:[%s258 + $0x58] sm:$0xf] %vm839, %v829
      %863 = vst.msk [vmem:[%s258 + $0x5c] sm:$0xf] %vm839, %v830
      %864 = vst.msk [vmem:[%s258 + $0x60] sm:$0xf] %vm839, %v831
      %865 = vst.msk [vmem:[%s258 + $0x64] sm:$0xf] %vm839, %v832
      %866 = vst.msk [vmem:[%s258 + $0x68] sm:$0xf] %vm839, %v833
      %867 = vst.msk [vmem:[%s258 + $0x6c] sm:$0xf] %vm839, %v834
      %868 = vst.msk [vmem:[%s258 + $0x70] sm:$0xf] %vm839, %v835
      %869 = vst.msk [vmem:[%s258 + $0x74] sm:$0xf] %vm839, %v836
      %870 = vst.msk [vmem:[%s258 + $0x78] sm:$0xf] %vm839, %v837
      %871 = vst.msk [vmem:[%s258 + $0x7c] sm:$0xf] %vm839, %v838
      %s872 = smul.u32 16, %s19
      %s873 = smul.u32 2, %s20
      %p874 = scmp.lt.s32.totalorder %s18, 1
      %s875 = scalar_select %p874, %s18, 1
      %p876 = scmp.lt.s32.totalorder %s872, 31
      %s877 = scalar_select %p876, %s872, 31
      %p878 = scmp.lt.s32.totalorder %s873, 1
      %s879 = scalar_select %p878, %s873, 1
      %s880 = smul.addr %s877, 2
      %s881 = sadd.s32 %s879, %s880
      %s882 = smul.addr %s875, 64
      %s883 = sadd.s32 %s881, %s882
      %s884 = smul.addr %s883, 4
      %s885 = scalar_lea.vmem %s2, %s884
      // Predicated region
      $region29: #{trimul_forward.4} parent=27 // pred_check
        %p886 = pneg %p112
      $region30: #{trimul_forward.4} parent=27 // pred_check_branch
        %888 = sbr.rel (%p886) target = $region32
      $region31: #{trimul_forward.4} parent=27 // pred_region
        %s889 = smul.u32 16, %s19
        %s890 = smul.u32 2, %s20
      $region32: #{trimul_forward.4} parent=27 // pred_fallthru
        _
    $region28: #{trimul_forward.4} parent=5 // pred_fallthru
      _
    %p891 = scmp.le.s32.totalorder 2, %s8
    // Predicated region
    $region33: #{trimul_forward.4} parent=5 // pred_check
      %p892 = pneg %p891
    $region34: #{trimul_forward.4} parent=5 // pred_check_branch
      %894 = sbr.rel (%p892) target = $region36
    $region35: #{trimul_forward.4} parent=5 // pred_region
      %s895 = ssub.s32 %s8, 2
      // Predicated region
      $region37: #{trimul_forward.4} parent=35 // pred_check
        %p896 = pneg %p118
      $region38: #{trimul_forward.4} parent=35 // pred_check_branch
        %898 = sbr.rel (%p896) target = $region40
      $region39: #{trimul_forward.4} parent=35 // pred_region
        %s899 = smul.u32 16, %s22
        %s900 = smul.u32 2, %s23
        %p901 = scmp.lt.s32.totalorder %s21, 1
        %s902 = scalar_select %p901, %s21, 1
        %p903 = scmp.lt.s32.totalorder %s899, 31
        %s904 = scalar_select %p903, %s899, 31
        %p905 = scmp.lt.s32.totalorder %s900, 1
        %s906 = scalar_select %p905, %s900, 1
        %s907 = smul.addr %s904, 2
        %s908 = sadd.s32 %s906, %s907
        %s909 = smul.addr %s902, 64
        %s910 = sadd.s32 %s908, %s909
        %s911 = smul.addr %s910, 4
        %s912 = scalar_lea.vmem %s2, %s911
      $region40: #{trimul_forward.4} parent=35 // pred_fallthru
        _
    $region36: #{trimul_forward.4} parent=5 // pred_fallthru
      _
  $region6: #{trimul_forward.4} parent=0 // loop_footer
    %s12 = sadd.s32 1, %s8
  $region7: #{trimul_forward.4} parent=0 // loop_footer_branch
    %7 = sbr.rel target = $region3
  $region8: #{trimul_forward.4} parent=0 // loop_exit
    _

// kernel: trimul_forward.5
$region0: #{trimul_forward.5}
  #allocation0 [shape = 'u32[]', space=smem, size = 0x4, offset = 0x4, fixed_abs, tag = 'smem constant byte address 0x4 - core index']
  #allocation1 [shape = 'u32[72,128]{1,0:T(1,128)}', space=vmem, size = 0x9000, scoped, tag = 'internal scratch']
  %s0 = inlined_call_operand.vmem [shape: bf16[2,32,256], index: 0, kind: input, shape index: {}]
  %s1 = inlined_call_operand.vmem [shape: bf16[2,32,256], index: 1, kind: input, shape index: {}]
  %s2 = inlined_call_operand.vmem [shape: f32[32,1], index: 2, kind: input, shape index: {}]
  %s3 = inlined_call_operand.vmem [shape: f32[32,1], index: 3, kind: input, shape index: {}]
  %s4 = inlined_call_operand.vmem [shape: bf16[32,32], index: 4, kind: input, shape index: {}]
  %s5 = inlined_call_operand.hbm [shape: f32[2,256,32], index: 5, kind: output, shape index: {}]
  %s6 = sld [smem:[#allocation0]]
  $region53: #{trimul_forward.5} parent=0
    _
  %s8 = ssub.s32 1, %s6
  %s9 = scalar_select 0, %s8, %s6
  $region1: #{trimul_forward.5} parent=0
    #allocation2 [shape = 'u8[262144]{0}', space=vmem, size = 0x40000, scoped, tag = 'output window, operand 0']
    #allocation3 [shape = 's32[2]{0}', space=sflag, size = 0x8, scoped, tag = 'scoped memory for trimul_forward.5']
    %10 = vsyncpa [#allocation3], 0
    %s11 = scalar_lea.sflag [#allocation3], 1
    %12 = vsyncpa %s11, 0
    loop: start=0, step=1, limit=4
    $region2: #{trimul_forward.5} parent=1 // loop_pre_header
      _
    $region3: #{trimul_forward.5} parent=1 // loop_header
      %s14 = sphi 0, %s18
      %p15 = scmp.ge.s32.totalorder %s14, 4
      %s21 = sphi 0, %s33
      %s22 = sphi 0, %s29
      %s23 = sphi 0, %s21
      %s24 = sphi 0, %s22
      %s25 = sphi 0, %s23
      %s26 = sphi 0, %s24
      %s38 = sphi 0, %s40
      %s41 = sphi 0, %s38
      %s42 = sphi 0, %s41
      %s58 = sphi 0, %s42
      %s66 = sphi 0, %s68
      %s69 = sphi 0, %s66
      %s70 = sphi 0, %s69
      %s86 = sphi 0, %s70
      %s90 = sphi 0, %s90
      %s92 = sphi 0, %s90
      %s93 = sphi 0, %s92
      %s107 = sphi 0, %s93
      %s111 = sphi 0, %s111
      %s113 = sphi 0, %s111
      %s114 = sphi 0, %s113
      %s128 = sphi 0, %s114
      %s132 = sphi 0, %s132
      %s134 = sphi 0, %s132
      %s135 = sphi 0, %s134
      %s149 = sphi 0, %s135
      %s157 = sphi 0, %s159
      %s160 = sphi 0, %s157
      %s161 = sphi 0, %s160
      %s177 = sphi 0, %s161
    $region4: #{trimul_forward.5} parent=1 // loop_header_branch
      %17 = sbr.rel (%p15) target = $region8
    $region5: #{trimul_forward.5} parent=1 // loop_body
      %s19 = ssub.s32 %s14, 1
      %s20 = ssub.s32 %s14, 2
      %s27 = sadd.s32 1, %s22
      %p28 = scmp.ge.s32.totalorder %s27, 1
      %s29 = scalar_select %p28, 0, %s27
      %s30 = sadd.s32 1, %s21
      %s31 = scalar_select %p28, %s30, %s21
      %p32 = scmp.ge.s32.totalorder %s31, 2
      %s33 = scalar_select %p32, 0, %s31
      %s34 = ssub.s32 %s21, %s33
      %s35 = ssub.s32 %s22, %s29
      %s36 = sor.u32 %s34, %s35
      %p37 = scmp.eq.s32.totalorder %s36, 0
      %s39 = sadd.s32 %s38, 1
      %s40 = scalar_select %p37, %s38, %s39
      %p43 = pneg %p37
      %p44 = scmp.eq.s32.totalorder %s14, 1
      %p45 = por %p43, %p44
      %p46 = scmp.ne.s32.totalorder %s38, %s41
      %p47 = scmp.eq.s32.totalorder %s14, 0
      %p48 = por %p46, %p47
      %p49 = scmp.ne.s32.totalorder %s38, %s41
      %p50 = scmp.eq.s32.totalorder %s19, 1
      %p51 = por %p49, %p50
      %p52 = scmp.ne.s32.totalorder %s41, %s42
      %p53 = scmp.eq.s32.totalorder %s19, 0
      %p54 = por %p52, %p53
      %p55 = scmp.ne.s32.totalorder %s41, %s42
      %p56 = scmp.eq.s32.totalorder %s20, 1
      %p57 = por %p55, %p56
      %p59 = scmp.ne.s32.totalorder %s42, %s58
      %p60 = scmp.eq.s32.totalorder %s20, 0
      %p61 = por %p59, %p60
      %s62 = ssub.s32 %s21, %s33
      %s63 = ssub.s32 %s22, %s29
      %s64 = sor.u32 %s62, %s63
      %p65 = scmp.eq.s32.totalorder %s64, 0
      %s67 = sadd.s32 %s66, 1
      %s68 = scalar_select %p65, %s66, %s67
      %p71 = pneg %p65
      %p72 = scmp.eq.s32.totalorder %s14, 1
      %p73 = por %p71, %p72
      %p74 = scmp.ne.s32.totalorder %s66, %s69
      %p75 = scmp.eq.s32.totalorder %s14, 0
      %p76 = por %p74, %p75
      %p77 = scmp.ne.s32.totalorder %s66, %s69
      %p78 = scmp.eq.s32.totalorder %s19, 1
      %p79 = por %p77, %p78
      %p80 = scmp.ne.s32.totalorder %s69, %s70
      %p81 = scmp.eq.s32.totalorder %s19, 0
      %p82 = por %p80, %p81
      %p83 = scmp.ne.s32.totalorder %s69, %s70
      %p84 = scmp.eq.s32.totalorder %s20, 1
      %p85 = por %p83, %p84
      %p87 = scmp.ne.s32.totalorder %s70, %s86
      %p88 = scmp.eq.s32.totalorder %s20, 0
      %p89 = por %p87, %p88
      %s91 = sadd.s32 %s90, 1
      %p94 = scmp.eq.s32.totalorder %s14, 1
      %p95 = scmp.ne.s32.totalorder %s90, %s92
      %p96 = scmp.eq.s32.totalorder %s14, 0
      %p97 = por %p95, %p96
      %p98 = scmp.ne.s32.totalorder %s90, %s92
      %p99 = scmp.eq.s32.totalorder %s19, 1
      %p100 = por %p98, %p99
      %p101 = scmp.ne.s32.totalorder %s92, %s93
      %p102 = scmp.eq.s32.totalorder %s19, 0
      %p103 = por %p101, %p102
      %p104 = scmp.ne.s32.totalorder %s92, %s93
      %p105 = scmp.eq.s32.totalorder %s20, 1
      %p106 = por %p104, %p105
      %p108 = scmp.ne.s32.totalorder %s93, %s107
      %p109 = scmp.eq.s32.totalorder %s20, 0
      %p110 = por %p108, %p109
      %s112 = sadd.s32 %s111, 1
      %p115 = scmp.eq.s32.totalorder %s14, 1
      %p116 = scmp.ne.s32.totalorder %s111, %s113
      %p117 = scmp.eq.s32.totalorder %s14, 0
      %p118 = por %p116, %p117
      %p119 = scmp.ne.s32.totalorder %s111, %s113
      %p120 = scmp.eq.s32.totalorder %s19, 1
      %p121 = por %p119, %p120
      %p122 = scmp.ne.s32.totalorder %s113, %s114
      %p123 = scmp.eq.s32.totalorder %s19, 0
      %p124 = por %p122, %p123
      %p125 = scmp.ne.s32.totalorder %s113, %s114
      %p126 = scmp.eq.s32.totalorder %s20, 1
      %p127 = por %p125, %p126
      %p129 = scmp.ne.s32.totalorder %s114, %s128
      %p130 = scmp.eq.s32.totalorder %s20, 0
      %p131 = por %p129, %p130
      %s133 = sadd.s32 %s132, 1
      %p136 = scmp.eq.s32.totalorder %s14, 1
      %p137 = scmp.ne.s32.totalorder %s132, %s134
      %p138 = scmp.eq.s32.totalorder %s14, 0
      %p139 = por %p137, %p138
      %p140 = scmp.ne.s32.totalorder %s132, %s134
      %p141 = scmp.eq.s32.totalorder %s19, 1
      %p142 = por %p140, %p141
      %p143 = scmp.ne.s32.totalorder %s134, %s135
      %p144 = scmp.eq.s32.totalorder %s19, 0
      %p145 = por %p143, %p144
      %p146 = scmp.ne.s32.totalorder %s134, %s135
      %p147 = scmp.eq.s32.totalorder %s20, 1
      %p148 = por %p146, %p147
      %p150 = scmp.ne.s32.totalorder %s135, %s149
      %p151 = scmp.eq.s32.totalorder %s20, 0
      %p152 = por %p150, %p151
      %s153 = ssub.s32 %s21, %s33
      %s154 = ssub.s32 %s22, %s29
      %s155 = sor.u32 %s153, %s154
      %p156 = scmp.eq.s32.totalorder %s155, 0
      %s158 = sadd.s32 %s157, 1
      %s159 = scalar_select %p156, %s157, %s158
      %p162 = pneg %p156
      %p163 = scmp.eq.s32.totalorder %s14, 1
      %p164 = por %p162, %p163
      %p165 = scmp.ne.s32.totalorder %s157, %s160
      %p166 = scmp.eq.s32.totalorder %s14, 0
      %p167 = por %p165, %p166
      %p168 = scmp.ne.s32.totalorder %s157, %s160
      %p169 = scmp.eq.s32.totalorder %s19, 1
      %p170 = por %p168, %p169
      %p171 = scmp.ne.s32.totalorder %s160, %s161
      %p172 = scmp.eq.s32.totalorder %s19, 0
      %p173 = por %p171, %p172
      %p174 = scmp.ne.s32.totalorder %s160, %s161
      %p175 = scmp.eq.s32.totalorder %s20, 1
      %p176 = por %p174, %p175
      %p178 = scmp.ne.s32.totalorder %s161, %s177
      %p179 = scmp.eq.s32.totalorder %s20, 0
      %p180 = por %p178, %p179
      %p181 = scmp.le.s32.totalorder 1, %s14
      %p182 = scmp.lt.s32.totalorder %s14, 3
      %p183 = pnand %p181, %p182
      %p184 = pneg %p183
      // Predicated region
      $region9: #{trimul_forward.5} parent=5 // pred_check
        _
      $region10: #{trimul_forward.5} parent=5 // pred_check_branch
        %186 = sbr.rel (%p183) target = $region12
      $region11: #{trimul_forward.5} parent=5 // pred_region
        %s187 = ssub.s32 %s14, 1
        // Predicated region
        $region13: #{trimul_forward.5} parent=11 // pred_check
          %p188 = pneg %p103
        $region14: #{trimul_forward.5} parent=11 // pred_check_branch
          %190 = sbr.rel (%p188) target = $region16
        $region15: #{trimul_forward.5} parent=11 // pred_region
          _
        $region16: #{trimul_forward.5} parent=11 // pred_fallthru
          _
        // Predicated region
        $region17: #{trimul_forward.5} parent=11 // pred_check
          %p191 = pneg %p124
        $region18: #{trimul_forward.5} parent=11 // pred_check_branch
          %193 = sbr.rel (%p191) target = $region20
        $region19: #{trimul_forward.5} parent=11 // pred_region
          _
        $region20: #{trimul_forward.5} parent=11 // pred_fallthru
          _
        // Predicated region
        $region21: #{trimul_forward.5} parent=11 // pred_check
          %p194 = pneg %p145
        $region22: #{trimul_forward.5} parent=11 // pred_check_branch
          %196 = sbr.rel (%p194) target = $region24
        $region23: #{trimul_forward.5} parent=11 // pred_region
          _
        $region24: #{trimul_forward.5} parent=11 // pred_fallthru
          _
      $region12: #{trimul_forward.5} parent=5 // pred_fallthru
        _
      %p197 = scmp.lt.s32.totalorder %s14, 2
      // Predicated region
      $region25: #{trimul_forward.5} parent=5 // pred_check
        %p198 = pneg %p197
      $region26: #{trimul_forward.5} parent=5 // pred_check_branch
        %200 = sbr.rel (%p198) target = $region28
      $region27: #{trimul_forward.5} parent=5 // pred_region
        // Predicated region
        $region29: #{trimul_forward.5} parent=27 // pred_check
          %p201 = pneg %p48
        $region30: #{trimul_forward.5} parent=27 // pred_check_branch
          %203 = sbr.rel (%p201) target = $region32
        $region31: #{trimul_forward.5} parent=27 // pred_region
          %s204 = smul.u32 2, %s22
          %p205 = scmp.lt.s32.totalorder %s21, 1
          %s206 = scalar_select %p205, %s21, 1
          %p207 = scmp.lt.s32.totalorder %s204, 1
          %s208 = scalar_select %p207, %s204, 1
          %s209 = smul.addr %s206, 8
          %s210 = sadd.s32 %s208, %s209
          %s211 = smul.addr %s210, 4
          %s212 = scalar_lea.vmem %s0, %s211
          %s213 = smul.u32 2, %s22
        $region32: #{trimul_forward.5} parent=27 // pred_fallthru
          _
        // Predicated region
        $region33: #{trimul_forward.5} parent=27 // pred_check
          %p214 = pneg %p76
        $region34: #{trimul_forward.5} parent=27 // pred_check_branch
          %216 = sbr.rel (%p214) target = $region36
        $region35: #{trimul_forward.5} parent=27 // pred_region
          %s217 = smul.u32 2, %s22
          %p218 = scmp.lt.s32.totalorder %s21, 1
          %s219 = scalar_select %p218, %s21, 1
          %p220 = scmp.lt.s32.totalorder %s217, 1
          %s221 = scalar_select %p220, %s217, 1
          %s222 = smul.addr %s219, 8
          %s223 = sadd.s32 %s221, %s222
          %s224 = smul.addr %s223, 4
          %s225 = scalar_lea.vmem %s1, %s224
          %s226 = smul.u32 2, %s22
        $region36: #{trimul_forward.5} parent=27 // pred_fallthru
          _
      $region28: #{trimul_forward.5} parent=5 // pred_fallthru
        _
      %p227 = scmp.le.s32.totalorder 1, %s14
      %p228 = scmp.lt.s32.totalorder %s14, 3
      %p229 = pnand %p227, %p228
      %p230 = pneg %p229
      // Predicated region
      $region37: #{trimul_forward.5} parent=5 // pred_check
        _
      $region38: #{trimul_forward.5} parent=5 // pred_check_branch
        %232 = sbr.rel (%p229) target = $region40
      $region39: #{trimul_forward.5} parent=5 // pred_region
        %s233 = ssub.s32 %s14, 1
        %s234 = smul.u32 2, %s24
        %p235 = scmp.lt.s32.totalorder %s23, 1
        %s236 = scalar_select %p235, %s23, 1
        %p237 = scmp.lt.s32.totalorder %s234, 1
        %s238 = scalar_select %p237, %s234, 1
        %s239 = smul.addr %s236, 8
        %s240 = sadd.s32 %s238, %s239
        %s241 = smul.addr %s240, 4
        %s242 = scalar_lea.vmem %s0, %s241
        %p243 = pneg %p54
        %p244 = pneg %p51
        %s245 = smul.u32 2, %s24
        %p246 = scmp.lt.s32.totalorder %s23, 1
        %s247 = scalar_select %p246, %s23, 1
        %p248 = scmp.lt.s32.totalorder %s245, 1
        %s249 = scalar_select %p248, %s245, 1
        %s250 = smul.addr %s247, 8
        %s251 = sadd.s32 %s249, %s250
        %s252 = smul.addr %s251, 4
        %s253 = scalar_lea.vmem %s1, %s252
        %p254 = pneg %p82
        %p255 = pneg %p79
        %p256 = pneg %p103
        %p257 = pneg %p100
        %p258 = pneg %p124
        %p259 = pneg %p121
        %p260 = pneg %p145
        %p261 = pneg %p142
        %p262 = pneg %p173
        %p263 = pneg %p170
        %s264 = sand.u32 %s160, 1
        %s265 = scalar_lea.sflag [#allocation3], %s264
        %s266 = sand.u32 %s160, 1
        %s267 = smul.addr %s266, 256
        %s268 = scalar_lea.vmem [#allocation2], %s267
        %s269 = smul.u32 2, %s24
        %p270 = scmp.lt.s32.totalorder %s23, 1
        %s271 = scalar_select %p270, %s23, 1
        %p272 = scmp.lt.s32.totalorder %s269, 1
        %s273 = scalar_select %p272, %s269, 1
        %s274 = smul.addr %s271, 8
        %s275 = sadd.s32 %s273, %s274
        %s276 = smul.addr %s275, 4
        %s277 = scalar_lea.vmem %s0, %s276
        %s278 = smul.u32 2, %s24
        %s279 = smul.u32 2, %s24
        %p280 = scmp.lt.s32.totalorder %s23, 1
        %s281 = scalar_select %p280, %s23, 1
        %p282 = scmp.lt.s32.totalorder %s279, 1
        %s283 = scalar_select %p282, %s279, 1
        %s284 = smul.addr %s281, 8
        %s285 = sadd.s32 %s283, %s284
        %s286 = smul.addr %s285, 4
        %s287 = scalar_lea.vmem %s1, %s286
        %s288 = smul.u32 2, %s24
        %s289 = smul.u32 32, %s24
        %v291 = vld [vmem:[%s277] sm:$0xff]
        %v292 = vld [vmem:[%s277 + $0x8] sm:$0xff]
        %v293 = vld [vmem:[%s277 + $0x10] sm:$0xff]
        %v294 = vld [vmem:[%s277 + $0x18] sm:$0xff]
        %v295 = vunpack.c.l.bf16 %v291
        %v296 = vunpack.c.h.bf16 %v291
        %v297 = vunpack.c.l.bf16 %v292
        %v298 = vunpack.c.h.bf16 %v292
        %v299 = vunpack.c.l.bf16 %v293
        %v300 = vunpack.c.h.bf16 %v293
        %v301 = vunpack.c.l.bf16 %v294
        %v302 = vunpack.c.h.bf16 %v294
        %v303 = vld [vmem:[%s287] sm:$0xff]
        %v304 = vld [vmem:[%s287 + $0x8] sm:$0xff]
        %v305 = vld [vmem:[%s287 + $0x10] sm:$0xff]
        %v306 = vld [vmem:[%s287 + $0x18] sm:$0xff]
        %v307 = vunpack.c.l.bf16 %v303
        %v308 = vunpack.c.h.bf16 %v303
        %v309 = vunpack.c.l.bf16 %v304
        %v310 = vunpack.c.h.bf16 %v304
        %v311 = vunpack.c.l.bf16 %v305
        %v312 = vunpack.c.h.bf16 %v305
        %v313 = vunpack.c.l.bf16 %v306
        %v314 = vunpack.c.h.bf16 %v306
        %v315 = vadd.f32 %v295, %v297
        %v316 = vadd.f32 %v315, %v299
        %v317 = vadd.f32 %v316, %v301
        %v318 = vrot.slane %v317, 4
        %v319 = vadd.f32 %v317, %v318
        %v320 = vrot.slane %v319, 2
        %v321 = vadd.f32 %v319, %v320
        %v322 = vrot.slane %v321, 1
        %v323 = vadd.f32 %v321, %v322
        %v324 = vadd.f32 %v296, %v298
        %v325 = vadd.f32 %v324, %v300
        %v326 = vadd.f32 %v325, %v302
        %v327 = vrot.slane %v326, 4
        %v328 = vadd.f32 %v326, %v327
        %v329 = vrot.slane %v328, 2
        %v330 = vadd.f32 %v328, %v329
        %v331 = vrot.slane %v330, 1
        %v332 = vadd.f32 %v330, %v331
        %v333 = vrcp.pop 32.0
        %v334 = vmul.f32 32.0, %v333
        %v335 = vsub.f32 1.0, %v334
        %v336 = vmul.f32 %v333, %v335
        %v337 = vadd.f32 %v333, %v336
        %vm338 = vweird.f32 %v333
        %v339 = vsel %vm338, %v333, %v337
        %v340 = vmul.f32 %v323, %v339
        %v341 = vmul.f32 %v332, %v339
        %v342 = vsub.f32 %v295, %v340
        %v343 = vsub.f32 %v296, %v341
        %v344 = vsub.f32 %v297, %v340
        %v345 = vsub.f32 %v298, %v341
        %v346 = vsub.f32 %v299, %v340
        %v347 = vsub.f32 %v300, %v341
        %v348 = vsub.f32 %v301, %v340
        %v349 = vsub.f32 %v302, %v341
        %v350 = vmul.f32 %v342, %v342
        %v351 = vmul.f32 %v343, %v343
        %v352 = vmul.f32 %v344, %v344
        %v353 = vmul.f32 %v345, %v345
        %v354 = vmul.f32 %v346, %v346
        %v355 = vmul.f32 %v347, %v347
        %v356 = vmul.f32 %v348, %v348
        %v357 = vmul.f32 %v349, %v349
        %v358 = vadd.f32 %v350, %v352
        %v359 = vadd.f32 %v358, %v354
        %v360 = vadd.f32 %v359, %v356
        %v361 = vrot.slane %v360, 4
        %v362 = vadd.f32 %v360, %v361
        %v363 = vrot.slane %v362, 2
        %v364 = vadd.f32 %v362, %v363
        %v365 = vrot.slane %v364, 1
        %v366 = vadd.f32 %v364, %v365
        %v367 = vadd.f32 %v351, %v353
        %v368 = vadd.f32 %v367, %v355
        %v369 = vadd.f32 %v368, %v357
        %v370 = vrot.slane %v369, 4
        %v371 = vadd.f32 %v369, %v370
        %v372 = vrot.slane %v371, 2
        %v373 = vadd.f32 %v371, %v372
        %v374 = vrot.slane %v373, 1
        %v375 = vadd.f32 %v373, %v374
        %v376 = vmul.f32 %v366, %v339
        %v377 = vmul.f32 %v375, %v339
        %v378 = vadd.f32 %v376, 1e-05
        %v379 = vadd.f32 %v377, 1e-05
        %v380 = vrsqrt.pop %v378
        %v381 = vmul.f32 %v380, %v378
        %v382 = vmul.f32 %v381, %v380
        %v383 = vmul.f32 0.5, %v382
        %v384 = vsub.f32 1.5, %v383
        %v385 = vmul.f32 %v380, %v384
        %vm386 = vweird.f32 %v378
        %vm387 = vweird.f32 %v380
        %vm388 = vmor %vm386, %vm387
        %v389 = vsel %vm388, %v380, %v385
        %v390 = vrsqrt.pop %v379
        %v391 = vmul.f32 %v390, %v379
        %v392 = vmul.f32 %v391, %v390
        %v393 = vmul.f32 0.5, %v392
        %v394 = vsub.f32 1.5, %v393
        %v395 = vmul.f32 %v390, %v394
        %vm396 = vweird.f32 %v379
        %vm397 = vweird.f32 %v390
        %vm398 = vmor %vm396, %vm397
        %v399 = vsel %vm398, %v390, %v395
        %v400 = vmul.f32 %v342, %v389
        %v401 = vmul.f32 %v343, %v399
        %v402 = vmul.f32 %v344, %v389
        %v403 = vmul.f32 %v345, %v399
        %v404 = vmul.f32 %v346, %v389
        %v405 = vmul.f32 %v347, %v399
        %v406 = vmul.f32 %v348, %v389
        %v407 = vmul.f32 %v349, %v399
        %v408 = vld [vmem:[%s2] sm:$0xff]
        %v409 = vld [vmem:[%s2 + $0x8] sm:$0xff]
        %v410 = vld [vmem:[%s2 + $0x10] sm:$0xff]
        %v411 = vld [vmem:[%s2 + $0x18] sm:$0xff]
        %413 = vset.pattern.permute.xlu0 0
        %414 = vperm.xlu0 %413, %v408
        %v415 = vpop.permute.xlu0 %414
        %418 = vset.pattern.permute.xlu0 0
        %419 = vperm.xlu0 %418, %v409
        %v420 = vpop.permute.xlu0 %419
        %423 = vset.pattern.permute.xlu0 0
        %424 = vperm.xlu0 %423, %v410
        %v425 = vpop.permute.xlu0 %424
        %428 = vset.pattern.permute.xlu0 0
        %429 = vperm.xlu0 %428, %v411
        %v430 = vpop.permute.xlu0 %429
        %v432 = vmul.f32 %v400, %v415
        %v433 = vmul.f32 %v401, %v415
        %v434 = vmul.f32 %v402, %v420
        %v435 = vmul.f32 %v403, %v420
        %v436 = vmul.f32 %v404, %v425
        %v437 = vmul.f32 %v405, %v425
        %v438 = vmul.f32 %v406, %v430
        %v439 = vmul.f32 %v407, %v430
        %v440 = vld [vmem:[%s3] sm:$0xff]
        %v441 = vld [vmem:[%s3 + $0x8] sm:$0xff]
        %v442 = vld [vmem:[%s3 + $0x10] sm:$0xff]
        %v443 = vld [vmem:[%s3 + $0x18] sm:$0xff]
        %445 = vset.pattern.permute.xlu0 0
        %446 = vperm.xlu0 %445, %v440
        %v447 = vpop.permute.xlu0 %446
        %450 = vset.pattern.permute.xlu0 0
        %451 = vperm.xlu0 %450, %v441
        %v452 = vpop.permute.xlu0 %451
        %455 = vset.pattern.permute.xlu0 0
        %456 = vperm.xlu0 %455, %v442
        %v457 = vpop.permute.xlu0 %456
        %460 = vset.pattern.permute.xlu0 0
        %461 = vperm.xlu0 %460, %v443
        %v462 = vpop.permute.xlu0 %461
        %v464 = vadd.f32 %v432, %v447
        %v465 = vadd.f32 %v433, %v447
        %v466 = vadd.f32 %v434, %v452
        %v467 = vadd.f32 %v435, %v452
        %v468 = vadd.f32 %v436, %v457
        %v469 = vadd.f32 %v437, %v457
        %v470 = vadd.f32 %v438, %v462
        %v471 = vadd.f32 %v439, %v462
        %v472 = vmul.f32 %v464, %v307
        %v473 = vmul.f32 %v465, %v308
        %v474 = vmul.f32 %v466, %v309
        %v475 = vmul.f32 %v467, %v310
        %v476 = vmul.f32 %v468, %v311
        %v477 = vmul.f32 %v469, %v312
        %v478 = vmul.f32 %v470, %v313
        %v479 = vmul.f32 %v471, %v314
        %v480 = vpack.c.bf16 %v474, %v472
        %v481 = vpack.c.bf16 %v475, %v473
        %v482 = vpack.c.bf16 %v478, %v476
        %v483 = vpack.c.bf16 %v479, %v477
        %v484 = vld [vmem:[%s4] sm:$0xf]
        %v485 = vld [vmem:[%s4 + $0x4] sm:$0xf]
        %v486 = vld [vmem:[%s4 + $0x8] sm:$0xf]
        %v487 = vld [vmem:[%s4 + $0xc] sm:$0xf]
        %488 = vxpose.binary.xlu0.c.b16.start [1/16] %v481, %v480, 128
        %489 = vxpose.binary.xlu0.c.b16.cont [2/16] %v483, %v482, 128
        %490 = vxpose.binary.xlu0.c.b16.cont [3/16] 0, 0, 128
        %491 = vxpose.binary.xlu0.c.b16.cont [4/16] 0, 0, 128
        %492 = vxpose.binary.xlu0.c.b16.cont [5/16] 0, 0, 128
        %493 = vxpose.binary.xlu0.c.b16.cont [6/16] 0, 0, 128
        %494 = vxpose.binary.xlu0.c.b16.cont [7/16] 0, 0, 128
        %495 = vxpose.binary.xlu0.c.b16.end [8/16] 0, 0, 128
        %v496 = vpop.trf.xlu0
        %v497 = vpop.trf.xlu0
        %v498 = vpop.trf.xlu0
        %v499 = vpop.trf.xlu0
        %v500 = vpop.trf.xlu0
        %v501 = vpop.trf.xlu0
        %v502 = vpop.trf.xlu0
        %v503 = vpop.trf.xlu0
        %v504 = vpop.trf.xlu0
        %v505 = vpop.trf.xlu0
        %v506 = vpop.trf.xlu0
        %v507 = vpop.trf.xlu0
        %v508 = vpop.trf.xlu0
        %v509 = vpop.trf.xlu0
        %v510 = vpop.trf.xlu0
        %v511 = vpop.trf.xlu0
        %v516 = vunpack.c.l.b16 %v484
        %v517 = vunpack.c.l.b16 %v485
        %v518 = vunpack.c.l.b16 %v486
        %v519 = vunpack.c.l.b16 %v487
        %v520 = vpack.c.b16 %v517, %v516
        %v521 = vpack.c.b16 %v519, %v518
        %vm524 = vcmask 261120
        %v526 = vsel %vm524, %v496, 0
        %v529 = vsel %vm524, %v498, 0
        %v532 = vsel %vm524, %v500, 0
        %v535 = vsel %vm524, %v502, 0
        %v538 = vsel %vm524, %v504, 0
        %v541 = vsel %vm524, %v506, 0
        %v544 = vsel %vm524, %v508, 0
        %v547 = vsel %vm524, %v510, 0
        %v550 = vsel %vm524, %v497, 0
        %v553 = vsel %vm524, %v499, 0
        %v556 = vsel %vm524, %v501, 0
        %v559 = vsel %vm524, %v503, 0
        %v562 = vsel %vm524, %v505, 0
        %v565 = vsel %vm524, %v507, 0
        %v568 = vsel %vm524, %v509, 0
        %v571 = vsel %vm524, %v511, 0
        %573 = vmatpush.bf16.msra.mxu0 0
        %574 = vmatpush.bf16.msra.mxu0 0
        %575 = vmatpush.bf16.msra.mxu0 0
        %576 = vmatpush.bf16.msra.mxu0 0
        %577 = vmatpush.bf16.msra.mxu0 0
        %578 = vmatpush.bf16.msra.mxu0 0
        %579 = vmatpush.bf16.msra.mxu0 %v521
        %580 = vmatpush.bf16.msra.mxu0 %v520
        %581 = vmatmul.bf16.gmra.mxu0 %v526
        %v582 = vpop.f32.mrf.mxu0
        %v583 = vadd.f32 0.0, %v582
        %v584 = vpop.f32.mrf.mxu0
        %v585 = vadd.f32 0.0, %v584
        %586 = vmatmul.bf16.gmra.mxu0 %v529
        %v587 = vpop.f32.mrf.mxu0
        %v588 = vadd.f32 0.0, %v587
        %v589 = vpop.f32.mrf.mxu0
        %v590 = vadd.f32 0.0, %v589
        %591 = vmatmul.bf16.gmra.mxu0 %v532
        %v592 = vpop.f32.mrf.mxu0
        %v593 = vadd.f32 0.0, %v592
        %v594 = vpop.f32.mrf.mxu0
        %v595 = vadd.f32 0.0, %v594
        %596 = vmatmul.bf16.gmra.mxu0 %v535
        %v597 = vpop.f32.mrf.mxu0
        %v598 = vadd.f32 0.0, %v597
        %v599 = vpop.f32.mrf.mxu0
        %v600 = vadd.f32 0.0, %v599
        %601 = vmatmul.bf16.gmra.mxu0 %v538
        %v602 = vpop.f32.mrf.mxu0
        %v603 = vadd.f32 0.0, %v602
        %v604 = vpop.f32.mrf.mxu0
        %v605 = vadd.f32 0.0, %v604
        %606 = vmatmul.bf16.gmra.mxu0 %v541
        %v607 = vpop.f32.mrf.mxu0
        %v608 = vadd.f32 0.0, %v607
        %v609 = vpop.f32.mrf.mxu0
        %v610 = vadd.f32 0.0, %v609
        %611 = vmatmul.bf16.gmra.mxu0 %v544
        %v612 = vpop.f32.mrf.mxu0
        %v613 = vadd.f32 0.0, %v612
        %v614 = vpop.f32.mrf.mxu0
        %v615 = vadd.f32 0.0, %v614
        %616 = vmatmul.bf16.gmra.mxu0 %v547
        %v617 = vpop.f32.mrf.mxu0
        %v618 = vadd.f32 0.0, %v617
        %v619 = vpop.f32.mrf.mxu0
        %v620 = vadd.f32 0.0, %v619
        %621 = vmatmul.bf16.gmra.mxu0 %v550
        %v622 = vpop.f32.mrf.mxu0
        %v623 = vadd.f32 0.0, %v622
        %v624 = vpop.f32.mrf.mxu0
        %v625 = vadd.f32 0.0, %v624
        %626 = vmatmul.bf16.gmra.mxu0 %v553
        %v627 = vpop.f32.mrf.mxu0
        %v628 = vadd.f32 0.0, %v627
        %v629 = vpop.f32.mrf.mxu0
        %v630 = vadd.f32 0.0, %v629
        %631 = vmatmul.bf16.gmra.mxu0 %v556
        %v632 = vpop.f32.mrf.mxu0
        %v633 = vadd.f32 0.0, %v632
        %v634 = vpop.f32.mrf.mxu0
        %v635 = vadd.f32 0.0, %v634
        %636 = vmatmul.bf16.gmra.mxu0 %v559
        %v637 = vpop.f32.mrf.mxu0
        %v638 = vadd.f32 0.0, %v637
        %v639 = vpop.f32.mrf.mxu0
        %v640 = vadd.f32 0.0, %v639
        %641 = vmatmul.bf16.gmra.mxu0 %v562
        %v642 = vpop.f32.mrf.mxu0
        %v643 = vadd.f32 0.0, %v642
        %v644 = vpop.f32.mrf.mxu0
        %v645 = vadd.f32 0.0, %v644
        %646 = vmatmul.bf16.gmra.mxu0 %v565
        %v647 = vpop.f32.mrf.mxu0
        %v648 = vadd.f32 0.0, %v647
        %v649 = vpop.f32.mrf.mxu0
        %v650 = vadd.f32 0.0, %v649
        %651 = vmatmul.bf16.gmra.mxu0 %v568
        %v652 = vpop.f32.mrf.mxu0
        %v653 = vadd.f32 0.0, %v652
        %v654 = vpop.f32.mrf.mxu0
        %v655 = vadd.f32 0.0, %v654
        %656 = vmatmul.bf16.gmra.mxu0 %v571
        %v657 = vpop.f32.mrf.mxu0
        %v658 = vadd.f32 0.0, %v657
        %v659 = vpop.f32.mrf.mxu0
        %v660 = vadd.f32 0.0, %v659
        %661 = vdwg.mxu0
        %662 = vst.msk [vmem:[%s268] sm:$0xff] %vm524, %v583
        %663 = vst.msk [vmem:[%s268 + $0x8] sm:$0xff] %vm524, %v585
        %664 = vst.msk [vmem:[%s268 + $0x10] sm:$0xff] %vm524, %v588
        %665 = vst.msk [vmem:[%s268 + $0x18] sm:$0xff] %vm524, %v590
        %666 = vst.msk [vmem:[%s268 + $0x20] sm:$0xff] %vm524, %v593
        %667 = vst.msk [vmem:[%s268 + $0x28] sm:$0xff] %vm524, %v595
        %668 = vst.msk [vmem:[%s268 + $0x30] sm:$0xff] %vm524, %v598
        %669 = vst.msk [vmem:[%s268 + $0x38] sm:$0xff] %vm524, %v600
        %670 = vst.msk [vmem:[%s268 + $0x40] sm:$0xff] %vm524, %v603
        %671 = vst.msk [vmem:[%s268 + $0x48] sm:$0xff] %vm524, %v605
        %672 = vst.msk [vmem:[%s268 + $0x50] sm:$0xff] %vm524, %v608
        %673 = vst.msk [vmem:[%s268 + $0x58] sm:$0xff] %vm524, %v610
        %674 = vst.msk [vmem:[%s268 + $0x60] sm:$0xff] %vm524, %v613
        %675 = vst.msk [vmem:[%s268 + $0x68] sm:$0xff] %vm524, %v615
        %676 = vst.msk [vmem:[%s268 + $0x70] sm:$0xff] %vm524, %v618
        %677 = vst.msk [vmem:[%s268 + $0x78] sm:$0xff] %vm524, %v620
        %678 = vst.msk [vmem:[%s268 + $0x80] sm:$0xff] %vm524, %v623
        %679 = vst.msk [vmem:[%s268 + $0x88] sm:$0xff] %vm524, %v625
        %680 = vst.msk [vmem:[%s268 + $0x90] sm:$0xff] %vm524, %v628
        %681 = vst.msk [vmem:[%s268 + $0x98] sm:$0xff] %vm524, %v630
        %682 = vst.msk [vmem:[%s268 + $0xa0] sm:$0xff] %vm524, %v633
        %683 = vst.msk [vmem:[%s268 + $0xa8] sm:$0xff] %vm524, %v635
        %684 = vst.msk [vmem:[%s268 + $0xb0] sm:$0xff] %vm524, %v638
        %685 = vst.msk [vmem:[%s268 + $0xb8] sm:$0xff] %vm524, %v640
        %686 = vst.msk [vmem:[%s268 + $0xc0] sm:$0xff] %vm524, %v643
        %687 = vst.msk [vmem:[%s268 + $0xc8] sm:$0xff] %vm524, %v645
        %688 = vst.msk [vmem:[%s268 + $0xd0] sm:$0xff] %vm524, %v648
        %689 = vst.msk [vmem:[%s268 + $0xd8] sm:$0xff] %vm524, %v650
        %690 = vst.msk [vmem:[%s268 + $0xe0] sm:$0xff] %vm524, %v653
        %691 = vst.msk [vmem:[%s268 + $0xe8] sm:$0xff] %vm524, %v655
        %692 = vst.msk [vmem:[%s268 + $0xf0] sm:$0xff] %vm524, %v658
        %693 = vst.msk [vmem:[%s268 + $0xf8] sm:$0xff] %vm524, %v660
        %s694 = sand.u32 %s160, 1
        %s695 = scalar_lea.sflag [#allocation3], %s694
        %s696 = sand.u32 %s160, 1
        %s697 = smul.addr %s696, 256
        %s698 = scalar_lea.vmem [#allocation2], %s697
        // Predicated region
        $region41: #{trimul_forward.5} parent=39 // pred_check
          %p699 = pneg %p170
        $region42: #{trimul_forward.5} parent=39 // pred_check_branch
          %701 = sbr.rel (%p699) target = $region44
        $region43: #{trimul_forward.5} parent=39 // pred_region
          %s702 = smul.u32 32, %s24
          %704 = vsyncadd %s695, 0
          %s705 = smul.addr %s23, 32
          %s706 = sadd.s32 %s702, %s705
          %s707 = smul.addr %s706, 8
          %s708 = scalar_lea.hbm %s5, %s707
          %s709 = sshll.u32 %s698, 4
          %s710 = int_to_ptr.vmem [resolvable:$true] %s709
          %s711 = sshll.u32 %s708, 4
          %s712 = int_to_ptr.hbm [resolvable:$true] %s711
          %717 = dma.vmem_to_hbm [thread:$0]  %s710, 4096, %s712, %s695, 128, 128, 8
        $region44: #{trimul_forward.5} parent=39 // pred_fallthru
          _
      $region40: #{trimul_forward.5} parent=5 // pred_fallthru
        _
      %p718 = scmp.le.s32.totalorder 2, %s14
      // Predicated region
      $region45: #{trimul_forward.5} parent=5 // pred_check
        %p719 = pneg %p718
      $region46: #{trimul_forward.5} parent=5 // pred_check_branch
        %721 = sbr.rel (%p719) target = $region48
      $region47: #{trimul_forward.5} parent=5 // pred_region
        %s722 = ssub.s32 %s14, 2
        // Predicated region
        $region49: #{trimul_forward.5} parent=47 // pred_check
          %p723 = pneg %p176
        $region50: #{trimul_forward.5} parent=47 // pred_check_branch
          %725 = sbr.rel (%p723) target = $region52
        $region51: #{trimul_forward.5} parent=47 // pred_region
          %s726 = sand.u32 %s161, 1
          %s727 = scalar_lea.sflag [#allocation3], %s726
          %s728 = sand.u32 %s161, 1
          %s729 = smul.addr %s728, 256
          %s730 = scalar_lea.vmem [#allocation2], %s729
          %732 = dma.done %s727, 4096
        $region52: #{trimul_forward.5} parent=47 // pred_fallthru
          _
      $region48: #{trimul_forward.5} parent=5 // pred_fallthru
        _
    $region6: #{trimul_forward.5} parent=1 // loop_footer
      %s18 = sadd.s32 1, %s14
    $region7: #{trimul_forward.5} parent=1 // loop_footer_branch
      %13 = sbr.rel target = $region3
    $region8: #{trimul_forward.5} parent=1 // loop_exit
      _
    %733 = vsyncpa [#allocation3], 1
    %s734 = scalar_lea.sflag [#allocation3], 1
    %735 = vsyncpa %s734, 1

</llo_original>
